<compile_context>
chip_gen: v7x
topology: tpu7x:2x2x1
jax: 0.10.0
libtpu: 0.0.40
codegen_flags: <defaults>
</compile_context>

<pallas_src>
import jax
import jax.numpy as jnp
from jax import lax
from jax.experimental import pallas as pl
from jax.experimental.pallas import tpu as pltpu

# ---- EDM hyperparameters (module defaults) ----
SIGMA_DATA = 0.5
P_MEAN = -1.2
P_STD = 1.2
LOG_EPS = 1e-20  # matches reference log(t, eps=1e-20) clamp


def _gelu(x):
    # tanh-approx GELU (EUP tanh + VPU elementwise), f32
    c = 0.7978845608028654
    return 0.5 * x * (1.0 + jnp.tanh(c * (x + 0.044715 * x * x * x)))


def edm_loss_kernel(
    x_ref,        # (TB, D) f32 clean data tile
    noise_ref,    # (TB, D) f32 gaussian noise tile
    sigma_ref,    # (TB, 1) f32 per-sample noise level
    freqs2_ref,   # (1, 2F) f32  [freqs, freqs]
    phase2_ref,   # (1, 2F) f32  [0, pi/2]  (cos via phase shift)
    wt_ref,       # (2F, H) bf16 fused sin/cos time-emb weight
    bt_ref,       # (1, H)  f32
    w1_ref,       # (D, H)  bf16
    b1_ref,       # (1, H)  f32
    w2_ref,       # (H, D)  bf16
    b2_ref,       # (1, D)  f32
    loss_ref,     # (TB, 1) f32 per-sample weighted loss (output)
):
    x = x_ref[...]
    noise = noise_ref[...]
    sigma = sigma_ref[...]                       # (TB, 1), broadcasts over D

    sd2 = SIGMA_DATA * SIGMA_DATA

    # ---- forward(): noised_x = x + sigma * noise ----
    noised_x = x + sigma * noise

    # ---- preconditioning coefficients (divide-free) ----
    var = sigma * sigma + sd2                    # sigma^2 + sigma_data^2
    inv_sqrt_var = lax.rsqrt(var)
    inv_var = inv_sqrt_var * inv_sqrt_var
    c_in = inv_sqrt_var
    c_skip = sd2 * inv_var
    c_out = sigma * SIGMA_DATA * inv_sqrt_var
    c_noise = 0.25 * jnp.log(jnp.maximum(sigma, LOG_EPS))       # (TB, 1)

    # ---- time embedding (depends only on sigma; one fused matmul) ----
    targ = c_noise * freqs2_ref[...] + phase2_ref[...]          # (TB, 2F)
    sincos = jnp.sin(targ)                                      # sin | cos halves
    temb = (
        jnp.dot(sincos.astype(jnp.bfloat16), wt_ref[...],
                preferred_element_type=jnp.float32)
        + bt_ref[...]
    )                                                           # (TB, H) f32

    # ---- synthetic denoiser net (bf16 MXU operands, f32 accumulation) ----
    xin = c_in * noised_x                                       # (TB, D) f32
    h = (
        jnp.dot(xin.astype(jnp.bfloat16), w1_ref[...],
                preferred_element_type=jnp.float32)
        + b1_ref[...] + temb
    )
    h = _gelu(h)
    net_out = (
        jnp.dot(h.astype(jnp.bfloat16), w2_ref[...],
                preferred_element_type=jnp.float32)
        + b2_ref[...]
    )                                                           # (TB, D) f32

    # ---- denoised = c_skip * noised_x + c_out * net_out ----
    denoised = c_skip * noised_x + c_out * net_out

    # ---- per-sample MSE over D (true D, not padded), EDM loss weight ----
    err = denoised - x
    d = x.shape[-1]
    per_b = jnp.sum(err * err, axis=-1, keepdims=True) * (1.0 / d)   # (TB, 1)
    # loss_weight(sigma) = (sigma^2 + sd^2) / (sigma*sd)^2 == 1 / c_out^2
    loss_w = pl.reciprocal(c_out * c_out, approx=True)               # (TB, 1)
    loss_ref[...] = per_b * loss_w


def elucidated_diffusion_loss(x, noise, sigmas, params, *, tb=128):
    """x, noise: (B, C, N); sigmas: (B,); params: synthetic-net weights.
    Returns the scalar EDM training loss (mean over batch)."""
    b, c, n = x.shape
    d = c * n

    x2 = x.reshape(b, d).astype(jnp.float32)
    noise2 = noise.reshape(b, d).astype(jnp.float32)
    sig2 = sigmas.reshape(b, 1).astype(jnp.float32)

    # Pad batch to a multiple of the batch tile (MXU row-dense); padded rows get
    # sigma=1.0 (finite math) and are sliced away before the final mean.
    b_pad = ((b + tb - 1) // tb) * tb
    pad = b_pad - b
    x2 = jnp.pad(x2, ((0, pad), (0, 0)))
    noise2 = jnp.pad(noise2, ((0, pad), (0, 0)))
    sig2 = jnp.pad(sig2, ((0, pad), (0, 0)), constant_values=1.0)

    inputs = (
        x2, noise2, sig2,
        params["freqs2"], params["phase2"], params["wt"], params["bt"],
        params["w1"], params["b1"], params["w2"], params["b2"],
    )

    in_specs = [
        pl.BlockSpec((tb, d), lambda i: (i, 0)),                       # x
        pl.BlockSpec((tb, d), lambda i: (i, 0)),                       # noise
        pl.BlockSpec((tb, 1), lambda i: (i, 0)),                       # sigma
        pl.BlockSpec(params["freqs2"].shape, lambda i: (0, 0)),        # freqs2
        pl.BlockSpec(params["phase2"].shape, lambda i: (0, 0)),        # phase2
        pl.BlockSpec(params["wt"].shape, lambda i: (0, 0)),            # wt
        pl.BlockSpec(params["bt"].shape, lambda i: (0, 0)),            # bt
        pl.BlockSpec(params["w1"].shape, lambda i: (0, 0)),            # w1
        pl.BlockSpec(params["b1"].shape, lambda i: (0, 0)),            # b1
        pl.BlockSpec(params["w2"].shape, lambda i: (0, 0)),            # w2
        pl.BlockSpec(params["b2"].shape, lambda i: (0, 0)),            # b2
    ]

    hdim = params["w1"].shape[1]
    f2 = params["freqs2"].shape[1]
    flops = int(b_pad * (2 * d * hdim + 2 * hdim * d + 2 * f2 * hdim
                         + 20 * d + 12 * hdim))
    transcendentals = int(b_pad * (f2 + hdim + 2))
    bytes_accessed = int(
        x2.nbytes + noise2.nbytes + sig2.nbytes
        + sum(int(v.nbytes) for v in params.values()) + b_pad * 4
    )

    out = pl.pallas_call(
        edm_loss_kernel,
        out_shape=jax.ShapeDtypeStruct((b_pad, 1), jnp.float32),
        grid=(b_pad // tb,),
        in_specs=in_specs,
        out_specs=pl.BlockSpec((tb, 1), lambda i: (i, 0)),
        compiler_params=pltpu.CompilerParams(
            dimension_semantics=("parallel",),
            vmem_limit_bytes=48 * 1024 * 1024,
        ),
        cost_estimate=pl.CostEstimate(
            flops=flops,
            transcendentals=transcendentals,
            bytes_accessed=bytes_accessed,
        ),
    )(*inputs)

    return jnp.mean(out[:b, 0])


def edm_loss_reference(x, noise, sigmas, params):
    """Pure-JAX reference mirroring the kernel's math (same bf16 casts)."""
    b, c, n = x.shape
    d = c * n
    x2 = x.reshape(b, d).astype(jnp.float32)
    noise2 = noise.reshape(b, d).astype(jnp.float32)
    sigma = sigmas.reshape(b, 1).astype(jnp.float32)
    sd2 = SIGMA_DATA * SIGMA_DATA

    noised = x2 + sigma * noise2
    var = sigma * sigma + sd2
    c_in = var ** -0.5
    c_skip = sd2 / var
    c_out = sigma * SIGMA_DATA * var ** -0.5
    c_noise = 0.25 * jnp.log(jnp.maximum(sigma, LOG_EPS))

    bf = lambda a: a.astype(jnp.bfloat16).astype(jnp.float32)
    targ = c_noise * params["freqs2"] + params["phase2"]
    temb = bf(jnp.sin(targ)) @ params["wt"].astype(jnp.float32) + params["bt"]
    xin = c_in * noised
    h = bf(xin) @ params["w1"].astype(jnp.float32) + params["b1"] + temb
    h = _gelu(h)
    net_out = bf(h) @ params["w2"].astype(jnp.float32) + params["b2"]

    denoised = c_skip * noised + c_out * net_out
    per_b = jnp.mean((denoised - x2) ** 2, axis=-1)
    loss_w = (var[:, 0]) / (sigmas * SIGMA_DATA) ** 2
    return jnp.mean(per_b * loss_w)


def init_params(key, d, hidden=128, n_freq=16):
    ks = jax.random.split(key, 4)
    f32 = jnp.float32
    freqs = jax.random.normal(ks[0], (1, n_freq), dtype=f32)
    freqs2 = jnp.concatenate([freqs, freqs], axis=-1)                      # (1, 2F)
    phase2 = jnp.concatenate(
        [jnp.zeros((1, n_freq), f32), jnp.full((1, n_freq), jnp.pi / 2, f32)],
        axis=-1,
    )                                                                      # (1, 2F)
    wt = (jax.random.normal(ks[1], (2 * n_freq, hidden), dtype=f32)
          * (1.0 / jnp.sqrt(n_freq))).astype(jnp.bfloat16)
    w1 = (jax.random.normal(ks[2], (d, hidden), dtype=f32)
          * (1.0 / jnp.sqrt(d))).astype(jnp.bfloat16)
    w2 = (jax.random.normal(ks[3], (hidden, d), dtype=f32)
          * (1.0 / jnp.sqrt(hidden))).astype(jnp.bfloat16)
    return {
        "freqs2": freqs2,
        "phase2": phase2,
        "wt": wt,
        "bt": jnp.zeros((1, hidden), f32),
        "w1": w1,
        "b1": jnp.zeros((1, hidden), f32),
        "w2": w2,
        "b2": jnp.zeros((1, d), f32),
    }


if __name__ == "__main__":
    # Small shapes consistent with forward(): x is (b, channels, seq_length)
    B, C, N = 2, 4, 16
    key = jax.random.PRNGKey(0)
    k_x, k_noise, k_sig, k_param = jax.random.split(key, 4)

    x = jax.random.normal(k_x, (B, C, N), dtype=jnp.float32)
    noise = jax.random.normal(k_noise, (B, C, N), dtype=jnp.float32)
    # noise_distribution: sigma = exp(P_mean + P_std * randn)
    sigmas = jnp.exp(P_MEAN + P_STD * jax.random.normal(k_sig, (B,), dtype=jnp.float32))

    params = init_params(k_param, d=C * N, hidden=128, n_freq=16)

    loss = elucidated_diffusion_loss(x, noise, sigmas, params)
    loss = jax.block_until_ready(loss)
    assert jnp.isfinite(loss), f"non-finite loss: {loss}"

    ref = jax.block_until_ready(edm_loss_reference(x, noise, sigmas, params))
    rel_err = abs(float(loss) - float(ref)) / max(abs(float(ref)), 1e-8)
    assert rel_err < 0.05, f"kernel loss {loss} vs reference {ref} (rel_err={rel_err})"

    print("KERNEL_OK")
</pallas_src>

<mosaic_0001>
module attributes {stable_mosaic.version = 11 : i64} {
  func.func @edm_loss_kernel(%arg0: i32, %arg1: memref<128x64xf32, #tpu.memory_space<vmem>>, %arg2: memref<128x64xf32, #tpu.memory_space<vmem>>, %arg3: memref<128x1xf32, #tpu.memory_space<vmem>>, %arg4: memref<1x32xf32, #tpu.memory_space<vmem>>, %arg5: memref<1x32xf32, #tpu.memory_space<vmem>>, %arg6: memref<32x128xbf16, #tpu.memory_space<vmem>>, %arg7: memref<1x128xf32, #tpu.memory_space<vmem>>, %arg8: memref<64x128xbf16, #tpu.memory_space<vmem>>, %arg9: memref<1x128xf32, #tpu.memory_space<vmem>>, %arg10: memref<128x64xbf16, #tpu.memory_space<vmem>>, %arg11: memref<1x64xf32, #tpu.memory_space<vmem>>, %arg12: memref<128x1xf32, #tpu.memory_space<vmem>>) attributes {dimension_semantics = [#tpu.dimension_semantics<parallel>], iteration_bounds = array<i64: 1>, scalar_prefetch = 0 : i64, scratch_operands = 0 : i64, tpu.core_type = #tpu.core_type<tc>, window_params = [{transform_indices = @transform_0, window_bounds = array<i64: 128, 64>}, {transform_indices = @transform_1, window_bounds = array<i64: 128, 64>}, {transform_indices = @transform_2, window_bounds = array<i64: 128, 1>}, {pipeline_mode = #tpu.pipeline_mode<synchronous>, transform_indices = @transform_3, window_bounds = array<i64: 1, 32>}, {pipeline_mode = #tpu.pipeline_mode<synchronous>, transform_indices = @transform_4, window_bounds = array<i64: 1, 32>}, {pipeline_mode = #tpu.pipeline_mode<synchronous>, transform_indices = @transform_5, window_bounds = array<i64: 32, 128>}, {pipeline_mode = #tpu.pipeline_mode<synchronous>, transform_indices = @transform_6, window_bounds = array<i64: 1, 128>}, {pipeline_mode = #tpu.pipeline_mode<synchronous>, transform_indices = @transform_7, window_bounds = array<i64: 64, 128>}, {pipeline_mode = #tpu.pipeline_mode<synchronous>, transform_indices = @transform_8, window_bounds = array<i64: 1, 128>}, {pipeline_mode = #tpu.pipeline_mode<synchronous>, transform_indices = @transform_9, window_bounds = array<i64: 128, 64>}, {pipeline_mode = #tpu.pipeline_mode<synchronous>, transform_indices = @transform_10, window_bounds = array<i64: 1, 64>}, {transform_indices = @transform_11, window_bounds = array<i64: 128, 1>}]} {
    %c0 = arith.constant 0 : index
    %c0_0 = arith.constant 0 : index
    %0 = vector.load %arg1[%c0, %c0_0] : memref<128x64xf32, #tpu.memory_space<vmem>>, vector<128x64xf32>
    %c0_1 = arith.constant 0 : index
    %c0_2 = arith.constant 0 : index
    %1 = vector.load %arg2[%c0_1, %c0_2] : memref<128x64xf32, #tpu.memory_space<vmem>>, vector<128x64xf32>
    %c0_3 = arith.constant 0 : index
    %c0_4 = arith.constant 0 : index
    %2 = vector.load %arg3[%c0_3, %c0_4] : memref<128x1xf32, #tpu.memory_space<vmem>>, vector<128x1xf32>
    %3 = vector.broadcast %2 : vector<128x1xf32> to vector<128x64xf32>
    %4 = arith.mulf %3, %1 : vector<128x64xf32>
    %5 = arith.addf %0, %4 : vector<128x64xf32>
    %6 = arith.mulf %2, %2 : vector<128x1xf32>
    %cst = arith.constant 2.500000e-01 : f32
    %7 = vector.broadcast %cst : f32 to vector<128x1xf32>
    %8 = arith.addf %6, %7 : vector<128x1xf32>
    %9 = math.rsqrt %8 : vector<128x1xf32>
    %10 = arith.mulf %9, %9 : vector<128x1xf32>
    %cst_5 = arith.constant 2.500000e-01 : f32
    %11 = vector.broadcast %cst_5 : f32 to vector<128x1xf32>
    %12 = arith.mulf %11, %10 : vector<128x1xf32>
    %cst_6 = arith.constant 5.000000e-01 : f32
    %13 = vector.broadcast %cst_6 : f32 to vector<128x1xf32>
    %14 = arith.mulf %2, %13 : vector<128x1xf32>
    %15 = arith.mulf %14, %9 : vector<128x1xf32>
    %cst_7 = arith.constant 9.99999968E-21 : f32
    %16 = vector.broadcast %cst_7 : f32 to vector<128x1xf32>
    %17 = arith.maximumf %2, %16 : vector<128x1xf32>
    %18 = math.log %17 : vector<128x1xf32>
    %cst_8 = arith.constant 2.500000e-01 : f32
    %19 = vector.broadcast %cst_8 : f32 to vector<128x1xf32>
    %20 = arith.mulf %19, %18 : vector<128x1xf32>
    %c0_9 = arith.constant 0 : index
    %c0_10 = arith.constant 0 : index
    %21 = vector.load %arg4[%c0_9, %c0_10] : memref<1x32xf32, #tpu.memory_space<vmem>>, vector<1x32xf32>
    %22 = vector.broadcast %20 : vector<128x1xf32> to vector<128x32xf32>
    %23 = vector.broadcast %21 : vector<1x32xf32> to vector<128x32xf32>
    %24 = arith.mulf %22, %23 : vector<128x32xf32>
    %c0_11 = arith.constant 0 : index
    %c0_12 = arith.constant 0 : index
    %25 = vector.load %arg5[%c0_11, %c0_12] : memref<1x32xf32, #tpu.memory_space<vmem>>, vector<1x32xf32>
    %26 = vector.broadcast %25 : vector<1x32xf32> to vector<128x32xf32>
    %27 = arith.addf %24, %26 : vector<128x32xf32>
    %28 = math.sin %27 : vector<128x32xf32>
    %29 = arith.truncf %28 : vector<128x32xf32> to vector<128x32xbf16>
    %c0_13 = arith.constant 0 : index
    %c0_14 = arith.constant 0 : index
    %30 = vector.load %arg6[%c0_13, %c0_14] : memref<32x128xbf16, #tpu.memory_space<vmem>>, vector<32x128xbf16>
    %cst_15 = arith.constant dense<0.000000e+00> : vector<128x128xf32>
    %31 = tpu.matmul %29, %30, %cst_15 {dimension_numbers = #tpu.dot_dimension_numbers<[1], [0], [0], [1], [0, 0, 1, 1], [], []>} : vector<128x32xbf16>, vector<32x128xbf16>, vector<128x128xf32> -> vector<128x128xf32>
    %c0_16 = arith.constant 0 : index
    %c0_17 = arith.constant 0 : index
    %32 = vector.load %arg7[%c0_16, %c0_17] : memref<1x128xf32, #tpu.memory_space<vmem>>, vector<1x128xf32>
    %33 = vector.broadcast %32 : vector<1x128xf32> to vector<128x128xf32>
    %34 = arith.addf %31, %33 : vector<128x128xf32>
    %35 = vector.broadcast %9 : vector<128x1xf32> to vector<128x64xf32>
    %36 = arith.mulf %35, %5 : vector<128x64xf32>
    %37 = arith.truncf %36 : vector<128x64xf32> to vector<128x64xbf16>
    %c0_18 = arith.constant 0 : index
    %c0_19 = arith.constant 0 : index
    %38 = vector.load %arg8[%c0_18, %c0_19] : memref<64x128xbf16, #tpu.memory_space<vmem>>, vector<64x128xbf16>
    %cst_20 = arith.constant dense<0.000000e+00> : vector<128x128xf32>
    %39 = tpu.matmul %37, %38, %cst_20 {dimension_numbers = #tpu.dot_dimension_numbers<[1], [0], [0], [1], [0, 0, 1, 1], [], []>} : vector<128x64xbf16>, vector<64x128xbf16>, vector<128x128xf32> -> vector<128x128xf32>
    %c0_21 = arith.constant 0 : index
    %c0_22 = arith.constant 0 : index
    %40 = vector.load %arg9[%c0_21, %c0_22] : memref<1x128xf32, #tpu.memory_space<vmem>>, vector<1x128xf32>
    %41 = vector.broadcast %40 : vector<1x128xf32> to vector<128x128xf32>
    %42 = arith.addf %39, %41 : vector<128x128xf32>
    %43 = arith.addf %42, %34 : vector<128x128xf32>
    %cst_23 = arith.constant 5.000000e-01 : f32
    %44 = vector.broadcast %cst_23 : f32 to vector<128x128xf32>
    %45 = arith.mulf %44, %43 : vector<128x128xf32>
    %cst_24 = arith.constant 4.471500e-02 : f32
    %46 = vector.broadcast %cst_24 : f32 to vector<128x128xf32>
    %47 = arith.mulf %46, %43 : vector<128x128xf32>
    %48 = arith.mulf %47, %43 : vector<128x128xf32>
    %49 = arith.mulf %48, %43 : vector<128x128xf32>
    %50 = arith.addf %43, %49 : vector<128x128xf32>
    %cst_25 = arith.constant 0.797884583 : f32
    %51 = vector.broadcast %cst_25 : f32 to vector<128x128xf32>
    %52 = arith.mulf %51, %50 : vector<128x128xf32>
    %53 = math.tanh %52 : vector<128x128xf32>
    %cst_26 = arith.constant 1.000000e+00 : f32
    %54 = vector.broadcast %cst_26 : f32 to vector<128x128xf32>
    %55 = arith.addf %54, %53 : vector<128x128xf32>
    %56 = arith.mulf %45, %55 : vector<128x128xf32>
    %57 = arith.truncf %56 : vector<128x128xf32> to vector<128x128xbf16>
    %c0_27 = arith.constant 0 : index
    %c0_28 = arith.constant 0 : index
    %58 = vector.load %arg10[%c0_27, %c0_28] : memref<128x64xbf16, #tpu.memory_space<vmem>>, vector<128x64xbf16>
    %cst_29 = arith.constant dense<0.000000e+00> : vector<128x64xf32>
    %59 = tpu.matmul %57, %58, %cst_29 {dimension_numbers = #tpu.dot_dimension_numbers<[1], [0], [0], [1], [0, 0, 1, 1], [], []>} : vector<128x128xbf16>, vector<128x64xbf16>, vector<128x64xf32> -> vector<128x64xf32>
    %c0_30 = arith.constant 0 : index
    %c0_31 = arith.constant 0 : index
    %60 = vector.load %arg11[%c0_30, %c0_31] : memref<1x64xf32, #tpu.memory_space<vmem>>, vector<1x64xf32>
    %61 = vector.broadcast %60 : vector<1x64xf32> to vector<128x64xf32>
    %62 = arith.addf %59, %61 : vector<128x64xf32>
    %63 = vector.broadcast %12 : vector<128x1xf32> to vector<128x64xf32>
    %64 = arith.mulf %63, %5 : vector<128x64xf32>
    %65 = vector.broadcast %15 : vector<128x1xf32> to vector<128x64xf32>
    %66 = arith.mulf %65, %62 : vector<128x64xf32>
    %67 = arith.addf %64, %66 : vector<128x64xf32>
    %68 = arith.subf %67, %0 : vector<128x64xf32>
    %69 = arith.mulf %68, %68 : vector<128x64xf32>
    %cst_32 = arith.constant dense<0.000000e+00> : vector<128xf32>
    %70 = vector.multi_reduction <add>, %69, %cst_32 [1] : vector<128x64xf32> to vector<128xf32>
    %71 = vector.shape_cast %70 : vector<128xf32> to vector<128x1xf32>
    %cst_33 = arith.constant 1.562500e-02 : f32
    %72 = vector.broadcast %cst_33 : f32 to vector<128x1xf32>
    %73 = arith.mulf %71, %72 : vector<128x1xf32>
    %74 = arith.mulf %15, %15 : vector<128x1xf32>
    %75 = tpu.reciprocal %74 {approx = true} : vector<128x1xf32> -> vector<128x1xf32>
    %76 = arith.mulf %73, %75 : vector<128x1xf32>
    %c0_34 = arith.constant 0 : index
    %c0_35 = arith.constant 0 : index
    %77 = vector.load %arg12[%c0_34, %c0_35] : memref<128x1xf32, #tpu.memory_space<vmem>>, vector<128x1xf32>
    tpu.vector_store %arg12[%c0_34, %c0_35], %76 {strides = array<i32>} : memref<128x1xf32, #tpu.memory_space<vmem>>, vector<128x1xf32>,
    return
  }
  func.func @transform_0(%arg0: i32) -> (i32, i32) {
    %c0_i32 = arith.constant 0 : i32
    %c0_i32_0 = arith.constant 0 : i32
    return %arg0, %c0_i32 : i32, i32
  }
  func.func @transform_1(%arg0: i32) -> (i32, i32) {
    %c0_i32 = arith.constant 0 : i32
    %c0_i32_0 = arith.constant 0 : i32
    return %arg0, %c0_i32 : i32, i32
  }
  func.func @transform_2(%arg0: i32) -> (i32, i32) {
    %c0_i32 = arith.constant 0 : i32
    %c0_i32_0 = arith.constant 0 : i32
    return %arg0, %c0_i32 : i32, i32
  }
  func.func @transform_3(%arg0: i32) -> (i32, i32) {
    %c0_i32 = arith.constant 0 : i32
    %c0_i32_0 = arith.constant 0 : i32
    %c0_i32_1 = arith.constant 0 : i32
    return %c0_i32, %c0_i32_0 : i32, i32
  }
  func.func @transform_4(%arg0: i32) -> (i32, i32) {
    %c0_i32 = arith.constant 0 : i32
    %c0_i32_0 = arith.constant 0 : i32
    %c0_i32_1 = arith.constant 0 : i32
    return %c0_i32, %c0_i32_0 : i32, i32
  }
  func.func @transform_5(%arg0: i32) -> (i32, i32) {
    %c0_i32 = arith.constant 0 : i32
    %c0_i32_0 = arith.constant 0 : i32
    %c0_i32_1 = arith.constant 0 : i32
    return %c0_i32, %c0_i32_0 : i32, i32
  }
  func.func @transform_6(%arg0: i32) -> (i32, i32) {
    %c0_i32 = arith.constant 0 : i32
    %c0_i32_0 = arith.constant 0 : i32
    %c0_i32_1 = arith.constant 0 : i32
    return %c0_i32, %c0_i32_0 : i32, i32
  }
  func.func @transform_7(%arg0: i32) -> (i32, i32) {
    %c0_i32 = arith.constant 0 : i32
    %c0_i32_0 = arith.constant 0 : i32
    %c0_i32_1 = arith.constant 0 : i32
    return %c0_i32, %c0_i32_0 : i32, i32
  }
  func.func @transform_8(%arg0: i32) -> (i32, i32) {
    %c0_i32 = arith.constant 0 : i32
    %c0_i32_0 = arith.constant 0 : i32
    %c0_i32_1 = arith.constant 0 : i32
    return %c0_i32, %c0_i32_0 : i32, i32
  }
  func.func @transform_9(%arg0: i32) -> (i32, i32) {
    %c0_i32 = arith.constant 0 : i32
    %c0_i32_0 = arith.constant 0 : i32
    %c0_i32_1 = arith.constant 0 : i32
    return %c0_i32, %c0_i32_0 : i32, i32
  }
  func.func @transform_10(%arg0: i32) -> (i32, i32) {
    %c0_i32 = arith.constant 0 : i32
    %c0_i32_0 = arith.constant 0 : i32
    %c0_i32_1 = arith.constant 0 : i32
    return %c0_i32, %c0_i32_0 : i32, i32
  }
  func.func @transform_11(%arg0: i32) -> (i32, i32) {
    %c0_i32 = arith.constant 0 : i32
    %c0_i32_0 = arith.constant 0 : i32
    return %arg0, %c0_i32 : i32, i32
  }
}

</mosaic_0001>

<llo_original>
// kernel: tpu_custom_call.1
$region0: #{tpu_custom_call.1}
  #allocation0 [shape = 'u32[]', space=smem, size = 0x4, offset = 0x4, fixed_abs, tag = 'smem constant byte address 0x4 - core index']
  #allocation1 [shape = 'u32[144,128]{1,0:T(1,128)}', space=vmem, size = 0x12000, scoped, tag = 'internal scratch']
  %s0 = inlined_call_operand.vmem [shape: f32[128,64], index: 0, kind: input, shape index: {}]
  %s1 = inlined_call_operand.vmem [shape: f32[128,64], index: 1, kind: input, shape index: {}]
  %s2 = inlined_call_operand.vmem [shape: f32[128,1], index: 2, kind: input, shape index: {}]
  %s3 = inlined_call_operand.vmem [shape: f32[1,32], index: 3, kind: input, shape index: {}]
  %s4 = inlined_call_operand.vmem [shape: f32[1,32], index: 4, kind: input, shape index: {}]
  %s5 = inlined_call_operand.vmem [shape: bf16[32,128], index: 5, kind: input, shape index: {}]
  %s6 = inlined_call_operand.vmem [shape: f32[1,128], index: 6, kind: input, shape index: {}]
  %s7 = inlined_call_operand.vmem [shape: bf16[64,128], index: 7, kind: input, shape index: {}]
  %s8 = inlined_call_operand.vmem [shape: f32[1,128], index: 8, kind: input, shape index: {}]
  %s9 = inlined_call_operand.vmem [shape: bf16[128,64], index: 9, kind: input, shape index: {}]
  %s10 = inlined_call_operand.vmem [shape: f32[1,64], index: 10, kind: input, shape index: {}]
  %s11 = inlined_call_operand.vmem [shape: f32[128,1], index: 11, kind: output, shape index: {}]
  %s12 = sld [smem:[#allocation0]]
  $region54: #{tpu_custom_call.1} parent=0
    _
  %s14 = ssub.s32 1, %s12
  %s15 = scalar_select 0, %s14, %s12
  // Predicated region
  $region2: #{tpu_custom_call.1} parent=0 // pred_check
    _
  $region3: #{tpu_custom_call.1} parent=0 // pred_check_branch
    %17 = sbr.rel (0) target = $region5
  $region4: #{tpu_custom_call.1} parent=0 // pred_region
    _
  $region5: #{tpu_custom_call.1} parent=0 // pred_fallthru
    _
  // Predicated region
  $region6: #{tpu_custom_call.1} parent=0 // pred_check
    _
  $region7: #{tpu_custom_call.1} parent=0 // pred_check_branch
    %19 = sbr.rel (0) target = $region9
  $region8: #{tpu_custom_call.1} parent=0 // pred_region
    _
  $region9: #{tpu_custom_call.1} parent=0 // pred_fallthru
    _
  // Predicated region
  $region10: #{tpu_custom_call.1} parent=0 // pred_check
    _
  $region11: #{tpu_custom_call.1} parent=0 // pred_check_branch
    %21 = sbr.rel (0) target = $region13
  $region12: #{tpu_custom_call.1} parent=0 // pred_region
    _
  $region13: #{tpu_custom_call.1} parent=0 // pred_fallthru
    _
  // Predicated region
  $region14: #{tpu_custom_call.1} parent=0 // pred_check
    _
  $region15: #{tpu_custom_call.1} parent=0 // pred_check_branch
    %23 = sbr.rel (0) target = $region17
  $region16: #{tpu_custom_call.1} parent=0 // pred_region
    _
  $region17: #{tpu_custom_call.1} parent=0 // pred_fallthru
    _
  // Predicated region
  $region18: #{tpu_custom_call.1} parent=0 // pred_check
    _
  $region19: #{tpu_custom_call.1} parent=0 // pred_check_branch
    %25 = sbr.rel (0) target = $region21
  $region20: #{tpu_custom_call.1} parent=0 // pred_region
    _
  $region21: #{tpu_custom_call.1} parent=0 // pred_fallthru
    _
  // Predicated region
  $region22: #{tpu_custom_call.1} parent=0 // pred_check
    _
  $region23: #{tpu_custom_call.1} parent=0 // pred_check_branch
    %27 = sbr.rel (0) target = $region25
  $region24: #{tpu_custom_call.1} parent=0 // pred_region
    _
  $region25: #{tpu_custom_call.1} parent=0 // pred_fallthru
    _
  // Predicated region
  $region26: #{tpu_custom_call.1} parent=0 // pred_check
    _
  $region27: #{tpu_custom_call.1} parent=0 // pred_check_branch
    %29 = sbr.rel (0) target = $region29
  $region28: #{tpu_custom_call.1} parent=0 // pred_region
    _
  $region29: #{tpu_custom_call.1} parent=0 // pred_fallthru
    _
  // Predicated region
  $region30: #{tpu_custom_call.1} parent=0 // pred_check
    _
  $region31: #{tpu_custom_call.1} parent=0 // pred_check_branch
    %31 = sbr.rel (0) target = $region33
  $region32: #{tpu_custom_call.1} parent=0 // pred_region
    _
  $region33: #{tpu_custom_call.1} parent=0 // pred_fallthru
    _
  // Predicated region
  $region34: #{tpu_custom_call.1} parent=0 // pred_check
    _
  $region35: #{tpu_custom_call.1} parent=0 // pred_check_branch
    %33 = sbr.rel (0) target = $region37
  $region36: #{tpu_custom_call.1} parent=0 // pred_region
    _
  $region37: #{tpu_custom_call.1} parent=0 // pred_fallthru
    _
  // Predicated region
  $region38: #{tpu_custom_call.1} parent=0 // pred_check
    _
  $region39: #{tpu_custom_call.1} parent=0 // pred_check_branch
    %35 = sbr.rel (0) target = $region41
  $region40: #{tpu_custom_call.1} parent=0 // pred_region
    _
  $region41: #{tpu_custom_call.1} parent=0 // pred_fallthru
    _
  // Predicated region
  $region42: #{tpu_custom_call.1} parent=0 // pred_check
    _
  $region43: #{tpu_custom_call.1} parent=0 // pred_check_branch
    %37 = sbr.rel (0) target = $region45
  $region44: #{tpu_custom_call.1} parent=0 // pred_region
    _
  $region45: #{tpu_custom_call.1} parent=0 // pred_fallthru
    _
  %v39 = vld [vmem:[%s0] sm:$0xff]
  %v40 = vld [vmem:[%s0 + $0x8] sm:$0xff]
  %v41 = vld [vmem:[%s0 + $0x10] sm:$0xff]
  %v42 = vld [vmem:[%s0 + $0x18] sm:$0xff]
  %v43 = vld [vmem:[%s0 + $0x20] sm:$0xff]
  %v44 = vld [vmem:[%s0 + $0x28] sm:$0xff]
  %v45 = vld [vmem:[%s0 + $0x30] sm:$0xff]
  %v46 = vld [vmem:[%s0 + $0x38] sm:$0xff]
  %v47 = vld [vmem:[%s0 + $0x40] sm:$0xff]
  %v48 = vld [vmem:[%s0 + $0x48] sm:$0xff]
  %v49 = vld [vmem:[%s0 + $0x50] sm:$0xff]
  %v50 = vld [vmem:[%s0 + $0x58] sm:$0xff]
  %v51 = vld [vmem:[%s0 + $0x60] sm:$0xff]
  %v52 = vld [vmem:[%s0 + $0x68] sm:$0xff]
  %v53 = vld [vmem:[%s0 + $0x70] sm:$0xff]
  %v54 = vld [vmem:[%s0 + $0x78] sm:$0xff]
  %v55 = vld [vmem:[%s1] sm:$0xff]
  %v56 = vld [vmem:[%s1 + $0x8] sm:$0xff]
  %v57 = vld [vmem:[%s1 + $0x10] sm:$0xff]
  %v58 = vld [vmem:[%s1 + $0x18] sm:$0xff]
  %v59 = vld [vmem:[%s1 + $0x20] sm:$0xff]
  %v60 = vld [vmem:[%s1 + $0x28] sm:$0xff]
  %v61 = vld [vmem:[%s1 + $0x30] sm:$0xff]
  %v62 = vld [vmem:[%s1 + $0x38] sm:$0xff]
  %v63 = vld [vmem:[%s1 + $0x40] sm:$0xff]
  %v64 = vld [vmem:[%s1 + $0x48] sm:$0xff]
  %v65 = vld [vmem:[%s1 + $0x50] sm:$0xff]
  %v66 = vld [vmem:[%s1 + $0x58] sm:$0xff]
  %v67 = vld [vmem:[%s1 + $0x60] sm:$0xff]
  %v68 = vld [vmem:[%s1 + $0x68] sm:$0xff]
  %v69 = vld [vmem:[%s1 + $0x70] sm:$0xff]
  %v70 = vld [vmem:[%s1 + $0x78] sm:$0xff]
  %v71 = vld [vmem:[%s2] sm:$0xff]
  %v72 = vld [vmem:[%s2 + $0x8] sm:$0xff]
  %v73 = vld [vmem:[%s2 + $0x10] sm:$0xff]
  %v74 = vld [vmem:[%s2 + $0x18] sm:$0xff]
  %v75 = vld [vmem:[%s2 + $0x20] sm:$0xff]
  %v76 = vld [vmem:[%s2 + $0x28] sm:$0xff]
  %v77 = vld [vmem:[%s2 + $0x30] sm:$0xff]
  %v78 = vld [vmem:[%s2 + $0x38] sm:$0xff]
  %v79 = vld [vmem:[%s2 + $0x40] sm:$0xff]
  %v80 = vld [vmem:[%s2 + $0x48] sm:$0xff]
  %v81 = vld [vmem:[%s2 + $0x50] sm:$0xff]
  %v82 = vld [vmem:[%s2 + $0x58] sm:$0xff]
  %v83 = vld [vmem:[%s2 + $0x60] sm:$0xff]
  %v84 = vld [vmem:[%s2 + $0x68] sm:$0xff]
  %v85 = vld [vmem:[%s2 + $0x70] sm:$0xff]
  %v86 = vld [vmem:[%s2 + $0x78] sm:$0xff]
  %88 = vset.pattern.permute.xlu0 0
  %89 = vperm.xlu0 %88, %v71
  %v90 = vpop.permute.xlu0 %89
  %93 = vset.pattern.permute.xlu0 0
  %94 = vperm.xlu0 %93, %v72
  %v95 = vpop.permute.xlu0 %94
  %98 = vset.pattern.permute.xlu0 0
  %99 = vperm.xlu0 %98, %v73
  %v100 = vpop.permute.xlu0 %99
  %103 = vset.pattern.permute.xlu0 0
  %104 = vperm.xlu0 %103, %v74
  %v105 = vpop.permute.xlu0 %104
  %108 = vset.pattern.permute.xlu0 0
  %109 = vperm.xlu0 %108, %v75
  %v110 = vpop.permute.xlu0 %109
  %113 = vset.pattern.permute.xlu0 0
  %114 = vperm.xlu0 %113, %v76
  %v115 = vpop.permute.xlu0 %114
  %118 = vset.pattern.permute.xlu0 0
  %119 = vperm.xlu0 %118, %v77
  %v120 = vpop.permute.xlu0 %119
  %123 = vset.pattern.permute.xlu0 0
  %124 = vperm.xlu0 %123, %v78
  %v125 = vpop.permute.xlu0 %124
  %128 = vset.pattern.permute.xlu0 0
  %129 = vperm.xlu0 %128, %v79
  %v130 = vpop.permute.xlu0 %129
  %133 = vset.pattern.permute.xlu0 0
  %134 = vperm.xlu0 %133, %v80
  %v135 = vpop.permute.xlu0 %134
  %138 = vset.pattern.permute.xlu0 0
  %139 = vperm.xlu0 %138, %v81
  %v140 = vpop.permute.xlu0 %139
  %143 = vset.pattern.permute.xlu0 0
  %144 = vperm.xlu0 %143, %v82
  %v145 = vpop.permute.xlu0 %144
  %148 = vset.pattern.permute.xlu0 0
  %149 = vperm.xlu0 %148, %v83
  %v150 = vpop.permute.xlu0 %149
  %153 = vset.pattern.permute.xlu0 0
  %154 = vperm.xlu0 %153, %v84
  %v155 = vpop.permute.xlu0 %154
  %158 = vset.pattern.permute.xlu0 0
  %159 = vperm.xlu0 %158, %v85
  %v160 = vpop.permute.xlu0 %159
  %163 = vset.pattern.permute.xlu0 0
  %164 = vperm.xlu0 %163, %v86
  %v165 = vpop.permute.xlu0 %164
  %v167 = vmul.f32 %v90, %v55
  %v168 = vmul.f32 %v95, %v56
  %v169 = vmul.f32 %v100, %v57
  %v170 = vmul.f32 %v105, %v58
  %v171 = vmul.f32 %v110, %v59
  %v172 = vmul.f32 %v115, %v60
  %v173 = vmul.f32 %v120, %v61
  %v174 = vmul.f32 %v125, %v62
  %v175 = vmul.f32 %v130, %v63
  %v176 = vmul.f32 %v135, %v64
  %v177 = vmul.f32 %v140, %v65
  %v178 = vmul.f32 %v145, %v66
  %v179 = vmul.f32 %v150, %v67
  %v180 = vmul.f32 %v155, %v68
  %v181 = vmul.f32 %v160, %v69
  %v182 = vmul.f32 %v165, %v70
  %v183 = vadd.f32 %v39, %v167
  %v184 = vadd.f32 %v40, %v168
  %v185 = vadd.f32 %v41, %v169
  %v186 = vadd.f32 %v42, %v170
  %v187 = vadd.f32 %v43, %v171
  %v188 = vadd.f32 %v44, %v172
  %v189 = vadd.f32 %v45, %v173
  %v190 = vadd.f32 %v46, %v174
  %v191 = vadd.f32 %v47, %v175
  %v192 = vadd.f32 %v48, %v176
  %v193 = vadd.f32 %v49, %v177
  %v194 = vadd.f32 %v50, %v178
  %v195 = vadd.f32 %v51, %v179
  %v196 = vadd.f32 %v52, %v180
  %v197 = vadd.f32 %v53, %v181
  %v198 = vadd.f32 %v54, %v182
  %v199 = vmul.f32 %v71, %v71
  %v200 = vmul.f32 %v72, %v72
  %v201 = vmul.f32 %v73, %v73
  %v202 = vmul.f32 %v74, %v74
  %v203 = vmul.f32 %v75, %v75
  %v204 = vmul.f32 %v76, %v76
  %v205 = vmul.f32 %v77, %v77
  %v206 = vmul.f32 %v78, %v78
  %v207 = vmul.f32 %v79, %v79
  %v208 = vmul.f32 %v80, %v80
  %v209 = vmul.f32 %v81, %v81
  %v210 = vmul.f32 %v82, %v82
  %v211 = vmul.f32 %v83, %v83
  %v212 = vmul.f32 %v84, %v84
  %v213 = vmul.f32 %v85, %v85
  %v214 = vmul.f32 %v86, %v86
  %v215 = vadd.f32 %v199, 0.25
  %v216 = vadd.f32 %v200, 0.25
  %v217 = vadd.f32 %v201, 0.25
  %v218 = vadd.f32 %v202, 0.25
  %v219 = vadd.f32 %v203, 0.25
  %v220 = vadd.f32 %v204, 0.25
  %v221 = vadd.f32 %v205, 0.25
  %v222 = vadd.f32 %v206, 0.25
  %v223 = vadd.f32 %v207, 0.25
  %v224 = vadd.f32 %v208, 0.25
  %v225 = vadd.f32 %v209, 0.25
  %v226 = vadd.f32 %v210, 0.25
  %v227 = vadd.f32 %v211, 0.25
  %v228 = vadd.f32 %v212, 0.25
  %v229 = vadd.f32 %v213, 0.25
  %v230 = vadd.f32 %v214, 0.25
  %v231 = vrsqrt.pop %v215
  %v232 = vrsqrt.pop %v216
  %v233 = vrsqrt.pop %v217
  %v234 = vrsqrt.pop %v218
  %v235 = vrsqrt.pop %v219
  %v236 = vrsqrt.pop %v220
  %v237 = vrsqrt.pop %v221
  %v238 = vrsqrt.pop %v222
  %v239 = vrsqrt.pop %v223
  %v240 = vrsqrt.pop %v224
  %v241 = vrsqrt.pop %v225
  %v242 = vrsqrt.pop %v226
  %v243 = vrsqrt.pop %v227
  %v244 = vrsqrt.pop %v228
  %v245 = vrsqrt.pop %v229
  %v246 = vrsqrt.pop %v230
  %v247 = vmul.f32 %v231, %v231
  %v248 = vmul.f32 %v232, %v232
  %v249 = vmul.f32 %v233, %v233
  %v250 = vmul.f32 %v234, %v234
  %v251 = vmul.f32 %v235, %v235
  %v252 = vmul.f32 %v236, %v236
  %v253 = vmul.f32 %v237, %v237
  %v254 = vmul.f32 %v238, %v238
  %v255 = vmul.f32 %v239, %v239
  %v256 = vmul.f32 %v240, %v240
  %v257 = vmul.f32 %v241, %v241
  %v258 = vmul.f32 %v242, %v242
  %v259 = vmul.f32 %v243, %v243
  %v260 = vmul.f32 %v244, %v244
  %v261 = vmul.f32 %v245, %v245
  %v262 = vmul.f32 %v246, %v246
  %v263 = vmul.f32 %v247, 0.25
  %v264 = vmul.f32 %v248, 0.25
  %v265 = vmul.f32 %v249, 0.25
  %v266 = vmul.f32 %v250, 0.25
  %v267 = vmul.f32 %v251, 0.25
  %v268 = vmul.f32 %v252, 0.25
  %v269 = vmul.f32 %v253, 0.25
  %v270 = vmul.f32 %v254, 0.25
  %v271 = vmul.f32 %v255, 0.25
  %v272 = vmul.f32 %v256, 0.25
  %v273 = vmul.f32 %v257, 0.25
  %v274 = vmul.f32 %v258, 0.25
  %v275 = vmul.f32 %v259, 0.25
  %v276 = vmul.f32 %v260, 0.25
  %v277 = vmul.f32 %v261, 0.25
  %v278 = vmul.f32 %v262, 0.25
  %v279 = vmul.f32 %v71, 0.5
  %v280 = vmul.f32 %v72, 0.5
  %v281 = vmul.f32 %v73, 0.5
  %v282 = vmul.f32 %v74, 0.5
  %v283 = vmul.f32 %v75, 0.5
  %v284 = vmul.f32 %v76, 0.5
  %v285 = vmul.f32 %v77, 0.5
  %v286 = vmul.f32 %v78, 0.5
  %v287 = vmul.f32 %v79, 0.5
  %v288 = vmul.f32 %v80, 0.5
  %v289 = vmul.f32 %v81, 0.5
  %v290 = vmul.f32 %v82, 0.5
  %v291 = vmul.f32 %v83, 0.5
  %v292 = vmul.f32 %v84, 0.5
  %v293 = vmul.f32 %v85, 0.5
  %v294 = vmul.f32 %v86, 0.5
  %v295 = vmul.f32 %v279, %v231
  %v296 = vmul.f32 %v280, %v232
  %v297 = vmul.f32 %v281, %v233
  %v298 = vmul.f32 %v282, %v234
  %v299 = vmul.f32 %v283, %v235
  %v300 = vmul.f32 %v284, %v236
  %v301 = vmul.f32 %v285, %v237
  %v302 = vmul.f32 %v286, %v238
  %v303 = vmul.f32 %v287, %v239
  %v304 = vmul.f32 %v288, %v240
  %v305 = vmul.f32 %v289, %v241
  %v306 = vmul.f32 %v290, %v242
  %v307 = vmul.f32 %v291, %v243
  %v308 = vmul.f32 %v292, %v244
  %v309 = vmul.f32 %v293, %v245
  %v310 = vmul.f32 %v294, %v246
  %v311 = vmax.f32 %v71, 1e-20
  %v312 = vmax.f32 %v72, 1e-20
  %v313 = vmax.f32 %v73, 1e-20
  %v314 = vmax.f32 %v74, 1e-20
  %v315 = vmax.f32 %v75, 1e-20
  %v316 = vmax.f32 %v76, 1e-20
  %v317 = vmax.f32 %v77, 1e-20
  %v318 = vmax.f32 %v78, 1e-20
  %v319 = vmax.f32 %v79, 1e-20
  %v320 = vmax.f32 %v80, 1e-20
  %v321 = vmax.f32 %v81, 1e-20
  %v322 = vmax.f32 %v82, 1e-20
  %v323 = vmax.f32 %v83, 1e-20
  %v324 = vmax.f32 %v84, 1e-20
  %v325 = vmax.f32 %v85, 1e-20
  %v326 = vmax.f32 %v86, 1e-20
  %v327 = vlog2.pop %v311
  %v328 = vmul.f32 %v327, 0.6931472
  %v329 = vlog2.pop %v312
  %v330 = vmul.f32 %v329, 0.6931472
  %v331 = vlog2.pop %v313
  %v332 = vmul.f32 %v331, 0.6931472
  %v333 = vlog2.pop %v314
  %v334 = vmul.f32 %v333, 0.6931472
  %v335 = vlog2.pop %v315
  %v336 = vmul.f32 %v335, 0.6931472
  %v337 = vlog2.pop %v316
  %v338 = vmul.f32 %v337, 0.6931472
  %v339 = vlog2.pop %v317
  %v340 = vmul.f32 %v339, 0.6931472
  %v341 = vlog2.pop %v318
  %v342 = vmul.f32 %v341, 0.6931472
  %v343 = vlog2.pop %v319
  %v344 = vmul.f32 %v343, 0.6931472
  %v345 = vlog2.pop %v320
  %v346 = vmul.f32 %v345, 0.6931472
  %v347 = vlog2.pop %v321
  %v348 = vmul.f32 %v347, 0.6931472
  %v349 = vlog2.pop %v322
  %v350 = vmul.f32 %v349, 0.6931472
  %v351 = vlog2.pop %v323
  %v352 = vmul.f32 %v351, 0.6931472
  %v353 = vlog2.pop %v324
  %v354 = vmul.f32 %v353, 0.6931472
  %v355 = vlog2.pop %v325
  %v356 = vmul.f32 %v355, 0.6931472
  %v357 = vlog2.pop %v326
  %v358 = vmul.f32 %v357, 0.6931472
  %v359 = vmul.f32 %v328, 0.25
  %v360 = vmul.f32 %v330, 0.25
  %v361 = vmul.f32 %v332, 0.25
  %v362 = vmul.f32 %v334, 0.25
  %v363 = vmul.f32 %v336, 0.25
  %v364 = vmul.f32 %v338, 0.25
  %v365 = vmul.f32 %v340, 0.25
  %v366 = vmul.f32 %v342, 0.25
  %v367 = vmul.f32 %v344, 0.25
  %v368 = vmul.f32 %v346, 0.25
  %v369 = vmul.f32 %v348, 0.25
  %v370 = vmul.f32 %v350, 0.25
  %v371 = vmul.f32 %v352, 0.25
  %v372 = vmul.f32 %v354, 0.25
  %v373 = vmul.f32 %v356, 0.25
  %v374 = vmul.f32 %v358, 0.25
  %v375 = vld [vmem:[%s3] sm:$0x1]
  %377 = vset.pattern.permute.xlu0 0
  %378 = vperm.xlu0 %377, %v359
  %v379 = vpop.permute.xlu0 %378
  %382 = vset.pattern.permute.xlu0 0
  %383 = vperm.xlu0 %382, %v360
  %v384 = vpop.permute.xlu0 %383
  %387 = vset.pattern.permute.xlu0 0
  %388 = vperm.xlu0 %387, %v361
  %v389 = vpop.permute.xlu0 %388
  %392 = vset.pattern.permute.xlu0 0
  %393 = vperm.xlu0 %392, %v362
  %v394 = vpop.permute.xlu0 %393
  %397 = vset.pattern.permute.xlu0 0
  %398 = vperm.xlu0 %397, %v363
  %v399 = vpop.permute.xlu0 %398
  %402 = vset.pattern.permute.xlu0 0
  %403 = vperm.xlu0 %402, %v364
  %v404 = vpop.permute.xlu0 %403
  %407 = vset.pattern.permute.xlu0 0
  %408 = vperm.xlu0 %407, %v365
  %v409 = vpop.permute.xlu0 %408
  %412 = vset.pattern.permute.xlu0 0
  %413 = vperm.xlu0 %412, %v366
  %v414 = vpop.permute.xlu0 %413
  %417 = vset.pattern.permute.xlu0 0
  %418 = vperm.xlu0 %417, %v367
  %v419 = vpop.permute.xlu0 %418
  %422 = vset.pattern.permute.xlu0 0
  %423 = vperm.xlu0 %422, %v368
  %v424 = vpop.permute.xlu0 %423
  %427 = vset.pattern.permute.xlu0 0
  %428 = vperm.xlu0 %427, %v369
  %v429 = vpop.permute.xlu0 %428
  %432 = vset.pattern.permute.xlu0 0
  %433 = vperm.xlu0 %432, %v370
  %v434 = vpop.permute.xlu0 %433
  %437 = vset.pattern.permute.xlu0 0
  %438 = vperm.xlu0 %437, %v371
  %v439 = vpop.permute.xlu0 %438
  %442 = vset.pattern.permute.xlu0 0
  %443 = vperm.xlu0 %442, %v372
  %v444 = vpop.permute.xlu0 %443
  %447 = vset.pattern.permute.xlu0 0
  %448 = vperm.xlu0 %447, %v373
  %v449 = vpop.permute.xlu0 %448
  %452 = vset.pattern.permute.xlu0 0
  %453 = vperm.xlu0 %452, %v374
  %v454 = vpop.permute.xlu0 %453
  %v457 = vlaneseq
  %v458 = vshrl.u32 %v457, 7
  %v459 = vsub.s32 0, %v458
  %v460 = vrot.slane %v375, %v459
  %v462 = vmul.f32 %v379, %v460
  %v463 = vmul.f32 %v384, %v460
  %v464 = vmul.f32 %v389, %v460
  %v465 = vmul.f32 %v394, %v460
  %v466 = vmul.f32 %v399, %v460
  %v467 = vmul.f32 %v404, %v460
  %v468 = vmul.f32 %v409, %v460
  %v469 = vmul.f32 %v414, %v460
  %v470 = vmul.f32 %v419, %v460
  %v471 = vmul.f32 %v424, %v460
  %v472 = vmul.f32 %v429, %v460
  %v473 = vmul.f32 %v434, %v460
  %v474 = vmul.f32 %v439, %v460
  %v475 = vmul.f32 %v444, %v460
  %v476 = vmul.f32 %v449, %v460
  %v477 = vmul.f32 %v454, %v460
  %v478 = vld [vmem:[%s4] sm:$0x1]
  %v480 = vlaneseq
  %v481 = vshrl.u32 %v480, 7
  %v482 = vsub.s32 0, %v481
  %v483 = vrot.slane %v478, %v482
  %v485 = vadd.f32 %v462, %v483
  %v486 = vadd.f32 %v463, %v483
  %v487 = vadd.f32 %v464, %v483
  %v488 = vadd.f32 %v465, %v483
  %v489 = vadd.f32 %v466, %v483
  %v490 = vadd.f32 %v467, %v483
  %v491 = vadd.f32 %v468, %v483
  %v492 = vadd.f32 %v469, %v483
  %v493 = vadd.f32 %v470, %v483
  %v494 = vadd.f32 %v471, %v483
  %v495 = vadd.f32 %v472, %v483
  %v496 = vadd.f32 %v473, %v483
  %v497 = vadd.f32 %v474, %v483
  %v498 = vadd.f32 %v475, %v483
  %v499 = vadd.f32 %v476, %v483
  %v500 = vadd.f32 %v477, %v483
  %v501 = vand.u32 2147483647, %v485
  %vm502 = vcmp.le.f32.partialorder %v501, 0.7853982
  %vm503 = vcmp.lt.s32.totalorder %v485, 0
  %v504 = vand.u32 %v485, 2139095040
  %v505 = vshrl.u32 %v504, 23
  %v506 = vsub.s32 %v505, 127
  %v507 = vand.u32 2147483647, %v485
  %v508 = vand.u32 %v507, 8388607
  %v509 = vor.u32 %v508, 8388608
  %v510 = vsub.s32 0, %v509
  %v511 = vadd.s32 %v506, 1
  %vm512 = vcmp.gt.s32.totalorder %v511, 0
  %v513 = vsel %vm512, %v511, 0
  %v514 = vshrl.u32 %v513, 5
  %v515 = vand.u32 %v513, 31
  %v516 = vsub.s32 32, %v515
  %v517 = vshrl.u32 683565275, %v516
  %v518 = vshll.u32 683565275, %v515
  %v519 = vshrl.u32 2475754826, %v516
  %v520 = vor.u32 %v518, %v519
  %v521 = vshll.u32 2475754826, %v515
  %v522 = vshrl.u32 2131351028, %v516
  %v523 = vor.u32 %v521, %v522
  %v524 = vshll.u32 2131351028, %v515
  %v525 = vshrl.u32 2102212464, %v516
  %v526 = vor.u32 %v524, %v525
  %v527 = vshll.u32 2102212464, %v515
  %v528 = vshrl.u32 920167782, %v516
  %v529 = vor.u32 %v527, %v528
  %v530 = vshll.u32 920167782, %v515
  %v531 = vshrl.u32 1326507024, %v516
  %v532 = vor.u32 %v530, %v531
  %vm533 = vcmp.lt.s32.totalorder %v514, 1
  %vm534 = vcmp.lt.s32.totalorder %v514, 2
  %vm535 = vcmp.lt.s32.totalorder %v514, 3
  %vm536 = vcmp.lt.s32.totalorder %v514, 4
  %v537 = vsel %vm533, %v517, %v520
  %v538 = vsel %vm536, %v526, 2102212464
  %v539 = vsel %vm535, %v523, %v538
  %v540 = vsel %vm534, %v537, %v539
  %v541 = vsel %vm533, %v520, %v523
  %v542 = vsel %vm536, %v529, 920167782
  %v543 = vsel %vm535, %v526, %v542
  %v544 = vsel %vm534, %v541, %v543
  %v545 = vsel %vm533, %v523, %v526
  %v546 = vsel %vm536, %v532, 1326507024
  %v547 = vsel %vm535, %v529, %v546
  %v548 = vsel %vm534, %v545, %v547
  %v549 = vshll.u32 %v509, 8
  %v550 = vmul.u32.u64.compose %v549, %v548
  %v551 = vextract.low.u32 %v550
  %v552 = vextract.high.u32 %v550
  %v553 = vmul.u32.u64.compose %v549, %v544
  %v554 = vextract.low.u32 %v553
  %v555 = vextract.high.u32 %v553
  %v556 = vmul.u32 %v549, %v540
  %v557 = vadd.s32 %v552, %v554
  %vm558 = vc.u32 %v552, %v554
  %v559 = vadd.s32 %v555, 1
  %v560 = vsel %vm558, %v559, %v555
  %v561 = vadd.s32 %v556, %v560
  %v562 = vadd.s32 %v561, 536870912
  %v563 = vshrl.u32 %v562, 30
  %v564 = vshll.u32 %v563, 30
  %v565 = vsub.s32 %v561, %v564
  %vm566 = vcmp.lt.s32.totalorder %v565, 0
  %v567 = vsub.s32 0, %v565
  %v568 = vsel %vm566, %v567, %v565
  %v569 = vclz %v568
  %v570 = vsub.s32 %v569, 2
  %vm571 = vcmp.gt.s32.totalorder 0, %v570
  %v572 = vsel %vm571, 0, %v570
  %v573 = vsub.s32 32, %v572
  %v574 = vshll.u32 %v565, %v572
  %v575 = vshrl.u32 %v557, %v573
  %v576 = vor.u32 %v574, %v575
  %v577 = vsub.s32 4294967266, %v572
  %v578 = vadd.s32 %v577, 127
  %v579 = vshll.u32 %v578, 23
  %v580 = vor.u32 4788187, %v579
  %v581 = vand.u32 2147483647, %v580
  %v583 = vcvt.s32.f32 %v576
  %v584 = vmul.f32 %v583, %v581
  %v585 = vxor.u32 %v584, 2147483648
  %v586 = vsel %vm503, %v585, %v584
  %v587 = vsub.s32 4, %v563
  %v588 = vsel %vm503, %v587, %v563
  %v589 = vsel %vm502, %v485, %v586
  %v590 = vsel %vm502, 0, %v588
  %v591 = vcosq.f32.pop %v589
  %v592 = vsinq.f32.pop %v589
  %vm593 = vweird.f32 %v485
  %v594 = vadd.s32 %v590, 3
  %v595 = vand.u32 %v594, 3
  %vm596 = vcmp.lt.s32.totalorder %v595, 2
  %vm597 = vcmp.eq.s32.totalorder %v595, 0
  %v598 = vxor.u32 %v592, 2147483648
  %v599 = vsel %vm597, %v591, %v598
  %vm600 = vcmp.eq.s32.totalorder %v595, 2
  %v601 = vxor.u32 %v591, 2147483648
  %v602 = vsel %vm600, %v601, %v592
  %v603 = vsel %vm596, %v599, %v602
  %v604 = vsel %vm593, nan, %v603
  %v605 = vand.u32 2147483647, %v486
  %vm606 = vcmp.le.f32.partialorder %v605, 0.7853982
  %vm607 = vcmp.lt.s32.totalorder %v486, 0
  %v608 = vand.u32 %v486, 2139095040
  %v609 = vshrl.u32 %v608, 23
  %v610 = vsub.s32 %v609, 127
  %v611 = vand.u32 2147483647, %v486
  %v612 = vand.u32 %v611, 8388607
  %v613 = vor.u32 %v612, 8388608
  %v614 = vsub.s32 0, %v613
  %v615 = vadd.s32 %v610, 1
  %vm616 = vcmp.gt.s32.totalorder %v615, 0
  %v617 = vsel %vm616, %v615, 0
  %v618 = vshrl.u32 %v617, 5
  %v619 = vand.u32 %v617, 31
  %v620 = vsub.s32 32, %v619
  %v621 = vshrl.u32 683565275, %v620
  %v622 = vshll.u32 683565275, %v619
  %v623 = vshrl.u32 2475754826, %v620
  %v624 = vor.u32 %v622, %v623
  %v625 = vshll.u32 2475754826, %v619
  %v626 = vshrl.u32 2131351028, %v620
  %v627 = vor.u32 %v625, %v626
  %v628 = vshll.u32 2131351028, %v619
  %v629 = vshrl.u32 2102212464, %v620
  %v630 = vor.u32 %v628, %v629
  %v631 = vshll.u32 2102212464, %v619
  %v632 = vshrl.u32 920167782, %v620
  %v633 = vor.u32 %v631, %v632
  %v634 = vshll.u32 920167782, %v619
  %v635 = vshrl.u32 1326507024, %v620
  %v636 = vor.u32 %v634, %v635
  %vm637 = vcmp.lt.s32.totalorder %v618, 1
  %vm638 = vcmp.lt.s32.totalorder %v618, 2
  %vm639 = vcmp.lt.s32.totalorder %v618, 3
  %vm640 = vcmp.lt.s32.totalorder %v618, 4
  %v641 = vsel %vm637, %v621, %v624
  %v642 = vsel %vm640, %v630, 2102212464
  %v643 = vsel %vm639, %v627, %v642
  %v644 = vsel %vm638, %v641, %v643
  %v645 = vsel %vm637, %v624, %v627
  %v646 = vsel %vm640, %v633, 920167782
  %v647 = vsel %vm639, %v630, %v646
  %v648 = vsel %vm638, %v645, %v647
  %v649 = vsel %vm637, %v627, %v630
  %v650 = vsel %vm640, %v636, 1326507024
  %v651 = vsel %vm639, %v633, %v650
  %v652 = vsel %vm638, %v649, %v651
  %v653 = vshll.u32 %v613, 8
  %v654 = vmul.u32.u64.compose %v653, %v652
  %v655 = vextract.low.u32 %v654
  %v656 = vextract.high.u32 %v654
  %v657 = vmul.u32.u64.compose %v653, %v648
  %v658 = vextract.low.u32 %v657
  %v659 = vextract.high.u32 %v657
  %v660 = vmul.u32 %v653, %v644
  %v661 = vadd.s32 %v656, %v658
  %vm662 = vc.u32 %v656, %v658
  %v663 = vadd.s32 %v659, 1
  %v664 = vsel %vm662, %v663, %v659
  %v665 = vadd.s32 %v660, %v664
  %v666 = vadd.s32 %v665, 536870912
  %v667 = vshrl.u32 %v666, 30
  %v668 = vshll.u32 %v667, 30
  %v669 = vsub.s32 %v665, %v668
  %vm670 = vcmp.lt.s32.totalorder %v669, 0
  %v671 = vsub.s32 0, %v669
  %v672 = vsel %vm670, %v671, %v669
  %v673 = vclz %v672
  %v674 = vsub.s32 %v673, 2
  %vm675 = vcmp.gt.s32.totalorder 0, %v674
  %v676 = vsel %vm675, 0, %v674
  %v677 = vsub.s32 32, %v676
  %v678 = vshll.u32 %v669, %v676
  %v679 = vshrl.u32 %v661, %v677
  %v680 = vor.u32 %v678, %v679
  %v681 = vsub.s32 4294967266, %v676
  %v682 = vadd.s32 %v681, 127
  %v683 = vshll.u32 %v682, 23
  %v684 = vor.u32 4788187, %v683
  %v685 = vand.u32 2147483647, %v684
  %v687 = vcvt.s32.f32 %v680
  %v688 = vmul.f32 %v687, %v685
  %v689 = vxor.u32 %v688, 2147483648
  %v690 = vsel %vm607, %v689, %v688
  %v691 = vsub.s32 4, %v667
  %v692 = vsel %vm607, %v691, %v667
  %v693 = vsel %vm606, %v486, %v690
  %v694 = vsel %vm606, 0, %v692
  %v695 = vcosq.f32.pop %v693
  %v696 = vsinq.f32.pop %v693
  %vm697 = vweird.f32 %v486
  %v698 = vadd.s32 %v694, 3
  %v699 = vand.u32 %v698, 3
  %vm700 = vcmp.lt.s32.totalorder %v699, 2
  %vm701 = vcmp.eq.s32.totalorder %v699, 0
  %v702 = vxor.u32 %v696, 2147483648
  %v703 = vsel %vm701, %v695, %v702
  %vm704 = vcmp.eq.s32.totalorder %v699, 2
  %v705 = vxor.u32 %v695, 2147483648
  %v706 = vsel %vm704, %v705, %v696
  %v707 = vsel %vm700, %v703, %v706
  %v708 = vsel %vm697, nan, %v707
  %v709 = vand.u32 2147483647, %v487
  %vm710 = vcmp.le.f32.partialorder %v709, 0.7853982
  %vm711 = vcmp.lt.s32.totalorder %v487, 0
  %v712 = vand.u32 %v487, 2139095040
  %v713 = vshrl.u32 %v712, 23
  %v714 = vsub.s32 %v713, 127
  %v715 = vand.u32 2147483647, %v487
  %v716 = vand.u32 %v715, 8388607
  %v717 = vor.u32 %v716, 8388608
  %v718 = vsub.s32 0, %v717
  %v719 = vadd.s32 %v714, 1
  %vm720 = vcmp.gt.s32.totalorder %v719, 0
  %v721 = vsel %vm720, %v719, 0
  %v722 = vshrl.u32 %v721, 5
  %v723 = vand.u32 %v721, 31
  %v724 = vsub.s32 32, %v723
  %v725 = vshrl.u32 683565275, %v724
  %v726 = vshll.u32 683565275, %v723
  %v727 = vshrl.u32 2475754826, %v724
  %v728 = vor.u32 %v726, %v727
  %v729 = vshll.u32 2475754826, %v723
  %v730 = vshrl.u32 2131351028, %v724
  %v731 = vor.u32 %v729, %v730
  %v732 = vshll.u32 2131351028, %v723
  %v733 = vshrl.u32 2102212464, %v724
  %v734 = vor.u32 %v732, %v733
  %v735 = vshll.u32 2102212464, %v723
  %v736 = vshrl.u32 920167782, %v724
  %v737 = vor.u32 %v735, %v736
  %v738 = vshll.u32 920167782, %v723
  %v739 = vshrl.u32 1326507024, %v724
  %v740 = vor.u32 %v738, %v739
  %vm741 = vcmp.lt.s32.totalorder %v722, 1
  %vm742 = vcmp.lt.s32.totalorder %v722, 2
  %vm743 = vcmp.lt.s32.totalorder %v722, 3
  %vm744 = vcmp.lt.s32.totalorder %v722, 4
  %v745 = vsel %vm741, %v725, %v728
  %v746 = vsel %vm744, %v734, 2102212464
  %v747 = vsel %vm743, %v731, %v746
  %v748 = vsel %vm742, %v745, %v747
  %v749 = vsel %vm741, %v728, %v731
  %v750 = vsel %vm744, %v737, 920167782
  %v751 = vsel %vm743, %v734, %v750
  %v752 = vsel %vm742, %v749, %v751
  %v753 = vsel %vm741, %v731, %v734
  %v754 = vsel %vm744, %v740, 1326507024
  %v755 = vsel %vm743, %v737, %v754
  %v756 = vsel %vm742, %v753, %v755
  %v757 = vshll.u32 %v717, 8
  %v758 = vmul.u32.u64.compose %v757, %v756
  %v759 = vextract.low.u32 %v758
  %v760 = vextract.high.u32 %v758
  %v761 = vmul.u32.u64.compose %v757, %v752
  %v762 = vextract.low.u32 %v761
  %v763 = vextract.high.u32 %v761
  %v764 = vmul.u32 %v757, %v748
  %v765 = vadd.s32 %v760, %v762
  %vm766 = vc.u32 %v760, %v762
  %v767 = vadd.s32 %v763, 1
  %v768 = vsel %vm766, %v767, %v763
  %v769 = vadd.s32 %v764, %v768
  %v770 = vadd.s32 %v769, 536870912
  %v771 = vshrl.u32 %v770, 30
  %v772 = vshll.u32 %v771, 30
  %v773 = vsub.s32 %v769, %v772
  %vm774 = vcmp.lt.s32.totalorder %v773, 0
  %v775 = vsub.s32 0, %v773
  %v776 = vsel %vm774, %v775, %v773
  %v777 = vclz %v776
  %v778 = vsub.s32 %v777, 2
  %vm779 = vcmp.gt.s32.totalorder 0, %v778
  %v780 = vsel %vm779, 0, %v778
  %v781 = vsub.s32 32, %v780
  %v782 = vshll.u32 %v773, %v780
  %v783 = vshrl.u32 %v765, %v781
  %v784 = vor.u32 %v782, %v783
  %v785 = vsub.s32 4294967266, %v780
  %v786 = vadd.s32 %v785, 127
  %v787 = vshll.u32 %v786, 23
  %v788 = vor.u32 4788187, %v787
  %v789 = vand.u32 2147483647, %v788
  %v791 = vcvt.s32.f32 %v784
  %v792 = vmul.f32 %v791, %v789
  %v793 = vxor.u32 %v792, 2147483648
  %v794 = vsel %vm711, %v793, %v792
  %v795 = vsub.s32 4, %v771
  %v796 = vsel %vm711, %v795, %v771
  %v797 = vsel %vm710, %v487, %v794
  %v798 = vsel %vm710, 0, %v796
  %v799 = vcosq.f32.pop %v797
  %v800 = vsinq.f32.pop %v797
  %vm801 = vweird.f32 %v487
  %v802 = vadd.s32 %v798, 3
  %v803 = vand.u32 %v802, 3
  %vm804 = vcmp.lt.s32.totalorder %v803, 2
  %vm805 = vcmp.eq.s32.totalorder %v803, 0
  %v806 = vxor.u32 %v800, 2147483648
  %v807 = vsel %vm805, %v799, %v806
  %vm808 = vcmp.eq.s32.totalorder %v803, 2
  %v809 = vxor.u32 %v799, 2147483648
  %v810 = vsel %vm808, %v809, %v800
  %v811 = vsel %vm804, %v807, %v810
  %v812 = vsel %vm801, nan, %v811
  %v813 = vand.u32 2147483647, %v488
  %vm814 = vcmp.le.f32.partialorder %v813, 0.7853982
  %vm815 = vcmp.lt.s32.totalorder %v488, 0
  %v816 = vand.u32 %v488, 2139095040
  %v817 = vshrl.u32 %v816, 23
  %v818 = vsub.s32 %v817, 127
  %v819 = vand.u32 2147483647, %v488
  %v820 = vand.u32 %v819, 8388607
  %v821 = vor.u32 %v820, 8388608
  %v822 = vsub.s32 0, %v821
  %v823 = vadd.s32 %v818, 1
  %vm824 = vcmp.gt.s32.totalorder %v823, 0
  %v825 = vsel %vm824, %v823, 0
  %v826 = vshrl.u32 %v825, 5
  %v827 = vand.u32 %v825, 31
  %v828 = vsub.s32 32, %v827
  %v829 = vshrl.u32 683565275, %v828
  %v830 = vshll.u32 683565275, %v827
  %v831 = vshrl.u32 2475754826, %v828
  %v832 = vor.u32 %v830, %v831
  %v833 = vshll.u32 2475754826, %v827
  %v834 = vshrl.u32 2131351028, %v828
  %v835 = vor.u32 %v833, %v834
  %v836 = vshll.u32 2131351028, %v827
  %v837 = vshrl.u32 2102212464, %v828
  %v838 = vor.u32 %v836, %v837
  %v839 = vshll.u32 2102212464, %v827
  %v840 = vshrl.u32 920167782, %v828
  %v841 = vor.u32 %v839, %v840
  %v842 = vshll.u32 920167782, %v827
  %v843 = vshrl.u32 1326507024, %v828
  %v844 = vor.u32 %v842, %v843
  %vm845 = vcmp.lt.s32.totalorder %v826, 1
  %vm846 = vcmp.lt.s32.totalorder %v826, 2
  %vm847 = vcmp.lt.s32.totalorder %v826, 3
  %vm848 = vcmp.lt.s32.totalorder %v826, 4
  %v849 = vsel %vm845, %v829, %v832
  %v850 = vsel %vm848, %v838, 2102212464
  %v851 = vsel %vm847, %v835, %v850
  %v852 = vsel %vm846, %v849, %v851
  %v853 = vsel %vm845, %v832, %v835
  %v854 = vsel %vm848, %v841, 920167782
  %v855 = vsel %vm847, %v838, %v854
  %v856 = vsel %vm846, %v853, %v855
  %v857 = vsel %vm845, %v835, %v838
  %v858 = vsel %vm848, %v844, 1326507024
  %v859 = vsel %vm847, %v841, %v858
  %v860 = vsel %vm846, %v857, %v859
  %v861 = vshll.u32 %v821, 8
  %v862 = vmul.u32.u64.compose %v861, %v860
  %v863 = vextract.low.u32 %v862
  %v864 = vextract.high.u32 %v862
  %v865 = vmul.u32.u64.compose %v861, %v856
  %v866 = vextract.low.u32 %v865
  %v867 = vextract.high.u32 %v865
  %v868 = vmul.u32 %v861, %v852
  %v869 = vadd.s32 %v864, %v866
  %vm870 = vc.u32 %v864, %v866
  %v871 = vadd.s32 %v867, 1
  %v872 = vsel %vm870, %v871, %v867
  %v873 = vadd.s32 %v868, %v872
  %v874 = vadd.s32 %v873, 536870912
  %v875 = vshrl.u32 %v874, 30
  %v876 = vshll.u32 %v875, 30
  %v877 = vsub.s32 %v873, %v876
  %vm878 = vcmp.lt.s32.totalorder %v877, 0
  %v879 = vsub.s32 0, %v877
  %v880 = vsel %vm878, %v879, %v877
  %v881 = vclz %v880
  %v882 = vsub.s32 %v881, 2
  %vm883 = vcmp.gt.s32.totalorder 0, %v882
  %v884 = vsel %vm883, 0, %v882
  %v885 = vsub.s32 32, %v884
  %v886 = vshll.u32 %v877, %v884
  %v887 = vshrl.u32 %v869, %v885
  %v888 = vor.u32 %v886, %v887
  %v889 = vsub.s32 4294967266, %v884
  %v890 = vadd.s32 %v889, 127
  %v891 = vshll.u32 %v890, 23
  %v892 = vor.u32 4788187, %v891
  %v893 = vand.u32 2147483647, %v892
  %v895 = vcvt.s32.f32 %v888
  %v896 = vmul.f32 %v895, %v893
  %v897 = vxor.u32 %v896, 2147483648
  %v898 = vsel %vm815, %v897, %v896
  %v899 = vsub.s32 4, %v875
  %v900 = vsel %vm815, %v899, %v875
  %v901 = vsel %vm814, %v488, %v898
  %v902 = vsel %vm814, 0, %v900
  %v903 = vcosq.f32.pop %v901
  %v904 = vsinq.f32.pop %v901
  %vm905 = vweird.f32 %v488
  %v906 = vadd.s32 %v902, 3
  %v907 = vand.u32 %v906, 3
  %vm908 = vcmp.lt.s32.totalorder %v907, 2
  %vm909 = vcmp.eq.s32.totalorder %v907, 0
  %v910 = vxor.u32 %v904, 2147483648
  %v911 = vsel %vm909, %v903, %v910
  %vm912 = vcmp.eq.s32.totalorder %v907, 2
  %v913 = vxor.u32 %v903, 2147483648
  %v914 = vsel %vm912, %v913, %v904
  %v915 = vsel %vm908, %v911, %v914
  %v916 = vsel %vm905, nan, %v915
  %v917 = vand.u32 2147483647, %v489
  %vm918 = vcmp.le.f32.partialorder %v917, 0.7853982
  %vm919 = vcmp.lt.s32.totalorder %v489, 0
  %v920 = vand.u32 %v489, 2139095040
  %v921 = vshrl.u32 %v920, 23
  %v922 = vsub.s32 %v921, 127
  %v923 = vand.u32 2147483647, %v489
  %v924 = vand.u32 %v923, 8388607
  %v925 = vor.u32 %v924, 8388608
  %v926 = vsub.s32 0, %v925
  %v927 = vadd.s32 %v922, 1
  %vm928 = vcmp.gt.s32.totalorder %v927, 0
  %v929 = vsel %vm928, %v927, 0
  %v930 = vshrl.u32 %v929, 5
  %v931 = vand.u32 %v929, 31
  %v932 = vsub.s32 32, %v931
  %v933 = vshrl.u32 683565275, %v932
  %v934 = vshll.u32 683565275, %v931
  %v935 = vshrl.u32 2475754826, %v932
  %v936 = vor.u32 %v934, %v935
  %v937 = vshll.u32 2475754826, %v931
  %v938 = vshrl.u32 2131351028, %v932
  %v939 = vor.u32 %v937, %v938
  %v940 = vshll.u32 2131351028, %v931
  %v941 = vshrl.u32 2102212464, %v932
  %v942 = vor.u32 %v940, %v941
  %v943 = vshll.u32 2102212464, %v931
  %v944 = vshrl.u32 920167782, %v932
  %v945 = vor.u32 %v943, %v944
  %v946 = vshll.u32 920167782, %v931
  %v947 = vshrl.u32 1326507024, %v932
  %v948 = vor.u32 %v946, %v947
  %vm949 = vcmp.lt.s32.totalorder %v930, 1
  %vm950 = vcmp.lt.s32.totalorder %v930, 2
  %vm951 = vcmp.lt.s32.totalorder %v930, 3
  %vm952 = vcmp.lt.s32.totalorder %v930, 4
  %v953 = vsel %vm949, %v933, %v936
  %v954 = vsel %vm952, %v942, 2102212464
  %v955 = vsel %vm951, %v939, %v954
  %v956 = vsel %vm950, %v953, %v955
  %v957 = vsel %vm949, %v936, %v939
  %v958 = vsel %vm952, %v945, 920167782
  %v959 = vsel %vm951, %v942, %v958
  %v960 = vsel %vm950, %v957, %v959
  %v961 = vsel %vm949, %v939, %v942
  %v962 = vsel %vm952, %v948, 1326507024
  %v963 = vsel %vm951, %v945, %v962
  %v964 = vsel %vm950, %v961, %v963
  %v965 = vshll.u32 %v925, 8
  %v966 = vmul.u32.u64.compose %v965, %v964
  %v967 = vextract.low.u32 %v966
  %v968 = vextract.high.u32 %v966
  %v969 = vmul.u32.u64.compose %v965, %v960
  %v970 = vextract.low.u32 %v969
  %v971 = vextract.high.u32 %v969
  %v972 = vmul.u32 %v965, %v956
  %v973 = vadd.s32 %v968, %v970
  %vm974 = vc.u32 %v968, %v970
  %v975 = vadd.s32 %v971, 1
  %v976 = vsel %vm974, %v975, %v971
  %v977 = vadd.s32 %v972, %v976
  %v978 = vadd.s32 %v977, 536870912
  %v979 = vshrl.u32 %v978, 30
  %v980 = vshll.u32 %v979, 30
  %v981 = vsub.s32 %v977, %v980
  %vm982 = vcmp.lt.s32.totalorder %v981, 0
  %v983 = vsub.s32 0, %v981
  %v984 = vsel %vm982, %v983, %v981
  %v985 = vclz %v984
  %v986 = vsub.s32 %v985, 2
  %vm987 = vcmp.gt.s32.totalorder 0, %v986
  %v988 = vsel %vm987, 0, %v986
  %v989 = vsub.s32 32, %v988
  %v990 = vshll.u32 %v981, %v988
  %v991 = vshrl.u32 %v973, %v989
  %v992 = vor.u32 %v990, %v991
  %v993 = vsub.s32 4294967266, %v988
  %v994 = vadd.s32 %v993, 127
  %v995 = vshll.u32 %v994, 23
  %v996 = vor.u32 4788187, %v995
  %v997 = vand.u32 2147483647, %v996
  %v999 = vcvt.s32.f32 %v992
  %v1000 = vmul.f32 %v999, %v997
  %v1001 = vxor.u32 %v1000, 2147483648
  %v1002 = vsel %vm919, %v1001, %v1000
  %v1003 = vsub.s32 4, %v979
  %v1004 = vsel %vm919, %v1003, %v979
  %v1005 = vsel %vm918, %v489, %v1002
  %v1006 = vsel %vm918, 0, %v1004
  %v1007 = vcosq.f32.pop %v1005
  %v1008 = vsinq.f32.pop %v1005
  %vm1009 = vweird.f32 %v489
  %v1010 = vadd.s32 %v1006, 3
  %v1011 = vand.u32 %v1010, 3
  %vm1012 = vcmp.lt.s32.totalorder %v1011, 2
  %vm1013 = vcmp.eq.s32.totalorder %v1011, 0
  %v1014 = vxor.u32 %v1008, 2147483648
  %v1015 = vsel %vm1013, %v1007, %v1014
  %vm1016 = vcmp.eq.s32.totalorder %v1011, 2
  %v1017 = vxor.u32 %v1007, 2147483648
  %v1018 = vsel %vm1016, %v1017, %v1008
  %v1019 = vsel %vm1012, %v1015, %v1018
  %v1020 = vsel %vm1009, nan, %v1019
  %v1021 = vand.u32 2147483647, %v490
  %vm1022 = vcmp.le.f32.partialorder %v1021, 0.7853982
  %vm1023 = vcmp.lt.s32.totalorder %v490, 0
  %v1024 = vand.u32 %v490, 2139095040
  %v1025 = vshrl.u32 %v1024, 23
  %v1026 = vsub.s32 %v1025, 127
  %v1027 = vand.u32 2147483647, %v490
  %v1028 = vand.u32 %v1027, 8388607
  %v1029 = vor.u32 %v1028, 8388608
  %v1030 = vsub.s32 0, %v1029
  %v1031 = vadd.s32 %v1026, 1
  %vm1032 = vcmp.gt.s32.totalorder %v1031, 0
  %v1033 = vsel %vm1032, %v1031, 0
  %v1034 = vshrl.u32 %v1033, 5
  %v1035 = vand.u32 %v1033, 31
  %v1036 = vsub.s32 32, %v1035
  %v1037 = vshrl.u32 683565275, %v1036
  %v1038 = vshll.u32 683565275, %v1035
  %v1039 = vshrl.u32 2475754826, %v1036
  %v1040 = vor.u32 %v1038, %v1039
  %v1041 = vshll.u32 2475754826, %v1035
  %v1042 = vshrl.u32 2131351028, %v1036
  %v1043 = vor.u32 %v1041, %v1042
  %v1044 = vshll.u32 2131351028, %v1035
  %v1045 = vshrl.u32 2102212464, %v1036
  %v1046 = vor.u32 %v1044, %v1045
  %v1047 = vshll.u32 2102212464, %v1035
  %v1048 = vshrl.u32 920167782, %v1036
  %v1049 = vor.u32 %v1047, %v1048
  %v1050 = vshll.u32 920167782, %v1035
  %v1051 = vshrl.u32 1326507024, %v1036
  %v1052 = vor.u32 %v1050, %v1051
  %vm1053 = vcmp.lt.s32.totalorder %v1034, 1
  %vm1054 = vcmp.lt.s32.totalorder %v1034, 2
  %vm1055 = vcmp.lt.s32.totalorder %v1034, 3
  %vm1056 = vcmp.lt.s32.totalorder %v1034, 4
  %v1057 = vsel %vm1053, %v1037, %v1040
  %v1058 = vsel %vm1056, %v1046, 2102212464
  %v1059 = vsel %vm1055, %v1043, %v1058
  %v1060 = vsel %vm1054, %v1057, %v1059
  %v1061 = vsel %vm1053, %v1040, %v1043
  %v1062 = vsel %vm1056, %v1049, 920167782
  %v1063 = vsel %vm1055, %v1046, %v1062
  %v1064 = vsel %vm1054, %v1061, %v1063
  %v1065 = vsel %vm1053, %v1043, %v1046
  %v1066 = vsel %vm1056, %v1052, 1326507024
  %v1067 = vsel %vm1055, %v1049, %v1066
  %v1068 = vsel %vm1054, %v1065, %v1067
  %v1069 = vshll.u32 %v1029, 8
  %v1070 = vmul.u32.u64.compose %v1069, %v1068
  %v1071 = vextract.low.u32 %v1070
  %v1072 = vextract.high.u32 %v1070
  %v1073 = vmul.u32.u64.compose %v1069, %v1064
  %v1074 = vextract.low.u32 %v1073
  %v1075 = vextract.high.u32 %v1073
  %v1076 = vmul.u32 %v1069, %v1060
  %v1077 = vadd.s32 %v1072, %v1074
  %vm1078 = vc.u32 %v1072, %v1074
  %v1079 = vadd.s32 %v1075, 1
  %v1080 = vsel %vm1078, %v1079, %v1075
  %v1081 = vadd.s32 %v1076, %v1080
  %v1082 = vadd.s32 %v1081, 536870912
  %v1083 = vshrl.u32 %v1082, 30
  %v1084 = vshll.u32 %v1083, 30
  %v1085 = vsub.s32 %v1081, %v1084
  %vm1086 = vcmp.lt.s32.totalorder %v1085, 0
  %v1087 = vsub.s32 0, %v1085
  %v1088 = vsel %vm1086, %v1087, %v1085
  %v1089 = vclz %v1088
  %v1090 = vsub.s32 %v1089, 2
  %vm1091 = vcmp.gt.s32.totalorder 0, %v1090
  %v1092 = vsel %vm1091, 0, %v1090
  %v1093 = vsub.s32 32, %v1092
  %v1094 = vshll.u32 %v1085, %v1092
  %v1095 = vshrl.u32 %v1077, %v1093
  %v1096 = vor.u32 %v1094, %v1095
  %v1097 = vsub.s32 4294967266, %v1092
  %v1098 = vadd.s32 %v1097, 127
  %v1099 = vshll.u32 %v1098, 23
  %v1100 = vor.u32 4788187, %v1099
  %v1101 = vand.u32 2147483647, %v1100
  %v1103 = vcvt.s32.f32 %v1096
  %v1104 = vmul.f32 %v1103, %v1101
  %v1105 = vxor.u32 %v1104, 2147483648
  %v1106 = vsel %vm1023, %v1105, %v1104
  %v1107 = vsub.s32 4, %v1083
  %v1108 = vsel %vm1023, %v1107, %v1083
  %v1109 = vsel %vm1022, %v490, %v1106
  %v1110 = vsel %vm1022, 0, %v1108
  %v1111 = vcosq.f32.pop %v1109
  %v1112 = vsinq.f32.pop %v1109
  %vm1113 = vweird.f32 %v490
  %v1114 = vadd.s32 %v1110, 3
  %v1115 = vand.u32 %v1114, 3
  %vm1116 = vcmp.lt.s32.totalorder %v1115, 2
  %vm1117 = vcmp.eq.s32.totalorder %v1115, 0
  %v1118 = vxor.u32 %v1112, 2147483648
  %v1119 = vsel %vm1117, %v1111, %v1118
  %vm1120 = vcmp.eq.s32.totalorder %v1115, 2
  %v1121 = vxor.u32 %v1111, 2147483648
  %v1122 = vsel %vm1120, %v1121, %v1112
  %v1123 = vsel %vm1116, %v1119, %v1122
  %v1124 = vsel %vm1113, nan, %v1123
  %v1125 = vand.u32 2147483647, %v491
  %vm1126 = vcmp.le.f32.partialorder %v1125, 0.7853982
  %vm1127 = vcmp.lt.s32.totalorder %v491, 0
  %v1128 = vand.u32 %v491, 2139095040
  %v1129 = vshrl.u32 %v1128, 23
  %v1130 = vsub.s32 %v1129, 127
  %v1131 = vand.u32 2147483647, %v491
  %v1132 = vand.u32 %v1131, 8388607
  %v1133 = vor.u32 %v1132, 8388608
  %v1134 = vsub.s32 0, %v1133
  %v1135 = vadd.s32 %v1130, 1
  %vm1136 = vcmp.gt.s32.totalorder %v1135, 0
  %v1137 = vsel %vm1136, %v1135, 0
  %v1138 = vshrl.u32 %v1137, 5
  %v1139 = vand.u32 %v1137, 31
  %v1140 = vsub.s32 32, %v1139
  %v1141 = vshrl.u32 683565275, %v1140
  %v1142 = vshll.u32 683565275, %v1139
  %v1143 = vshrl.u32 2475754826, %v1140
  %v1144 = vor.u32 %v1142, %v1143
  %v1145 = vshll.u32 2475754826, %v1139
  %v1146 = vshrl.u32 2131351028, %v1140
  %v1147 = vor.u32 %v1145, %v1146
  %v1148 = vshll.u32 2131351028, %v1139
  %v1149 = vshrl.u32 2102212464, %v1140
  %v1150 = vor.u32 %v1148, %v1149
  %v1151 = vshll.u32 2102212464, %v1139
  %v1152 = vshrl.u32 920167782, %v1140
  %v1153 = vor.u32 %v1151, %v1152
  %v1154 = vshll.u32 920167782, %v1139
  %v1155 = vshrl.u32 1326507024, %v1140
  %v1156 = vor.u32 %v1154, %v1155
  %vm1157 = vcmp.lt.s32.totalorder %v1138, 1
  %vm1158 = vcmp.lt.s32.totalorder %v1138, 2
  %vm1159 = vcmp.lt.s32.totalorder %v1138, 3
  %vm1160 = vcmp.lt.s32.totalorder %v1138, 4
  %v1161 = vsel %vm1157, %v1141, %v1144
  %v1162 = vsel %vm1160, %v1150, 2102212464
  %v1163 = vsel %vm1159, %v1147, %v1162
  %v1164 = vsel %vm1158, %v1161, %v1163
  %v1165 = vsel %vm1157, %v1144, %v1147
  %v1166 = vsel %vm1160, %v1153, 920167782
  %v1167 = vsel %vm1159, %v1150, %v1166
  %v1168 = vsel %vm1158, %v1165, %v1167
  %v1169 = vsel %vm1157, %v1147, %v1150
  %v1170 = vsel %vm1160, %v1156, 1326507024
  %v1171 = vsel %vm1159, %v1153, %v1170
  %v1172 = vsel %vm1158, %v1169, %v1171
  %v1173 = vshll.u32 %v1133, 8
  %v1174 = vmul.u32.u64.compose %v1173, %v1172
  %v1175 = vextract.low.u32 %v1174
  %v1176 = vextract.high.u32 %v1174
  %v1177 = vmul.u32.u64.compose %v1173, %v1168
  %v1178 = vextract.low.u32 %v1177
  %v1179 = vextract.high.u32 %v1177
  %v1180 = vmul.u32 %v1173, %v1164
  %v1181 = vadd.s32 %v1176, %v1178
  %vm1182 = vc.u32 %v1176, %v1178
  %v1183 = vadd.s32 %v1179, 1
  %v1184 = vsel %vm1182, %v1183, %v1179
  %v1185 = vadd.s32 %v1180, %v1184
  %v1186 = vadd.s32 %v1185, 536870912
  %v1187 = vshrl.u32 %v1186, 30
  %v1188 = vshll.u32 %v1187, 30
  %v1189 = vsub.s32 %v1185, %v1188
  %vm1190 = vcmp.lt.s32.totalorder %v1189, 0
  %v1191 = vsub.s32 0, %v1189
  %v1192 = vsel %vm1190, %v1191, %v1189
  %v1193 = vclz %v1192
  %v1194 = vsub.s32 %v1193, 2
  %vm1195 = vcmp.gt.s32.totalorder 0, %v1194
  %v1196 = vsel %vm1195, 0, %v1194
  %v1197 = vsub.s32 32, %v1196
  %v1198 = vshll.u32 %v1189, %v1196
  %v1199 = vshrl.u32 %v1181, %v1197
  %v1200 = vor.u32 %v1198, %v1199
  %v1201 = vsub.s32 4294967266, %v1196
  %v1202 = vadd.s32 %v1201, 127
  %v1203 = vshll.u32 %v1202, 23
  %v1204 = vor.u32 4788187, %v1203
  %v1205 = vand.u32 2147483647, %v1204
  %v1207 = vcvt.s32.f32 %v1200
  %v1208 = vmul.f32 %v1207, %v1205
  %v1209 = vxor.u32 %v1208, 2147483648
  %v1210 = vsel %vm1127, %v1209, %v1208
  %v1211 = vsub.s32 4, %v1187
  %v1212 = vsel %vm1127, %v1211, %v1187
  %v1213 = vsel %vm1126, %v491, %v1210
  %v1214 = vsel %vm1126, 0, %v1212
  %v1215 = vcosq.f32.pop %v1213
  %v1216 = vsinq.f32.pop %v1213
  %vm1217 = vweird.f32 %v491
  %v1218 = vadd.s32 %v1214, 3
  %v1219 = vand.u32 %v1218, 3
  %vm1220 = vcmp.lt.s32.totalorder %v1219, 2
  %vm1221 = vcmp.eq.s32.totalorder %v1219, 0
  %v1222 = vxor.u32 %v1216, 2147483648
  %v1223 = vsel %vm1221, %v1215, %v1222
  %vm1224 = vcmp.eq.s32.totalorder %v1219, 2
  %v1225 = vxor.u32 %v1215, 2147483648
  %v1226 = vsel %vm1224, %v1225, %v1216
  %v1227 = vsel %vm1220, %v1223, %v1226
  %v1228 = vsel %vm1217, nan, %v1227
  %v1229 = vand.u32 2147483647, %v492
  %vm1230 = vcmp.le.f32.partialorder %v1229, 0.7853982
  %vm1231 = vcmp.lt.s32.totalorder %v492, 0
  %v1232 = vand.u32 %v492, 2139095040
  %v1233 = vshrl.u32 %v1232, 23
  %v1234 = vsub.s32 %v1233, 127
  %v1235 = vand.u32 2147483647, %v492
  %v1236 = vand.u32 %v1235, 8388607
  %v1237 = vor.u32 %v1236, 8388608
  %v1238 = vsub.s32 0, %v1237
  %v1239 = vadd.s32 %v1234, 1
  %vm1240 = vcmp.gt.s32.totalorder %v1239, 0
  %v1241 = vsel %vm1240, %v1239, 0
  %v1242 = vshrl.u32 %v1241, 5
  %v1243 = vand.u32 %v1241, 31
  %v1244 = vsub.s32 32, %v1243
  %v1245 = vshrl.u32 683565275, %v1244
  %v1246 = vshll.u32 683565275, %v1243
  %v1247 = vshrl.u32 2475754826, %v1244
  %v1248 = vor.u32 %v1246, %v1247
  %v1249 = vshll.u32 2475754826, %v1243
  %v1250 = vshrl.u32 2131351028, %v1244
  %v1251 = vor.u32 %v1249, %v1250
  %v1252 = vshll.u32 2131351028, %v1243
  %v1253 = vshrl.u32 2102212464, %v1244
  %v1254 = vor.u32 %v1252, %v1253
  %v1255 = vshll.u32 2102212464, %v1243
  %v1256 = vshrl.u32 920167782, %v1244
  %v1257 = vor.u32 %v1255, %v1256
  %v1258 = vshll.u32 920167782, %v1243
  %v1259 = vshrl.u32 1326507024, %v1244
  %v1260 = vor.u32 %v1258, %v1259
  %vm1261 = vcmp.lt.s32.totalorder %v1242, 1
  %vm1262 = vcmp.lt.s32.totalorder %v1242, 2
  %vm1263 = vcmp.lt.s32.totalorder %v1242, 3
  %vm1264 = vcmp.lt.s32.totalorder %v1242, 4
  %v1265 = vsel %vm1261, %v1245, %v1248
  %v1266 = vsel %vm1264, %v1254, 2102212464
  %v1267 = vsel %vm1263, %v1251, %v1266
  %v1268 = vsel %vm1262, %v1265, %v1267
  %v1269 = vsel %vm1261, %v1248, %v1251
  %v1270 = vsel %vm1264, %v1257, 920167782
  %v1271 = vsel %vm1263, %v1254, %v1270
  %v1272 = vsel %vm1262, %v1269, %v1271
  %v1273 = vsel %vm1261, %v1251, %v1254
  %v1274 = vsel %vm1264, %v1260, 1326507024
  %v1275 = vsel %vm1263, %v1257, %v1274
  %v1276 = vsel %vm1262, %v1273, %v1275
  %v1277 = vshll.u32 %v1237, 8
  %v1278 = vmul.u32.u64.compose %v1277, %v1276
  %v1279 = vextract.low.u32 %v1278
  %v1280 = vextract.high.u32 %v1278
  %v1281 = vmul.u32.u64.compose %v1277, %v1272
  %v1282 = vextract.low.u32 %v1281
  %v1283 = vextract.high.u32 %v1281
  %v1284 = vmul.u32 %v1277, %v1268
  %v1285 = vadd.s32 %v1280, %v1282
  %vm1286 = vc.u32 %v1280, %v1282
  %v1287 = vadd.s32 %v1283, 1
  %v1288 = vsel %vm1286, %v1287, %v1283
  %v1289 = vadd.s32 %v1284, %v1288
  %v1290 = vadd.s32 %v1289, 536870912
  %v1291 = vshrl.u32 %v1290, 30
  %v1292 = vshll.u32 %v1291, 30
  %v1293 = vsub.s32 %v1289, %v1292
  %vm1294 = vcmp.lt.s32.totalorder %v1293, 0
  %v1295 = vsub.s32 0, %v1293
  %v1296 = vsel %vm1294, %v1295, %v1293
  %v1297 = vclz %v1296
  %v1298 = vsub.s32 %v1297, 2
  %vm1299 = vcmp.gt.s32.totalorder 0, %v1298
  %v1300 = vsel %vm1299, 0, %v1298
  %v1301 = vsub.s32 32, %v1300
  %v1302 = vshll.u32 %v1293, %v1300
  %v1303 = vshrl.u32 %v1285, %v1301
  %v1304 = vor.u32 %v1302, %v1303
  %v1305 = vsub.s32 4294967266, %v1300
  %v1306 = vadd.s32 %v1305, 127
  %v1307 = vshll.u32 %v1306, 23
  %v1308 = vor.u32 4788187, %v1307
  %v1309 = vand.u32 2147483647, %v1308
  %v1311 = vcvt.s32.f32 %v1304
  %v1312 = vmul.f32 %v1311, %v1309
  %v1313 = vxor.u32 %v1312, 2147483648
  %v1314 = vsel %vm1231, %v1313, %v1312
  %v1315 = vsub.s32 4, %v1291
  %v1316 = vsel %vm1231, %v1315, %v1291
  %v1317 = vsel %vm1230, %v492, %v1314
  %v1318 = vsel %vm1230, 0, %v1316
  %v1319 = vcosq.f32.pop %v1317
  %v1320 = vsinq.f32.pop %v1317
  %vm1321 = vweird.f32 %v492
  %v1322 = vadd.s32 %v1318, 3
  %v1323 = vand.u32 %v1322, 3
  %vm1324 = vcmp.lt.s32.totalorder %v1323, 2
  %vm1325 = vcmp.eq.s32.totalorder %v1323, 0
  %v1326 = vxor.u32 %v1320, 2147483648
  %v1327 = vsel %vm1325, %v1319, %v1326
  %vm1328 = vcmp.eq.s32.totalorder %v1323, 2
  %v1329 = vxor.u32 %v1319, 2147483648
  %v1330 = vsel %vm1328, %v1329, %v1320
  %v1331 = vsel %vm1324, %v1327, %v1330
  %v1332 = vsel %vm1321, nan, %v1331
  %v1333 = vand.u32 2147483647, %v493
  %vm1334 = vcmp.le.f32.partialorder %v1333, 0.7853982
  %vm1335 = vcmp.lt.s32.totalorder %v493, 0
  %v1336 = vand.u32 %v493, 2139095040
  %v1337 = vshrl.u32 %v1336, 23
  %v1338 = vsub.s32 %v1337, 127
  %v1339 = vand.u32 2147483647, %v493
  %v1340 = vand.u32 %v1339, 8388607
  %v1341 = vor.u32 %v1340, 8388608
  %v1342 = vsub.s32 0, %v1341
  %v1343 = vadd.s32 %v1338, 1
  %vm1344 = vcmp.gt.s32.totalorder %v1343, 0
  %v1345 = vsel %vm1344, %v1343, 0
  %v1346 = vshrl.u32 %v1345, 5
  %v1347 = vand.u32 %v1345, 31
  %v1348 = vsub.s32 32, %v1347
  %v1349 = vshrl.u32 683565275, %v1348
  %v1350 = vshll.u32 683565275, %v1347
  %v1351 = vshrl.u32 2475754826, %v1348
  %v1352 = vor.u32 %v1350, %v1351
  %v1353 = vshll.u32 2475754826, %v1347
  %v1354 = vshrl.u32 2131351028, %v1348
  %v1355 = vor.u32 %v1353, %v1354
  %v1356 = vshll.u32 2131351028, %v1347
  %v1357 = vshrl.u32 2102212464, %v1348
  %v1358 = vor.u32 %v1356, %v1357
  %v1359 = vshll.u32 2102212464, %v1347
  %v1360 = vshrl.u32 920167782, %v1348
  %v1361 = vor.u32 %v1359, %v1360
  %v1362 = vshll.u32 920167782, %v1347
  %v1363 = vshrl.u32 1326507024, %v1348
  %v1364 = vor.u32 %v1362, %v1363
  %vm1365 = vcmp.lt.s32.totalorder %v1346, 1
  %vm1366 = vcmp.lt.s32.totalorder %v1346, 2
  %vm1367 = vcmp.lt.s32.totalorder %v1346, 3
  %vm1368 = vcmp.lt.s32.totalorder %v1346, 4
  %v1369 = vsel %vm1365, %v1349, %v1352
  %v1370 = vsel %vm1368, %v1358, 2102212464
  %v1371 = vsel %vm1367, %v1355, %v1370
  %v1372 = vsel %vm1366, %v1369, %v1371
  %v1373 = vsel %vm1365, %v1352, %v1355
  %v1374 = vsel %vm1368, %v1361, 920167782
  %v1375 = vsel %vm1367, %v1358, %v1374
  %v1376 = vsel %vm1366, %v1373, %v1375
  %v1377 = vsel %vm1365, %v1355, %v1358
  %v1378 = vsel %vm1368, %v1364, 1326507024
  %v1379 = vsel %vm1367, %v1361, %v1378
  %v1380 = vsel %vm1366, %v1377, %v1379
  %v1381 = vshll.u32 %v1341, 8
  %v1382 = vmul.u32.u64.compose %v1381, %v1380
  %v1383 = vextract.low.u32 %v1382
  %v1384 = vextract.high.u32 %v1382
  %v1385 = vmul.u32.u64.compose %v1381, %v1376
  %v1386 = vextract.low.u32 %v1385
  %v1387 = vextract.high.u32 %v1385
  %v1388 = vmul.u32 %v1381, %v1372
  %v1389 = vadd.s32 %v1384, %v1386
  %vm1390 = vc.u32 %v1384, %v1386
  %v1391 = vadd.s32 %v1387, 1
  %v1392 = vsel %vm1390, %v1391, %v1387
  %v1393 = vadd.s32 %v1388, %v1392
  %v1394 = vadd.s32 %v1393, 536870912
  %v1395 = vshrl.u32 %v1394, 30
  %v1396 = vshll.u32 %v1395, 30
  %v1397 = vsub.s32 %v1393, %v1396
  %vm1398 = vcmp.lt.s32.totalorder %v1397, 0
  %v1399 = vsub.s32 0, %v1397
  %v1400 = vsel %vm1398, %v1399, %v1397
  %v1401 = vclz %v1400
  %v1402 = vsub.s32 %v1401, 2
  %vm1403 = vcmp.gt.s32.totalorder 0, %v1402
  %v1404 = vsel %vm1403, 0, %v1402
  %v1405 = vsub.s32 32, %v1404
  %v1406 = vshll.u32 %v1397, %v1404
  %v1407 = vshrl.u32 %v1389, %v1405
  %v1408 = vor.u32 %v1406, %v1407
  %v1409 = vsub.s32 4294967266, %v1404
  %v1410 = vadd.s32 %v1409, 127
  %v1411 = vshll.u32 %v1410, 23
  %v1412 = vor.u32 4788187, %v1411
  %v1413 = vand.u32 2147483647, %v1412
  %v1415 = vcvt.s32.f32 %v1408
  %v1416 = vmul.f32 %v1415, %v1413
  %v1417 = vxor.u32 %v1416, 2147483648
  %v1418 = vsel %vm1335, %v1417, %v1416
  %v1419 = vsub.s32 4, %v1395
  %v1420 = vsel %vm1335, %v1419, %v1395
  %v1421 = vsel %vm1334, %v493, %v1418
  %v1422 = vsel %vm1334, 0, %v1420
  %v1423 = vcosq.f32.pop %v1421
  %v1424 = vsinq.f32.pop %v1421
  %vm1425 = vweird.f32 %v493
  %v1426 = vadd.s32 %v1422, 3
  %v1427 = vand.u32 %v1426, 3
  %vm1428 = vcmp.lt.s32.totalorder %v1427, 2
  %vm1429 = vcmp.eq.s32.totalorder %v1427, 0
  %v1430 = vxor.u32 %v1424, 2147483648
  %v1431 = vsel %vm1429, %v1423, %v1430
  %vm1432 = vcmp.eq.s32.totalorder %v1427, 2
  %v1433 = vxor.u32 %v1423, 2147483648
  %v1434 = vsel %vm1432, %v1433, %v1424
  %v1435 = vsel %vm1428, %v1431, %v1434
  %v1436 = vsel %vm1425, nan, %v1435
  %v1437 = vand.u32 2147483647, %v494
  %vm1438 = vcmp.le.f32.partialorder %v1437, 0.7853982
  %vm1439 = vcmp.lt.s32.totalorder %v494, 0
  %v1440 = vand.u32 %v494, 2139095040
  %v1441 = vshrl.u32 %v1440, 23
  %v1442 = vsub.s32 %v1441, 127
  %v1443 = vand.u32 2147483647, %v494
  %v1444 = vand.u32 %v1443, 8388607
  %v1445 = vor.u32 %v1444, 8388608
  %v1446 = vsub.s32 0, %v1445
  %v1447 = vadd.s32 %v1442, 1
  %vm1448 = vcmp.gt.s32.totalorder %v1447, 0
  %v1449 = vsel %vm1448, %v1447, 0
  %v1450 = vshrl.u32 %v1449, 5
  %v1451 = vand.u32 %v1449, 31
  %v1452 = vsub.s32 32, %v1451
  %v1453 = vshrl.u32 683565275, %v1452
  %v1454 = vshll.u32 683565275, %v1451
  %v1455 = vshrl.u32 2475754826, %v1452
  %v1456 = vor.u32 %v1454, %v1455
  %v1457 = vshll.u32 2475754826, %v1451
  %v1458 = vshrl.u32 2131351028, %v1452
  %v1459 = vor.u32 %v1457, %v1458
  %v1460 = vshll.u32 2131351028, %v1451
  %v1461 = vshrl.u32 2102212464, %v1452
  %v1462 = vor.u32 %v1460, %v1461
  %v1463 = vshll.u32 2102212464, %v1451
  %v1464 = vshrl.u32 920167782, %v1452
  %v1465 = vor.u32 %v1463, %v1464
  %v1466 = vshll.u32 920167782, %v1451
  %v1467 = vshrl.u32 1326507024, %v1452
  %v1468 = vor.u32 %v1466, %v1467
  %vm1469 = vcmp.lt.s32.totalorder %v1450, 1
  %vm1470 = vcmp.lt.s32.totalorder %v1450, 2
  %vm1471 = vcmp.lt.s32.totalorder %v1450, 3
  %vm1472 = vcmp.lt.s32.totalorder %v1450, 4
  %v1473 = vsel %vm1469, %v1453, %v1456
  %v1474 = vsel %vm1472, %v1462, 2102212464
  %v1475 = vsel %vm1471, %v1459, %v1474
  %v1476 = vsel %vm1470, %v1473, %v1475
  %v1477 = vsel %vm1469, %v1456, %v1459
  %v1478 = vsel %vm1472, %v1465, 920167782
  %v1479 = vsel %vm1471, %v1462, %v1478
  %v1480 = vsel %vm1470, %v1477, %v1479
  %v1481 = vsel %vm1469, %v1459, %v1462
  %v1482 = vsel %vm1472, %v1468, 1326507024
  %v1483 = vsel %vm1471, %v1465, %v1482
  %v1484 = vsel %vm1470, %v1481, %v1483
  %v1485 = vshll.u32 %v1445, 8
  %v1486 = vmul.u32.u64.compose %v1485, %v1484
  %v1487 = vextract.low.u32 %v1486
  %v1488 = vextract.high.u32 %v1486
  %v1489 = vmul.u32.u64.compose %v1485, %v1480
  %v1490 = vextract.low.u32 %v1489
  %v1491 = vextract.high.u32 %v1489
  %v1492 = vmul.u32 %v1485, %v1476
  %v1493 = vadd.s32 %v1488, %v1490
  %vm1494 = vc.u32 %v1488, %v1490
  %v1495 = vadd.s32 %v1491, 1
  %v1496 = vsel %vm1494, %v1495, %v1491
  %v1497 = vadd.s32 %v1492, %v1496
  %v1498 = vadd.s32 %v1497, 536870912
  %v1499 = vshrl.u32 %v1498, 30
  %v1500 = vshll.u32 %v1499, 30
  %v1501 = vsub.s32 %v1497, %v1500
  %vm1502 = vcmp.lt.s32.totalorder %v1501, 0
  %v1503 = vsub.s32 0, %v1501
  %v1504 = vsel %vm1502, %v1503, %v1501
  %v1505 = vclz %v1504
  %v1506 = vsub.s32 %v1505, 2
  %vm1507 = vcmp.gt.s32.totalorder 0, %v1506
  %v1508 = vsel %vm1507, 0, %v1506
  %v1509 = vsub.s32 32, %v1508
  %v1510 = vshll.u32 %v1501, %v1508
  %v1511 = vshrl.u32 %v1493, %v1509
  %v1512 = vor.u32 %v1510, %v1511
  %v1513 = vsub.s32 4294967266, %v1508
  %v1514 = vadd.s32 %v1513, 127
  %v1515 = vshll.u32 %v1514, 23
  %v1516 = vor.u32 4788187, %v1515
  %v1517 = vand.u32 2147483647, %v1516
  %v1519 = vcvt.s32.f32 %v1512
  %v1520 = vmul.f32 %v1519, %v1517
  %v1521 = vxor.u32 %v1520, 2147483648
  %v1522 = vsel %vm1439, %v1521, %v1520
  %v1523 = vsub.s32 4, %v1499
  %v1524 = vsel %vm1439, %v1523, %v1499
  %v1525 = vsel %vm1438, %v494, %v1522
  %v1526 = vsel %vm1438, 0, %v1524
  %v1527 = vcosq.f32.pop %v1525
  %v1528 = vsinq.f32.pop %v1525
  %vm1529 = vweird.f32 %v494
  %v1530 = vadd.s32 %v1526, 3
  %v1531 = vand.u32 %v1530, 3
  %vm1532 = vcmp.lt.s32.totalorder %v1531, 2
  %vm1533 = vcmp.eq.s32.totalorder %v1531, 0
  %v1534 = vxor.u32 %v1528, 2147483648
  %v1535 = vsel %vm1533, %v1527, %v1534
  %vm1536 = vcmp.eq.s32.totalorder %v1531, 2
  %v1537 = vxor.u32 %v1527, 2147483648
  %v1538 = vsel %vm1536, %v1537, %v1528
  %v1539 = vsel %vm1532, %v1535, %v1538
  %v1540 = vsel %vm1529, nan, %v1539
  %v1541 = vand.u32 2147483647, %v495
  %vm1542 = vcmp.le.f32.partialorder %v1541, 0.7853982
  %vm1543 = vcmp.lt.s32.totalorder %v495, 0
  %v1544 = vand.u32 %v495, 2139095040
  %v1545 = vshrl.u32 %v1544, 23
  %v1546 = vsub.s32 %v1545, 127
  %v1547 = vand.u32 2147483647, %v495
  %v1548 = vand.u32 %v1547, 8388607
  %v1549 = vor.u32 %v1548, 8388608
  %v1550 = vsub.s32 0, %v1549
  %v1551 = vadd.s32 %v1546, 1
  %vm1552 = vcmp.gt.s32.totalorder %v1551, 0
  %v1553 = vsel %vm1552, %v1551, 0
  %v1554 = vshrl.u32 %v1553, 5
  %v1555 = vand.u32 %v1553, 31
  %v1556 = vsub.s32 32, %v1555
  %v1557 = vshrl.u32 683565275, %v1556
  %v1558 = vshll.u32 683565275, %v1555
  %v1559 = vshrl.u32 2475754826, %v1556
  %v1560 = vor.u32 %v1558, %v1559
  %v1561 = vshll.u32 2475754826, %v1555
  %v1562 = vshrl.u32 2131351028, %v1556
  %v1563 = vor.u32 %v1561, %v1562
  %v1564 = vshll.u32 2131351028, %v1555
  %v1565 = vshrl.u32 2102212464, %v1556
  %v1566 = vor.u32 %v1564, %v1565
  %v1567 = vshll.u32 2102212464, %v1555
  %v1568 = vshrl.u32 920167782, %v1556
  %v1569 = vor.u32 %v1567, %v1568
  %v1570 = vshll.u32 920167782, %v1555
  %v1571 = vshrl.u32 1326507024, %v1556
  %v1572 = vor.u32 %v1570, %v1571
  %vm1573 = vcmp.lt.s32.totalorder %v1554, 1
  %vm1574 = vcmp.lt.s32.totalorder %v1554, 2
  %vm1575 = vcmp.lt.s32.totalorder %v1554, 3
  %vm1576 = vcmp.lt.s32.totalorder %v1554, 4
  %v1577 = vsel %vm1573, %v1557, %v1560
  %v1578 = vsel %vm1576, %v1566, 2102212464
  %v1579 = vsel %vm1575, %v1563, %v1578
  %v1580 = vsel %vm1574, %v1577, %v1579
  %v1581 = vsel %vm1573, %v1560, %v1563
  %v1582 = vsel %vm1576, %v1569, 920167782
  %v1583 = vsel %vm1575, %v1566, %v1582
  %v1584 = vsel %vm1574, %v1581, %v1583
  %v1585 = vsel %vm1573, %v1563, %v1566
  %v1586 = vsel %vm1576, %v1572, 1326507024
  %v1587 = vsel %vm1575, %v1569, %v1586
  %v1588 = vsel %vm1574, %v1585, %v1587
  %v1589 = vshll.u32 %v1549, 8
  %v1590 = vmul.u32.u64.compose %v1589, %v1588
  %v1591 = vextract.low.u32 %v1590
  %v1592 = vextract.high.u32 %v1590
  %v1593 = vmul.u32.u64.compose %v1589, %v1584
  %v1594 = vextract.low.u32 %v1593
  %v1595 = vextract.high.u32 %v1593
  %v1596 = vmul.u32 %v1589, %v1580
  %v1597 = vadd.s32 %v1592, %v1594
  %vm1598 = vc.u32 %v1592, %v1594
  %v1599 = vadd.s32 %v1595, 1
  %v1600 = vsel %vm1598, %v1599, %v1595
  %v1601 = vadd.s32 %v1596, %v1600
  %v1602 = vadd.s32 %v1601, 536870912
  %v1603 = vshrl.u32 %v1602, 30
  %v1604 = vshll.u32 %v1603, 30
  %v1605 = vsub.s32 %v1601, %v1604
  %vm1606 = vcmp.lt.s32.totalorder %v1605, 0
  %v1607 = vsub.s32 0, %v1605
  %v1608 = vsel %vm1606, %v1607, %v1605
  %v1609 = vclz %v1608
  %v1610 = vsub.s32 %v1609, 2
  %vm1611 = vcmp.gt.s32.totalorder 0, %v1610
  %v1612 = vsel %vm1611, 0, %v1610
  %v1613 = vsub.s32 32, %v1612
  %v1614 = vshll.u32 %v1605, %v1612
  %v1615 = vshrl.u32 %v1597, %v1613
  %v1616 = vor.u32 %v1614, %v1615
  %v1617 = vsub.s32 4294967266, %v1612
  %v1618 = vadd.s32 %v1617, 127
  %v1619 = vshll.u32 %v1618, 23
  %v1620 = vor.u32 4788187, %v1619
  %v1621 = vand.u32 2147483647, %v1620
  %v1623 = vcvt.s32.f32 %v1616
  %v1624 = vmul.f32 %v1623, %v1621
  %v1625 = vxor.u32 %v1624, 2147483648
  %v1626 = vsel %vm1543, %v1625, %v1624
  %v1627 = vsub.s32 4, %v1603
  %v1628 = vsel %vm1543, %v1627, %v1603
  %v1629 = vsel %vm1542, %v495, %v1626
  %v1630 = vsel %vm1542, 0, %v1628
  %v1631 = vcosq.f32.pop %v1629
  %v1632 = vsinq.f32.pop %v1629
  %vm1633 = vweird.f32 %v495
  %v1634 = vadd.s32 %v1630, 3
  %v1635 = vand.u32 %v1634, 3
  %vm1636 = vcmp.lt.s32.totalorder %v1635, 2
  %vm1637 = vcmp.eq.s32.totalorder %v1635, 0
  %v1638 = vxor.u32 %v1632, 2147483648
  %v1639 = vsel %vm1637, %v1631, %v1638
  %vm1640 = vcmp.eq.s32.totalorder %v1635, 2
  %v1641 = vxor.u32 %v1631, 2147483648
  %v1642 = vsel %vm1640, %v1641, %v1632
  %v1643 = vsel %vm1636, %v1639, %v1642
  %v1644 = vsel %vm1633, nan, %v1643
  %v1645 = vand.u32 2147483647, %v496
  %vm1646 = vcmp.le.f32.partialorder %v1645, 0.7853982
  %vm1647 = vcmp.lt.s32.totalorder %v496, 0
  %v1648 = vand.u32 %v496, 2139095040
  %v1649 = vshrl.u32 %v1648, 23
  %v1650 = vsub.s32 %v1649, 127
  %v1651 = vand.u32 2147483647, %v496
  %v1652 = vand.u32 %v1651, 8388607
  %v1653 = vor.u32 %v1652, 8388608
  %v1654 = vsub.s32 0, %v1653
  %v1655 = vadd.s32 %v1650, 1
  %vm1656 = vcmp.gt.s32.totalorder %v1655, 0
  %v1657 = vsel %vm1656, %v1655, 0
  %v1658 = vshrl.u32 %v1657, 5
  %v1659 = vand.u32 %v1657, 31
  %v1660 = vsub.s32 32, %v1659
  %v1661 = vshrl.u32 683565275, %v1660
  %v1662 = vshll.u32 683565275, %v1659
  %v1663 = vshrl.u32 2475754826, %v1660
  %v1664 = vor.u32 %v1662, %v1663
  %v1665 = vshll.u32 2475754826, %v1659
  %v1666 = vshrl.u32 2131351028, %v1660
  %v1667 = vor.u32 %v1665, %v1666
  %v1668 = vshll.u32 2131351028, %v1659
  %v1669 = vshrl.u32 2102212464, %v1660
  %v1670 = vor.u32 %v1668, %v1669
  %v1671 = vshll.u32 2102212464, %v1659
  %v1672 = vshrl.u32 920167782, %v1660
  %v1673 = vor.u32 %v1671, %v1672
  %v1674 = vshll.u32 920167782, %v1659
  %v1675 = vshrl.u32 1326507024, %v1660
  %v1676 = vor.u32 %v1674, %v1675
  %vm1677 = vcmp.lt.s32.totalorder %v1658, 1
  %vm1678 = vcmp.lt.s32.totalorder %v1658, 2
  %vm1679 = vcmp.lt.s32.totalorder %v1658, 3
  %vm1680 = vcmp.lt.s32.totalorder %v1658, 4
  %v1681 = vsel %vm1677, %v1661, %v1664
  %v1682 = vsel %vm1680, %v1670, 2102212464
  %v1683 = vsel %vm1679, %v1667, %v1682
  %v1684 = vsel %vm1678, %v1681, %v1683
  %v1685 = vsel %vm1677, %v1664, %v1667
  %v1686 = vsel %vm1680, %v1673, 920167782
  %v1687 = vsel %vm1679, %v1670, %v1686
  %v1688 = vsel %vm1678, %v1685, %v1687
  %v1689 = vsel %vm1677, %v1667, %v1670
  %v1690 = vsel %vm1680, %v1676, 1326507024
  %v1691 = vsel %vm1679, %v1673, %v1690
  %v1692 = vsel %vm1678, %v1689, %v1691
  %v1693 = vshll.u32 %v1653, 8
  %v1694 = vmul.u32.u64.compose %v1693, %v1692
  %v1695 = vextract.low.u32 %v1694
  %v1696 = vextract.high.u32 %v1694
  %v1697 = vmul.u32.u64.compose %v1693, %v1688
  %v1698 = vextract.low.u32 %v1697
  %v1699 = vextract.high.u32 %v1697
  %v1700 = vmul.u32 %v1693, %v1684
  %v1701 = vadd.s32 %v1696, %v1698
  %vm1702 = vc.u32 %v1696, %v1698
  %v1703 = vadd.s32 %v1699, 1
  %v1704 = vsel %vm1702, %v1703, %v1699
  %v1705 = vadd.s32 %v1700, %v1704
  %v1706 = vadd.s32 %v1705, 536870912
  %v1707 = vshrl.u32 %v1706, 30
  %v1708 = vshll.u32 %v1707, 30
  %v1709 = vsub.s32 %v1705, %v1708
  %vm1710 = vcmp.lt.s32.totalorder %v1709, 0
  %v1711 = vsub.s32 0, %v1709
  %v1712 = vsel %vm1710, %v1711, %v1709
  %v1713 = vclz %v1712
  %v1714 = vsub.s32 %v1713, 2
  %vm1715 = vcmp.gt.s32.totalorder 0, %v1714
  %v1716 = vsel %vm1715, 0, %v1714
  %v1717 = vsub.s32 32, %v1716
  %v1718 = vshll.u32 %v1709, %v1716
  %v1719 = vshrl.u32 %v1701, %v1717
  %v1720 = vor.u32 %v1718, %v1719
  %v1721 = vsub.s32 4294967266, %v1716
  %v1722 = vadd.s32 %v1721, 127
  %v1723 = vshll.u32 %v1722, 23
  %v1724 = vor.u32 4788187, %v1723
  %v1725 = vand.u32 2147483647, %v1724
  %v1727 = vcvt.s32.f32 %v1720
  %v1728 = vmul.f32 %v1727, %v1725
  %v1729 = vxor.u32 %v1728, 2147483648
  %v1730 = vsel %vm1647, %v1729, %v1728
  %v1731 = vsub.s32 4, %v1707
  %v1732 = vsel %vm1647, %v1731, %v1707
  %v1733 = vsel %vm1646, %v496, %v1730
  %v1734 = vsel %vm1646, 0, %v1732
  %v1735 = vcosq.f32.pop %v1733
  %v1736 = vsinq.f32.pop %v1733
  %vm1737 = vweird.f32 %v496
  %v1738 = vadd.s32 %v1734, 3
  %v1739 = vand.u32 %v1738, 3
  %vm1740 = vcmp.lt.s32.totalorder %v1739, 2
  %vm1741 = vcmp.eq.s32.totalorder %v1739, 0
  %v1742 = vxor.u32 %v1736, 2147483648
  %v1743 = vsel %vm1741, %v1735, %v1742
  %vm1744 = vcmp.eq.s32.totalorder %v1739, 2
  %v1745 = vxor.u32 %v1735, 2147483648
  %v1746 = vsel %vm1744, %v1745, %v1736
  %v1747 = vsel %vm1740, %v1743, %v1746
  %v1748 = vsel %vm1737, nan, %v1747
  %v1749 = vand.u32 2147483647, %v497
  %vm1750 = vcmp.le.f32.partialorder %v1749, 0.7853982
  %vm1751 = vcmp.lt.s32.totalorder %v497, 0
  %v1752 = vand.u32 %v497, 2139095040
  %v1753 = vshrl.u32 %v1752, 23
  %v1754 = vsub.s32 %v1753, 127
  %v1755 = vand.u32 2147483647, %v497
  %v1756 = vand.u32 %v1755, 8388607
  %v1757 = vor.u32 %v1756, 8388608
  %v1758 = vsub.s32 0, %v1757
  %v1759 = vadd.s32 %v1754, 1
  %vm1760 = vcmp.gt.s32.totalorder %v1759, 0
  %v1761 = vsel %vm1760, %v1759, 0
  %v1762 = vshrl.u32 %v1761, 5
  %v1763 = vand.u32 %v1761, 31
  %v1764 = vsub.s32 32, %v1763
  %v1765 = vshrl.u32 683565275, %v1764
  %v1766 = vshll.u32 683565275, %v1763
  %v1767 = vshrl.u32 2475754826, %v1764
  %v1768 = vor.u32 %v1766, %v1767
  %v1769 = vshll.u32 2475754826, %v1763
  %v1770 = vshrl.u32 2131351028, %v1764
  %v1771 = vor.u32 %v1769, %v1770
  %v1772 = vshll.u32 2131351028, %v1763
  %v1773 = vshrl.u32 2102212464, %v1764
  %v1774 = vor.u32 %v1772, %v1773
  %v1775 = vshll.u32 2102212464, %v1763
  %v1776 = vshrl.u32 920167782, %v1764
  %v1777 = vor.u32 %v1775, %v1776
  %v1778 = vshll.u32 920167782, %v1763
  %v1779 = vshrl.u32 1326507024, %v1764
  %v1780 = vor.u32 %v1778, %v1779
  %vm1781 = vcmp.lt.s32.totalorder %v1762, 1
  %vm1782 = vcmp.lt.s32.totalorder %v1762, 2
  %vm1783 = vcmp.lt.s32.totalorder %v1762, 3
  %vm1784 = vcmp.lt.s32.totalorder %v1762, 4
  %v1785 = vsel %vm1781, %v1765, %v1768
  %v1786 = vsel %vm1784, %v1774, 2102212464
  %v1787 = vsel %vm1783, %v1771, %v1786
  %v1788 = vsel %vm1782, %v1785, %v1787
  %v1789 = vsel %vm1781, %v1768, %v1771
  %v1790 = vsel %vm1784, %v1777, 920167782
  %v1791 = vsel %vm1783, %v1774, %v1790
  %v1792 = vsel %vm1782, %v1789, %v1791
  %v1793 = vsel %vm1781, %v1771, %v1774
  %v1794 = vsel %vm1784, %v1780, 1326507024
  %v1795 = vsel %vm1783, %v1777, %v1794
  %v1796 = vsel %vm1782, %v1793, %v1795
  %v1797 = vshll.u32 %v1757, 8
  %v1798 = vmul.u32.u64.compose %v1797, %v1796
  %v1799 = vextract.low.u32 %v1798
  %v1800 = vextract.high.u32 %v1798
  %v1801 = vmul.u32.u64.compose %v1797, %v1792
  %v1802 = vextract.low.u32 %v1801
  %v1803 = vextract.high.u32 %v1801
  %v1804 = vmul.u32 %v1797, %v1788
  %v1805 = vadd.s32 %v1800, %v1802
  %vm1806 = vc.u32 %v1800, %v1802
  %v1807 = vadd.s32 %v1803, 1
  %v1808 = vsel %vm1806, %v1807, %v1803
  %v1809 = vadd.s32 %v1804, %v1808
  %v1810 = vadd.s32 %v1809, 536870912
  %v1811 = vshrl.u32 %v1810, 30
  %v1812 = vshll.u32 %v1811, 30
  %v1813 = vsub.s32 %v1809, %v1812
  %vm1814 = vcmp.lt.s32.totalorder %v1813, 0
  %v1815 = vsub.s32 0, %v1813
  %v1816 = vsel %vm1814, %v1815, %v1813
  %v1817 = vclz %v1816
  %v1818 = vsub.s32 %v1817, 2
  %vm1819 = vcmp.gt.s32.totalorder 0, %v1818
  %v1820 = vsel %vm1819, 0, %v1818
  %v1821 = vsub.s32 32, %v1820
  %v1822 = vshll.u32 %v1813, %v1820
  %v1823 = vshrl.u32 %v1805, %v1821
  %v1824 = vor.u32 %v1822, %v1823
  %v1825 = vsub.s32 4294967266, %v1820
  %v1826 = vadd.s32 %v1825, 127
  %v1827 = vshll.u32 %v1826, 23
  %v1828 = vor.u32 4788187, %v1827
  %v1829 = vand.u32 2147483647, %v1828
  %v1831 = vcvt.s32.f32 %v1824
  %v1832 = vmul.f32 %v1831, %v1829
  %v1833 = vxor.u32 %v1832, 2147483648
  %v1834 = vsel %vm1751, %v1833, %v1832
  %v1835 = vsub.s32 4, %v1811
  %v1836 = vsel %vm1751, %v1835, %v1811
  %v1837 = vsel %vm1750, %v497, %v1834
  %v1838 = vsel %vm1750, 0, %v1836
  %v1839 = vcosq.f32.pop %v1837
  %v1840 = vsinq.f32.pop %v1837
  %vm1841 = vweird.f32 %v497
  %v1842 = vadd.s32 %v1838, 3
  %v1843 = vand.u32 %v1842, 3
  %vm1844 = vcmp.lt.s32.totalorder %v1843, 2
  %vm1845 = vcmp.eq.s32.totalorder %v1843, 0
  %v1846 = vxor.u32 %v1840, 2147483648
  %v1847 = vsel %vm1845, %v1839, %v1846
  %vm1848 = vcmp.eq.s32.totalorder %v1843, 2
  %v1849 = vxor.u32 %v1839, 2147483648
  %v1850 = vsel %vm1848, %v1849, %v1840
  %v1851 = vsel %vm1844, %v1847, %v1850
  %v1852 = vsel %vm1841, nan, %v1851
  %v1853 = vand.u32 2147483647, %v498
  %vm1854 = vcmp.le.f32.partialorder %v1853, 0.7853982
  %vm1855 = vcmp.lt.s32.totalorder %v498, 0
  %v1856 = vand.u32 %v498, 2139095040
  %v1857 = vshrl.u32 %v1856, 23
  %v1858 = vsub.s32 %v1857, 127
  %v1859 = vand.u32 2147483647, %v498
  %v1860 = vand.u32 %v1859, 8388607
  %v1861 = vor.u32 %v1860, 8388608
  %v1862 = vsub.s32 0, %v1861
  %v1863 = vadd.s32 %v1858, 1
  %vm1864 = vcmp.gt.s32.totalorder %v1863, 0
  %v1865 = vsel %vm1864, %v1863, 0
  %v1866 = vshrl.u32 %v1865, 5
  %v1867 = vand.u32 %v1865, 31
  %v1868 = vsub.s32 32, %v1867
  %v1869 = vshrl.u32 683565275, %v1868
  %v1870 = vshll.u32 683565275, %v1867
  %v1871 = vshrl.u32 2475754826, %v1868
  %v1872 = vor.u32 %v1870, %v1871
  %v1873 = vshll.u32 2475754826, %v1867
  %v1874 = vshrl.u32 2131351028, %v1868
  %v1875 = vor.u32 %v1873, %v1874
  %v1876 = vshll.u32 2131351028, %v1867
  %v1877 = vshrl.u32 2102212464, %v1868
  %v1878 = vor.u32 %v1876, %v1877
  %v1879 = vshll.u32 2102212464, %v1867
  %v1880 = vshrl.u32 920167782, %v1868
  %v1881 = vor.u32 %v1879, %v1880
  %v1882 = vshll.u32 920167782, %v1867
  %v1883 = vshrl.u32 1326507024, %v1868
  %v1884 = vor.u32 %v1882, %v1883
  %vm1885 = vcmp.lt.s32.totalorder %v1866, 1
  %vm1886 = vcmp.lt.s32.totalorder %v1866, 2
  %vm1887 = vcmp.lt.s32.totalorder %v1866, 3
  %vm1888 = vcmp.lt.s32.totalorder %v1866, 4
  %v1889 = vsel %vm1885, %v1869, %v1872
  %v1890 = vsel %vm1888, %v1878, 2102212464
  %v1891 = vsel %vm1887, %v1875, %v1890
  %v1892 = vsel %vm1886, %v1889, %v1891
  %v1893 = vsel %vm1885, %v1872, %v1875
  %v1894 = vsel %vm1888, %v1881, 920167782
  %v1895 = vsel %vm1887, %v1878, %v1894
  %v1896 = vsel %vm1886, %v1893, %v1895
  %v1897 = vsel %vm1885, %v1875, %v1878
  %v1898 = vsel %vm1888, %v1884, 1326507024
  %v1899 = vsel %vm1887, %v1881, %v1898
  %v1900 = vsel %vm1886, %v1897, %v1899
  %v1901 = vshll.u32 %v1861, 8
  %v1902 = vmul.u32.u64.compose %v1901, %v1900
  %v1903 = vextract.low.u32 %v1902
  %v1904 = vextract.high.u32 %v1902
  %v1905 = vmul.u32.u64.compose %v1901, %v1896
  %v1906 = vextract.low.u32 %v1905
  %v1907 = vextract.high.u32 %v1905
  %v1908 = vmul.u32 %v1901, %v1892
  %v1909 = vadd.s32 %v1904, %v1906
  %vm1910 = vc.u32 %v1904, %v1906
  %v1911 = vadd.s32 %v1907, 1
  %v1912 = vsel %vm1910, %v1911, %v1907
  %v1913 = vadd.s32 %v1908, %v1912
  %v1914 = vadd.s32 %v1913, 536870912
  %v1915 = vshrl.u32 %v1914, 30
  %v1916 = vshll.u32 %v1915, 30
  %v1917 = vsub.s32 %v1913, %v1916
  %vm1918 = vcmp.lt.s32.totalorder %v1917, 0
  %v1919 = vsub.s32 0, %v1917
  %v1920 = vsel %vm1918, %v1919, %v1917
  %v1921 = vclz %v1920
  %v1922 = vsub.s32 %v1921, 2
  %vm1923 = vcmp.gt.s32.totalorder 0, %v1922
  %v1924 = vsel %vm1923, 0, %v1922
  %v1925 = vsub.s32 32, %v1924
  %v1926 = vshll.u32 %v1917, %v1924
  %v1927 = vshrl.u32 %v1909, %v1925
  %v1928 = vor.u32 %v1926, %v1927
  %v1929 = vsub.s32 4294967266, %v1924
  %v1930 = vadd.s32 %v1929, 127
  %v1931 = vshll.u32 %v1930, 23
  %v1932 = vor.u32 4788187, %v1931
  %v1933 = vand.u32 2147483647, %v1932
  %v1935 = vcvt.s32.f32 %v1928
  %v1936 = vmul.f32 %v1935, %v1933
  %v1937 = vxor.u32 %v1936, 2147483648
  %v1938 = vsel %vm1855, %v1937, %v1936
  %v1939 = vsub.s32 4, %v1915
  %v1940 = vsel %vm1855, %v1939, %v1915
  %v1941 = vsel %vm1854, %v498, %v1938
  %v1942 = vsel %vm1854, 0, %v1940
  %v1943 = vcosq.f32.pop %v1941
  %v1944 = vsinq.f32.pop %v1941
  %vm1945 = vweird.f32 %v498
  %v1946 = vadd.s32 %v1942, 3
  %v1947 = vand.u32 %v1946, 3
  %vm1948 = vcmp.lt.s32.totalorder %v1947, 2
  %vm1949 = vcmp.eq.s32.totalorder %v1947, 0
  %v1950 = vxor.u32 %v1944, 2147483648
  %v1951 = vsel %vm1949, %v1943, %v1950
  %vm1952 = vcmp.eq.s32.totalorder %v1947, 2
  %v1953 = vxor.u32 %v1943, 2147483648
  %v1954 = vsel %vm1952, %v1953, %v1944
  %v1955 = vsel %vm1948, %v1951, %v1954
  %v1956 = vsel %vm1945, nan, %v1955
  %v1957 = vand.u32 2147483647, %v499
  %vm1958 = vcmp.le.f32.partialorder %v1957, 0.7853982
  %vm1959 = vcmp.lt.s32.totalorder %v499, 0
  %v1960 = vand.u32 %v499, 2139095040
  %v1961 = vshrl.u32 %v1960, 23
  %v1962 = vsub.s32 %v1961, 127
  %v1963 = vand.u32 2147483647, %v499
  %v1964 = vand.u32 %v1963, 8388607
  %v1965 = vor.u32 %v1964, 8388608
  %v1966 = vsub.s32 0, %v1965
  %v1967 = vadd.s32 %v1962, 1
  %vm1968 = vcmp.gt.s32.totalorder %v1967, 0
  %v1969 = vsel %vm1968, %v1967, 0
  %v1970 = vshrl.u32 %v1969, 5
  %v1971 = vand.u32 %v1969, 31
  %v1972 = vsub.s32 32, %v1971
  %v1973 = vshrl.u32 683565275, %v1972
  %v1974 = vshll.u32 683565275, %v1971
  %v1975 = vshrl.u32 2475754826, %v1972
  %v1976 = vor.u32 %v1974, %v1975
  %v1977 = vshll.u32 2475754826, %v1971
  %v1978 = vshrl.u32 2131351028, %v1972
  %v1979 = vor.u32 %v1977, %v1978
  %v1980 = vshll.u32 2131351028, %v1971
  %v1981 = vshrl.u32 2102212464, %v1972
  %v1982 = vor.u32 %v1980, %v1981
  %v1983 = vshll.u32 2102212464, %v1971
  %v1984 = vshrl.u32 920167782, %v1972
  %v1985 = vor.u32 %v1983, %v1984
  %v1986 = vshll.u32 920167782, %v1971
  %v1987 = vshrl.u32 1326507024, %v1972
  %v1988 = vor.u32 %v1986, %v1987
  %vm1989 = vcmp.lt.s32.totalorder %v1970, 1
  %vm1990 = vcmp.lt.s32.totalorder %v1970, 2
  %vm1991 = vcmp.lt.s32.totalorder %v1970, 3
  %vm1992 = vcmp.lt.s32.totalorder %v1970, 4
  %v1993 = vsel %vm1989, %v1973, %v1976
  %v1994 = vsel %vm1992, %v1982, 2102212464
  %v1995 = vsel %vm1991, %v1979, %v1994
  %v1996 = vsel %vm1990, %v1993, %v1995
  %v1997 = vsel %vm1989, %v1976, %v1979
  %v1998 = vsel %vm1992, %v1985, 920167782
  %v1999 = vsel %vm1991, %v1982, %v1998
  %v2000 = vsel %vm1990, %v1997, %v1999
  %v2001 = vsel %vm1989, %v1979, %v1982
  %v2002 = vsel %vm1992, %v1988, 1326507024
  %v2003 = vsel %vm1991, %v1985, %v2002
  %v2004 = vsel %vm1990, %v2001, %v2003
  %v2005 = vshll.u32 %v1965, 8
  %v2006 = vmul.u32.u64.compose %v2005, %v2004
  %v2007 = vextract.low.u32 %v2006
  %v2008 = vextract.high.u32 %v2006
  %v2009 = vmul.u32.u64.compose %v2005, %v2000
  %v2010 = vextract.low.u32 %v2009
  %v2011 = vextract.high.u32 %v2009
  %v2012 = vmul.u32 %v2005, %v1996
  %v2013 = vadd.s32 %v2008, %v2010
  %vm2014 = vc.u32 %v2008, %v2010
  %v2015 = vadd.s32 %v2011, 1
  %v2016 = vsel %vm2014, %v2015, %v2011
  %v2017 = vadd.s32 %v2012, %v2016
  %v2018 = vadd.s32 %v2017, 536870912
  %v2019 = vshrl.u32 %v2018, 30
  %v2020 = vshll.u32 %v2019, 30
  %v2021 = vsub.s32 %v2017, %v2020
  %vm2022 = vcmp.lt.s32.totalorder %v2021, 0
  %v2023 = vsub.s32 0, %v2021
  %v2024 = vsel %vm2022, %v2023, %v2021
  %v2025 = vclz %v2024
  %v2026 = vsub.s32 %v2025, 2
  %vm2027 = vcmp.gt.s32.totalorder 0, %v2026
  %v2028 = vsel %vm2027, 0, %v2026
  %v2029 = vsub.s32 32, %v2028
  %v2030 = vshll.u32 %v2021, %v2028
  %v2031 = vshrl.u32 %v2013, %v2029
  %v2032 = vor.u32 %v2030, %v2031
  %v2033 = vsub.s32 4294967266, %v2028
  %v2034 = vadd.s32 %v2033, 127
  %v2035 = vshll.u32 %v2034, 23
  %v2036 = vor.u32 4788187, %v2035
  %v2037 = vand.u32 2147483647, %v2036
  %v2039 = vcvt.s32.f32 %v2032
  %v2040 = vmul.f32 %v2039, %v2037
  %v2041 = vxor.u32 %v2040, 2147483648
  %v2042 = vsel %vm1959, %v2041, %v2040
  %v2043 = vsub.s32 4, %v2019
  %v2044 = vsel %vm1959, %v2043, %v2019
  %v2045 = vsel %vm1958, %v499, %v2042
  %v2046 = vsel %vm1958, 0, %v2044
  %v2047 = vcosq.f32.pop %v2045
  %v2048 = vsinq.f32.pop %v2045
  %vm2049 = vweird.f32 %v499
  %v2050 = vadd.s32 %v2046, 3
  %v2051 = vand.u32 %v2050, 3
  %vm2052 = vcmp.lt.s32.totalorder %v2051, 2
  %vm2053 = vcmp.eq.s32.totalorder %v2051, 0
  %v2054 = vxor.u32 %v2048, 2147483648
  %v2055 = vsel %vm2053, %v2047, %v2054
  %vm2056 = vcmp.eq.s32.totalorder %v2051, 2
  %v2057 = vxor.u32 %v2047, 2147483648
  %v2058 = vsel %vm2056, %v2057, %v2048
  %v2059 = vsel %vm2052, %v2055, %v2058
  %v2060 = vsel %vm2049, nan, %v2059
  %v2061 = vand.u32 2147483647, %v500
  %vm2062 = vcmp.le.f32.partialorder %v2061, 0.7853982
  %vm2063 = vcmp.lt.s32.totalorder %v500, 0
  %v2064 = vand.u32 %v500, 2139095040
  %v2065 = vshrl.u32 %v2064, 23
  %v2066 = vsub.s32 %v2065, 127
  %v2067 = vand.u32 2147483647, %v500
  %v2068 = vand.u32 %v2067, 8388607
  %v2069 = vor.u32 %v2068, 8388608
  %v2070 = vsub.s32 0, %v2069
  %v2071 = vadd.s32 %v2066, 1
  %vm2072 = vcmp.gt.s32.totalorder %v2071, 0
  %v2073 = vsel %vm2072, %v2071, 0
  %v2074 = vshrl.u32 %v2073, 5
  %v2075 = vand.u32 %v2073, 31
  %v2076 = vsub.s32 32, %v2075
  %v2077 = vshrl.u32 683565275, %v2076
  %v2078 = vshll.u32 683565275, %v2075
  %v2079 = vshrl.u32 2475754826, %v2076
  %v2080 = vor.u32 %v2078, %v2079
  %v2081 = vshll.u32 2475754826, %v2075
  %v2082 = vshrl.u32 2131351028, %v2076
  %v2083 = vor.u32 %v2081, %v2082
  %v2084 = vshll.u32 2131351028, %v2075
  %v2085 = vshrl.u32 2102212464, %v2076
  %v2086 = vor.u32 %v2084, %v2085
  %v2087 = vshll.u32 2102212464, %v2075
  %v2088 = vshrl.u32 920167782, %v2076
  %v2089 = vor.u32 %v2087, %v2088
  %v2090 = vshll.u32 920167782, %v2075
  %v2091 = vshrl.u32 1326507024, %v2076
  %v2092 = vor.u32 %v2090, %v2091
  %vm2093 = vcmp.lt.s32.totalorder %v2074, 1
  %vm2094 = vcmp.lt.s32.totalorder %v2074, 2
  %vm2095 = vcmp.lt.s32.totalorder %v2074, 3
  %vm2096 = vcmp.lt.s32.totalorder %v2074, 4
  %v2097 = vsel %vm2093, %v2077, %v2080
  %v2098 = vsel %vm2096, %v2086, 2102212464
  %v2099 = vsel %vm2095, %v2083, %v2098
  %v2100 = vsel %vm2094, %v2097, %v2099
  %v2101 = vsel %vm2093, %v2080, %v2083
  %v2102 = vsel %vm2096, %v2089, 920167782
  %v2103 = vsel %vm2095, %v2086, %v2102
  %v2104 = vsel %vm2094, %v2101, %v2103
  %v2105 = vsel %vm2093, %v2083, %v2086
  %v2106 = vsel %vm2096, %v2092, 1326507024
  %v2107 = vsel %vm2095, %v2089, %v2106
  %v2108 = vsel %vm2094, %v2105, %v2107
  %v2109 = vshll.u32 %v2069, 8
  %v2110 = vmul.u32.u64.compose %v2109, %v2108
  %v2111 = vextract.low.u32 %v2110
  %v2112 = vextract.high.u32 %v2110
  %v2113 = vmul.u32.u64.compose %v2109, %v2104
  %v2114 = vextract.low.u32 %v2113
  %v2115 = vextract.high.u32 %v2113
  %v2116 = vmul.u32 %v2109, %v2100
  %v2117 = vadd.s32 %v2112, %v2114
  %vm2118 = vc.u32 %v2112, %v2114
  %v2119 = vadd.s32 %v2115, 1
  %v2120 = vsel %vm2118, %v2119, %v2115
  %v2121 = vadd.s32 %v2116, %v2120
  %v2122 = vadd.s32 %v2121, 536870912
  %v2123 = vshrl.u32 %v2122, 30
  %v2124 = vshll.u32 %v2123, 30
  %v2125 = vsub.s32 %v2121, %v2124
  %vm2126 = vcmp.lt.s32.totalorder %v2125, 0
  %v2127 = vsub.s32 0, %v2125
  %v2128 = vsel %vm2126, %v2127, %v2125
  %v2129 = vclz %v2128
  %v2130 = vsub.s32 %v2129, 2
  %vm2131 = vcmp.gt.s32.totalorder 0, %v2130
  %v2132 = vsel %vm2131, 0, %v2130
  %v2133 = vsub.s32 32, %v2132
  %v2134 = vshll.u32 %v2125, %v2132
  %v2135 = vshrl.u32 %v2117, %v2133
  %v2136 = vor.u32 %v2134, %v2135
  %v2137 = vsub.s32 4294967266, %v2132
  %v2138 = vadd.s32 %v2137, 127
  %v2139 = vshll.u32 %v2138, 23
  %v2140 = vor.u32 4788187, %v2139
  %v2141 = vand.u32 2147483647, %v2140
  %v2143 = vcvt.s32.f32 %v2136
  %v2144 = vmul.f32 %v2143, %v2141
  %v2145 = vxor.u32 %v2144, 2147483648
  %v2146 = vsel %vm2063, %v2145, %v2144
  %v2147 = vsub.s32 4, %v2123
  %v2148 = vsel %vm2063, %v2147, %v2123
  %v2149 = vsel %vm2062, %v500, %v2146
  %v2150 = vsel %vm2062, 0, %v2148
  %v2151 = vcosq.f32.pop %v2149
  %v2152 = vsinq.f32.pop %v2149
  %vm2153 = vweird.f32 %v500
  %v2154 = vadd.s32 %v2150, 3
  %v2155 = vand.u32 %v2154, 3
  %vm2156 = vcmp.lt.s32.totalorder %v2155, 2
  %vm2157 = vcmp.eq.s32.totalorder %v2155, 0
  %v2158 = vxor.u32 %v2152, 2147483648
  %v2159 = vsel %vm2157, %v2151, %v2158
  %vm2160 = vcmp.eq.s32.totalorder %v2155, 2
  %v2161 = vxor.u32 %v2151, 2147483648
  %v2162 = vsel %vm2160, %v2161, %v2152
  %v2163 = vsel %vm2156, %v2159, %v2162
  %v2164 = vsel %vm2153, nan, %v2163
  %v2165 = vpack.c.bf16 %v708, %v604
  %v2166 = vpack.c.bf16 %v916, %v812
  %v2167 = vpack.c.bf16 %v1124, %v1020
  %v2168 = vpack.c.bf16 %v1332, %v1228
  %v2169 = vpack.c.bf16 %v1540, %v1436
  %v2170 = vpack.c.bf16 %v1748, %v1644
  %v2171 = vpack.c.bf16 %v1956, %v1852
  %v2172 = vpack.c.bf16 %v2164, %v2060
  %v2173 = vld [vmem:[%s5] sm:$0xf]
  %v2174 = vld [vmem:[%s5 + $0x4] sm:$0xf]
  %v2175 = vld [vmem:[%s5 + $0x8] sm:$0xf]
  %v2176 = vld [vmem:[%s5 + $0xc] sm:$0xf]
  %v2177 = vld [vmem:[%s6] sm:$0x1]
  %v2179 = vlaneseq
  %v2180 = vshrl.u32 %v2179, 7
  %v2181 = vsub.s32 0, %v2180
  %v2182 = vrot.slane %v2177, %v2181
  %v2188 = vunpack.c.l.b16 %v2173
  %v2189 = vunpack.c.l.b16 %v2174
  %v2190 = vunpack.c.l.b16 %v2175
  %v2191 = vunpack.c.l.b16 %v2176
  %v2192 = vpack.c.b16 %v2189, %v2188
  %v2193 = vpack.c.b16 %v2191, %v2190
  %vm2196 = vcmask 261120
  %v2198 = vsel %vm2196, %v2165, 0
  %v2201 = vsel %vm2196, %v2166, 0
  %v2204 = vsel %vm2196, %v2167, 0
  %v2207 = vsel %vm2196, %v2168, 0
  %v2210 = vsel %vm2196, %v2169, 0
  %v2213 = vsel %vm2196, %v2170, 0
  %v2216 = vsel %vm2196, %v2171, 0
  %v2219 = vsel %vm2196, %v2172, 0
  %2221 = vmatprep.subr.bf16.mxu0 0
  %2222 = vmatpush1.bf16.msra.mxu0 %v2192
  %2223 = vmatprep.subr.bf16.mxu0 0
  %2224 = vmatpush1.bf16.msra.mxu0 %v2193
  %2225 = vmatprep.subr.bf16.mxu0 0
  %2226 = vmatpush1.bf16.msra.mxu0 0
  %2227 = vmatprep.subr.bf16.mxu0 0
  %2228 = vmatpush1.bf16.msra.mxu0 0
  %2229 = vmatprep.subr.bf16.mxu0 0
  %2230 = vmatpush1.bf16.msra.mxu0 0
  %2231 = vmatprep.subr.bf16.mxu0 0
  %2232 = vmatpush1.bf16.msra.mxu0 0
  %2233 = vmatprep.subr.bf16.mxu0 0
  %2234 = vmatpush1.bf16.msra.mxu0 0
  %2235 = vmatprep.subr.bf16.mxu0 0
  %2236 = vmatpush1.bf16.msra.mxu0 0
  %2237 = vmatprep.subr.bf16.mxu0 0
  %2238 = vmatpush1.bf16.msra.mxu0 0
  %2239 = vmatprep.subr.bf16.mxu0 0
  %2240 = vmatpush1.bf16.msra.mxu0 0
  %2241 = vmatprep.subr.bf16.mxu0 0
  %2242 = vmatpush1.bf16.msra.mxu0 0
  %2243 = vmatprep.subr.bf16.mxu0 0
  %2244 = vmatpush1.bf16.msra.mxu0 0
  %2245 = vmatprep.subr.bf16.mxu0 0
  %2246 = vmatpush1.bf16.msra.mxu0 0
  %2247 = vmatprep.subr.bf16.mxu0 0
  %2248 = vmatpush1.bf16.msra.mxu0 0
  %2249 = vmatprep.subr.bf16.mxu0 0
  %2250 = vmatpush1.bf16.msra.mxu0 0
  %2251 = vmatprep.subr.bf16.mxu0 0
  %2252 = vmatpush1.bf16.msra.mxu0 0
  %2253 = vmatprep.mubr.bf16.mxu0 0
  %2254 = vmatmul.mubr.bf16.gmra.mrb[0].mxu0 %v2198
  %v2255 = vpop.f32.mrb[0].mxu0
  %v2256 = vadd.f32 %v2182, %v2255
  %v2257 = vpop.f32.mrb[0].mxu0
  %v2258 = vpop.f32.mrb[0].mxu0
  %v2259 = vadd.f32 %v2182, %v2258
  %v2260 = vpop.f32.mrb[0].mxu0
  %2261 = vmatprep.mubr.bf16.mxu0 0
  %2262 = vmatmul.mubr.bf16.gmra.mrb[0].mxu0 %v2201
  %v2263 = vpop.f32.mrb[0].mxu0
  %v2264 = vadd.f32 %v2182, %v2263
  %v2265 = vpop.f32.mrb[0].mxu0
  %v2266 = vpop.f32.mrb[0].mxu0
  %v2267 = vadd.f32 %v2182, %v2266
  %v2268 = vpop.f32.mrb[0].mxu0
  %2269 = vmatprep.mubr.bf16.mxu0 0
  %2270 = vmatmul.mubr.bf16.gmra.mrb[0].mxu0 %v2204
  %v2271 = vpop.f32.mrb[0].mxu0
  %v2272 = vadd.f32 %v2182, %v2271
  %v2273 = vpop.f32.mrb[0].mxu0
  %v2274 = vpop.f32.mrb[0].mxu0
  %v2275 = vadd.f32 %v2182, %v2274
  %v2276 = vpop.f32.mrb[0].mxu0
  %2277 = vmatprep.mubr.bf16.mxu0 0
  %2278 = vmatmul.mubr.bf16.gmra.mrb[0].mxu0 %v2207
  %v2279 = vpop.f32.mrb[0].mxu0
  %v2280 = vadd.f32 %v2182, %v2279
  %v2281 = vpop.f32.mrb[0].mxu0
  %v2282 = vpop.f32.mrb[0].mxu0
  %v2283 = vadd.f32 %v2182, %v2282
  %v2284 = vpop.f32.mrb[0].mxu0
  %2285 = vmatprep.mubr.bf16.mxu0 0
  %2286 = vmatmul.mubr.bf16.gmra.mrb[0].mxu0 %v2210
  %v2287 = vpop.f32.mrb[0].mxu0
  %v2288 = vadd.f32 %v2182, %v2287
  %v2289 = vpop.f32.mrb[0].mxu0
  %v2290 = vpop.f32.mrb[0].mxu0
  %v2291 = vadd.f32 %v2182, %v2290
  %v2292 = vpop.f32.mrb[0].mxu0
  %2293 = vmatprep.mubr.bf16.mxu0 0
  %2294 = vmatmul.mubr.bf16.gmra.mrb[0].mxu0 %v2213
  %v2295 = vpop.f32.mrb[0].mxu0
  %v2296 = vadd.f32 %v2182, %v2295
  %v2297 = vpop.f32.mrb[0].mxu0
  %v2298 = vpop.f32.mrb[0].mxu0
  %v2299 = vadd.f32 %v2182, %v2298
  %v2300 = vpop.f32.mrb[0].mxu0
  %2301 = vmatprep.mubr.bf16.mxu0 0
  %2302 = vmatmul.mubr.bf16.gmra.mrb[0].mxu0 %v2216
  %v2303 = vpop.f32.mrb[0].mxu0
  %v2304 = vadd.f32 %v2182, %v2303
  %v2305 = vpop.f32.mrb[0].mxu0
  %v2306 = vpop.f32.mrb[0].mxu0
  %v2307 = vadd.f32 %v2182, %v2306
  %v2308 = vpop.f32.mrb[0].mxu0
  %2309 = vmatprep.mubr.bf16.mxu0 0
  %2310 = vmatmul.mubr.bf16.gmra.mrb[0].mxu0 %v2219
  %v2311 = vpop.f32.mrb[0].mxu0
  %v2312 = vadd.f32 %v2182, %v2311
  %v2313 = vpop.f32.mrb[0].mxu0
  %v2314 = vpop.f32.mrb[0].mxu0
  %v2315 = vadd.f32 %v2182, %v2314
  %v2316 = vpop.f32.mrb[0].mxu0
  %2317 = vdwg.mxu0
  %2319 = vset.pattern.permute.xlu0 0
  %2320 = vperm.xlu0 %2319, %v231
  %v2321 = vpop.permute.xlu0 %2320
  %2324 = vset.pattern.permute.xlu0 0
  %2325 = vperm.xlu0 %2324, %v232
  %v2326 = vpop.permute.xlu0 %2325
  %2329 = vset.pattern.permute.xlu0 0
  %2330 = vperm.xlu0 %2329, %v233
  %v2331 = vpop.permute.xlu0 %2330
  %2334 = vset.pattern.permute.xlu0 0
  %2335 = vperm.xlu0 %2334, %v234
  %v2336 = vpop.permute.xlu0 %2335
  %2339 = vset.pattern.permute.xlu0 0
  %2340 = vperm.xlu0 %2339, %v235
  %v2341 = vpop.permute.xlu0 %2340
  %2344 = vset.pattern.permute.xlu0 0
  %2345 = vperm.xlu0 %2344, %v236
  %v2346 = vpop.permute.xlu0 %2345
  %2349 = vset.pattern.permute.xlu0 0
  %2350 = vperm.xlu0 %2349, %v237
  %v2351 = vpop.permute.xlu0 %2350
  %2354 = vset.pattern.permute.xlu0 0
  %2355 = vperm.xlu0 %2354, %v238
  %v2356 = vpop.permute.xlu0 %2355
  %2359 = vset.pattern.permute.xlu0 0
  %2360 = vperm.xlu0 %2359, %v239
  %v2361 = vpop.permute.xlu0 %2360
  %2364 = vset.pattern.permute.xlu0 0
  %2365 = vperm.xlu0 %2364, %v240
  %v2366 = vpop.permute.xlu0 %2365
  %2369 = vset.pattern.permute.xlu0 0
  %2370 = vperm.xlu0 %2369, %v241
  %v2371 = vpop.permute.xlu0 %2370
  %2374 = vset.pattern.permute.xlu0 0
  %2375 = vperm.xlu0 %2374, %v242
  %v2376 = vpop.permute.xlu0 %2375
  %2379 = vset.pattern.permute.xlu0 0
  %2380 = vperm.xlu0 %2379, %v243
  %v2381 = vpop.permute.xlu0 %2380
  %2384 = vset.pattern.permute.xlu0 0
  %2385 = vperm.xlu0 %2384, %v244
  %v2386 = vpop.permute.xlu0 %2385
  %2389 = vset.pattern.permute.xlu0 0
  %2390 = vperm.xlu0 %2389, %v245
  %v2391 = vpop.permute.xlu0 %2390
  %2394 = vset.pattern.permute.xlu0 0
  %2395 = vperm.xlu0 %2394, %v246
  %v2396 = vpop.permute.xlu0 %2395
  %v2398 = vmul.f32 %v2321, %v183
  %v2399 = vmul.f32 %v2326, %v184
  %v2400 = vmul.f32 %v2331, %v185
  %v2401 = vmul.f32 %v2336, %v186
  %v2402 = vmul.f32 %v2341, %v187
  %v2403 = vmul.f32 %v2346, %v188
  %v2404 = vmul.f32 %v2351, %v189
  %v2405 = vmul.f32 %v2356, %v190
  %v2406 = vmul.f32 %v2361, %v191
  %v2407 = vmul.f32 %v2366, %v192
  %v2408 = vmul.f32 %v2371, %v193
  %v2409 = vmul.f32 %v2376, %v194
  %v2410 = vmul.f32 %v2381, %v195
  %v2411 = vmul.f32 %v2386, %v196
  %v2412 = vmul.f32 %v2391, %v197
  %v2413 = vmul.f32 %v2396, %v198
  %v2414 = vpack.c.bf16 %v2399, %v2398
  %v2415 = vpack.c.bf16 %v2401, %v2400
  %v2416 = vpack.c.bf16 %v2403, %v2402
  %v2417 = vpack.c.bf16 %v2405, %v2404
  %v2418 = vpack.c.bf16 %v2407, %v2406
  %v2419 = vpack.c.bf16 %v2409, %v2408
  %v2420 = vpack.c.bf16 %v2411, %v2410
  %v2421 = vpack.c.bf16 %v2413, %v2412
  %v2422 = vld [vmem:[%s7] sm:$0xf]
  %v2423 = vld [vmem:[%s7 + $0x4] sm:$0xf]
  %v2424 = vld [vmem:[%s7 + $0x8] sm:$0xf]
  %v2425 = vld [vmem:[%s7 + $0xc] sm:$0xf]
  %v2426 = vld [vmem:[%s7 + $0x10] sm:$0xf]
  %v2427 = vld [vmem:[%s7 + $0x14] sm:$0xf]
  %v2428 = vld [vmem:[%s7 + $0x18] sm:$0xf]
  %v2429 = vld [vmem:[%s7 + $0x1c] sm:$0xf]
  %v2430 = vld [vmem:[%s8] sm:$0x1]
  %v2432 = vlaneseq
  %v2433 = vshrl.u32 %v2432, 7
  %v2434 = vsub.s32 0, %v2433
  %v2435 = vrot.slane %v2430, %v2434
  %v2445 = vunpack.c.l.b16 %v2422
  %v2446 = vunpack.c.l.b16 %v2423
  %v2447 = vunpack.c.l.b16 %v2424
  %v2448 = vunpack.c.l.b16 %v2425
  %v2449 = vunpack.c.l.b16 %v2426
  %v2450 = vunpack.c.l.b16 %v2427
  %v2451 = vunpack.c.l.b16 %v2428
  %v2452 = vunpack.c.l.b16 %v2429
  %v2453 = vpack.c.b16 %v2446, %v2445
  %v2454 = vpack.c.b16 %v2448, %v2447
  %v2455 = vpack.c.b16 %v2450, %v2449
  %v2456 = vpack.c.b16 %v2452, %v2451
  %vm2461 = vcmask 523264
  %v2463 = vsel %vm2461, %v2414, 0
  %v2466 = vsel %vm2461, %v2415, 0
  %v2469 = vsel %vm2461, %v2416, 0
  %v2472 = vsel %vm2461, %v2417, 0
  %v2475 = vsel %vm2461, %v2418, 0
  %v2478 = vsel %vm2461, %v2419, 0
  %v2481 = vsel %vm2461, %v2420, 0
  %v2484 = vsel %vm2461, %v2421, 0
  %2486 = vmatprep.subr.bf16.mxu0 0
  %2487 = vmatpush1.bf16.msra.mxu0 %v2453
  %2488 = vmatprep.subr.bf16.mxu0 0
  %2489 = vmatpush1.bf16.msra.mxu0 %v2454
  %2490 = vmatprep.subr.bf16.mxu0 0
  %2491 = vmatpush1.bf16.msra.mxu0 %v2455
  %2492 = vmatprep.subr.bf16.mxu0 0
  %2493 = vmatpush1.bf16.msra.mxu0 %v2456
  %2494 = vmatprep.subr.bf16.mxu0 0
  %2495 = vmatpush1.bf16.msra.mxu0 0
  %2496 = vmatprep.subr.bf16.mxu0 0
  %2497 = vmatpush1.bf16.msra.mxu0 0
  %2498 = vmatprep.subr.bf16.mxu0 0
  %2499 = vmatpush1.bf16.msra.mxu0 0
  %2500 = vmatprep.subr.bf16.mxu0 0
  %2501 = vmatpush1.bf16.msra.mxu0 0
  %2502 = vmatprep.subr.bf16.mxu0 0
  %2503 = vmatpush1.bf16.msra.mxu0 0
  %2504 = vmatprep.subr.bf16.mxu0 0
  %2505 = vmatpush1.bf16.msra.mxu0 0
  %2506 = vmatprep.subr.bf16.mxu0 0
  %2507 = vmatpush1.bf16.msra.mxu0 0
  %2508 = vmatprep.subr.bf16.mxu0 0
  %2509 = vmatpush1.bf16.msra.mxu0 0
  %2510 = vmatprep.subr.bf16.mxu0 0
  %2511 = vmatpush1.bf16.msra.mxu0 0
  %2512 = vmatprep.subr.bf16.mxu0 0
  %2513 = vmatpush1.bf16.msra.mxu0 0
  %2514 = vmatprep.subr.bf16.mxu0 0
  %2515 = vmatpush1.bf16.msra.mxu0 0
  %2516 = vmatprep.subr.bf16.mxu0 0
  %2517 = vmatpush1.bf16.msra.mxu0 0
  %2518 = vmatprep.mubr.bf16.mxu0 0
  %2519 = vmatmul.mubr.bf16.gmra.mrb[0].mxu0 %v2463
  %v2520 = vpop.f32.mrb[0].mxu0
  %v2521 = vadd.f32 %v2435, %v2520
  %v2522 = vpop.f32.mrb[0].mxu0
  %v2523 = vpop.f32.mrb[0].mxu0
  %v2524 = vadd.f32 %v2435, %v2523
  %v2525 = vpop.f32.mrb[0].mxu0
  %2526 = vmatprep.mubr.bf16.mxu0 0
  %2527 = vmatmul.mubr.bf16.gmra.mrb[0].mxu0 %v2466
  %v2528 = vpop.f32.mrb[0].mxu0
  %v2529 = vadd.f32 %v2435, %v2528
  %v2530 = vpop.f32.mrb[0].mxu0
  %v2531 = vpop.f32.mrb[0].mxu0
  %v2532 = vadd.f32 %v2435, %v2531
  %v2533 = vpop.f32.mrb[0].mxu0
  %2534 = vmatprep.mubr.bf16.mxu0 0
  %2535 = vmatmul.mubr.bf16.gmra.mrb[0].mxu0 %v2469
  %v2536 = vpop.f32.mrb[0].mxu0
  %v2537 = vadd.f32 %v2435, %v2536
  %v2538 = vpop.f32.mrb[0].mxu0
  %v2539 = vpop.f32.mrb[0].mxu0
  %v2540 = vadd.f32 %v2435, %v2539
  %v2541 = vpop.f32.mrb[0].mxu0
  %2542 = vmatprep.mubr.bf16.mxu0 0
  %2543 = vmatmul.mubr.bf16.gmra.mrb[0].mxu0 %v2472
  %v2544 = vpop.f32.mrb[0].mxu0
  %v2545 = vadd.f32 %v2435, %v2544
  %v2546 = vpop.f32.mrb[0].mxu0
  %v2547 = vpop.f32.mrb[0].mxu0
  %v2548 = vadd.f32 %v2435, %v2547
  %v2549 = vpop.f32.mrb[0].mxu0
  %2550 = vmatprep.mubr.bf16.mxu0 0
  %2551 = vmatmul.mubr.bf16.gmra.mrb[0].mxu0 %v2475
  %v2552 = vpop.f32.mrb[0].mxu0
  %v2553 = vadd.f32 %v2435, %v2552
  %v2554 = vpop.f32.mrb[0].mxu0
  %v2555 = vpop.f32.mrb[0].mxu0
  %v2556 = vadd.f32 %v2435, %v2555
  %v2557 = vpop.f32.mrb[0].mxu0
  %2558 = vmatprep.mubr.bf16.mxu0 0
  %2559 = vmatmul.mubr.bf16.gmra.mrb[0].mxu0 %v2478
  %v2560 = vpop.f32.mrb[0].mxu0
  %v2561 = vadd.f32 %v2435, %v2560
  %v2562 = vpop.f32.mrb[0].mxu0
  %v2563 = vpop.f32.mrb[0].mxu0
  %v2564 = vadd.f32 %v2435, %v2563
  %v2565 = vpop.f32.mrb[0].mxu0
  %2566 = vmatprep.mubr.bf16.mxu0 0
  %2567 = vmatmul.mubr.bf16.gmra.mrb[0].mxu0 %v2481
  %v2568 = vpop.f32.mrb[0].mxu0
  %v2569 = vadd.f32 %v2435, %v2568
  %v2570 = vpop.f32.mrb[0].mxu0
  %v2571 = vpop.f32.mrb[0].mxu0
  %v2572 = vadd.f32 %v2435, %v2571
  %v2573 = vpop.f32.mrb[0].mxu0
  %2574 = vmatprep.mubr.bf16.mxu0 0
  %2575 = vmatmul.mubr.bf16.gmra.mrb[0].mxu0 %v2484
  %v2576 = vpop.f32.mrb[0].mxu0
  %v2577 = vadd.f32 %v2435, %v2576
  %v2578 = vpop.f32.mrb[0].mxu0
  %v2579 = vpop.f32.mrb[0].mxu0
  %v2580 = vadd.f32 %v2435, %v2579
  %v2581 = vpop.f32.mrb[0].mxu0
  %2582 = vdwg.mxu0
  %v2583 = vadd.f32 %v2521, %v2256
  %v2584 = vadd.f32 %v2524, %v2259
  %v2585 = vadd.f32 %v2529, %v2264
  %v2586 = vadd.f32 %v2532, %v2267
  %v2587 = vadd.f32 %v2537, %v2272
  %v2588 = vadd.f32 %v2540, %v2275
  %v2589 = vadd.f32 %v2545, %v2280
  %v2590 = vadd.f32 %v2548, %v2283
  %v2591 = vadd.f32 %v2553, %v2288
  %v2592 = vadd.f32 %v2556, %v2291
  %v2593 = vadd.f32 %v2561, %v2296
  %v2594 = vadd.f32 %v2564, %v2299
  %v2595 = vadd.f32 %v2569, %v2304
  %v2596 = vadd.f32 %v2572, %v2307
  %v2597 = vadd.f32 %v2577, %v2312
  %v2598 = vadd.f32 %v2580, %v2315
  %v2599 = vmul.f32 %v2583, 0.5
  %v2600 = vmul.f32 %v2584, 0.5
  %v2601 = vmul.f32 %v2585, 0.5
  %v2602 = vmul.f32 %v2586, 0.5
  %v2603 = vmul.f32 %v2587, 0.5
  %v2604 = vmul.f32 %v2588, 0.5
  %v2605 = vmul.f32 %v2589, 0.5
  %v2606 = vmul.f32 %v2590, 0.5
  %v2607 = vmul.f32 %v2591, 0.5
  %v2608 = vmul.f32 %v2592, 0.5
  %v2609 = vmul.f32 %v2593, 0.5
  %v2610 = vmul.f32 %v2594, 0.5
  %v2611 = vmul.f32 %v2595, 0.5
  %v2612 = vmul.f32 %v2596, 0.5
  %v2613 = vmul.f32 %v2597, 0.5
  %v2614 = vmul.f32 %v2598, 0.5
  %v2615 = vmul.f32 %v2583, 0.044715
  %v2616 = vmul.f32 %v2584, 0.044715
  %v2617 = vmul.f32 %v2585, 0.044715
  %v2618 = vmul.f32 %v2586, 0.044715
  %v2619 = vmul.f32 %v2587, 0.044715
  %v2620 = vmul.f32 %v2588, 0.044715
  %v2621 = vmul.f32 %v2589, 0.044715
  %v2622 = vmul.f32 %v2590, 0.044715
  %v2623 = vmul.f32 %v2591, 0.044715
  %v2624 = vmul.f32 %v2592, 0.044715
  %v2625 = vmul.f32 %v2593, 0.044715
  %v2626 = vmul.f32 %v2594, 0.044715
  %v2627 = vmul.f32 %v2595, 0.044715
  %v2628 = vmul.f32 %v2596, 0.044715
  %v2629 = vmul.f32 %v2597, 0.044715
  %v2630 = vmul.f32 %v2598, 0.044715
  %v2631 = vmul.f32 %v2615, %v2583
  %v2632 = vmul.f32 %v2616, %v2584
  %v2633 = vmul.f32 %v2617, %v2585
  %v2634 = vmul.f32 %v2618, %v2586
  %v2635 = vmul.f32 %v2619, %v2587
  %v2636 = vmul.f32 %v2620, %v2588
  %v2637 = vmul.f32 %v2621, %v2589
  %v2638 = vmul.f32 %v2622, %v2590
  %v2639 = vmul.f32 %v2623, %v2591
  %v2640 = vmul.f32 %v2624, %v2592
  %v2641 = vmul.f32 %v2625, %v2593
  %v2642 = vmul.f32 %v2626, %v2594
  %v2643 = vmul.f32 %v2627, %v2595
  %v2644 = vmul.f32 %v2628, %v2596
  %v2645 = vmul.f32 %v2629, %v2597
  %v2646 = vmul.f32 %v2630, %v2598
  %v2647 = vmul.f32 %v2631, %v2583
  %v2648 = vmul.f32 %v2632, %v2584
  %v2649 = vmul.f32 %v2633, %v2585
  %v2650 = vmul.f32 %v2634, %v2586
  %v2651 = vmul.f32 %v2635, %v2587
  %v2652 = vmul.f32 %v2636, %v2588
  %v2653 = vmul.f32 %v2637, %v2589
  %v2654 = vmul.f32 %v2638, %v2590
  %v2655 = vmul.f32 %v2639, %v2591
  %v2656 = vmul.f32 %v2640, %v2592
  %v2657 = vmul.f32 %v2641, %v2593
  %v2658 = vmul.f32 %v2642, %v2594
  %v2659 = vmul.f32 %v2643, %v2595
  %v2660 = vmul.f32 %v2644, %v2596
  %v2661 = vmul.f32 %v2645, %v2597
  %v2662 = vmul.f32 %v2646, %v2598
  %v2663 = vadd.f32 %v2583, %v2647
  %v2664 = vadd.f32 %v2584, %v2648
  %v2665 = vadd.f32 %v2585, %v2649
  %v2666 = vadd.f32 %v2586, %v2650
  %v2667 = vadd.f32 %v2587, %v2651
  %v2668 = vadd.f32 %v2588, %v2652
  %v2669 = vadd.f32 %v2589, %v2653
  %v2670 = vadd.f32 %v2590, %v2654
  %v2671 = vadd.f32 %v2591, %v2655
  %v2672 = vadd.f32 %v2592, %v2656
  %v2673 = vadd.f32 %v2593, %v2657
  %v2674 = vadd.f32 %v2594, %v2658
  %v2675 = vadd.f32 %v2595, %v2659
  %v2676 = vadd.f32 %v2596, %v2660
  %v2677 = vadd.f32 %v2597, %v2661
  %v2678 = vadd.f32 %v2598, %v2662
  %v2679 = vmul.f32 %v2663, 0.7978846
  %v2680 = vmul.f32 %v2664, 0.7978846
  %v2681 = vmul.f32 %v2665, 0.7978846
  %v2682 = vmul.f32 %v2666, 0.7978846
  %v2683 = vmul.f32 %v2667, 0.7978846
  %v2684 = vmul.f32 %v2668, 0.7978846
  %v2685 = vmul.f32 %v2669, 0.7978846
  %v2686 = vmul.f32 %v2670, 0.7978846
  %v2687 = vmul.f32 %v2671, 0.7978846
  %v2688 = vmul.f32 %v2672, 0.7978846
  %v2689 = vmul.f32 %v2673, 0.7978846
  %v2690 = vmul.f32 %v2674, 0.7978846
  %v2691 = vmul.f32 %v2675, 0.7978846
  %v2692 = vmul.f32 %v2676, 0.7978846
  %v2693 = vmul.f32 %v2677, 0.7978846
  %v2694 = vmul.f32 %v2678, 0.7978846
  %v2695 = vtanh.pop %v2679
  %v2696 = vtanh.pop %v2680
  %v2697 = vtanh.pop %v2681
  %v2698 = vtanh.pop %v2682
  %v2699 = vtanh.pop %v2683
  %v2700 = vtanh.pop %v2684
  %v2701 = vtanh.pop %v2685
  %v2702 = vtanh.pop %v2686
  %v2703 = vtanh.pop %v2687
  %v2704 = vtanh.pop %v2688
  %v2705 = vtanh.pop %v2689
  %v2706 = vtanh.pop %v2690
  %v2707 = vtanh.pop %v2691
  %v2708 = vtanh.pop %v2692
  %v2709 = vtanh.pop %v2693
  %v2710 = vtanh.pop %v2694
  %v2711 = vadd.f32 %v2695, 1.0
  %v2712 = vadd.f32 %v2696, 1.0
  %v2713 = vadd.f32 %v2697, 1.0
  %v2714 = vadd.f32 %v2698, 1.0
  %v2715 = vadd.f32 %v2699, 1.0
  %v2716 = vadd.f32 %v2700, 1.0
  %v2717 = vadd.f32 %v2701, 1.0
  %v2718 = vadd.f32 %v2702, 1.0
  %v2719 = vadd.f32 %v2703, 1.0
  %v2720 = vadd.f32 %v2704, 1.0
  %v2721 = vadd.f32 %v2705, 1.0
  %v2722 = vadd.f32 %v2706, 1.0
  %v2723 = vadd.f32 %v2707, 1.0
  %v2724 = vadd.f32 %v2708, 1.0
  %v2725 = vadd.f32 %v2709, 1.0
  %v2726 = vadd.f32 %v2710, 1.0
  %v2727 = vmul.f32 %v2599, %v2711
  %v2728 = vmul.f32 %v2600, %v2712
  %v2729 = vmul.f32 %v2601, %v2713
  %v2730 = vmul.f32 %v2602, %v2714
  %v2731 = vmul.f32 %v2603, %v2715
  %v2732 = vmul.f32 %v2604, %v2716
  %v2733 = vmul.f32 %v2605, %v2717
  %v2734 = vmul.f32 %v2606, %v2718
  %v2735 = vmul.f32 %v2607, %v2719
  %v2736 = vmul.f32 %v2608, %v2720
  %v2737 = vmul.f32 %v2609, %v2721
  %v2738 = vmul.f32 %v2610, %v2722
  %v2739 = vmul.f32 %v2611, %v2723
  %v2740 = vmul.f32 %v2612, %v2724
  %v2741 = vmul.f32 %v2613, %v2725
  %v2742 = vmul.f32 %v2614, %v2726
  %v2743 = vpack.c.bf16 %v2728, %v2727
  %v2744 = vpack.c.bf16 %v2730, %v2729
  %v2745 = vpack.c.bf16 %v2732, %v2731
  %v2746 = vpack.c.bf16 %v2734, %v2733
  %v2747 = vpack.c.bf16 %v2736, %v2735
  %v2748 = vpack.c.bf16 %v2738, %v2737
  %v2749 = vpack.c.bf16 %v2740, %v2739
  %v2750 = vpack.c.bf16 %v2742, %v2741
  %v2751 = vld [vmem:[%s9] sm:$0xf]
  %v2752 = vld [vmem:[%s9 + $0x4] sm:$0xf]
  %v2753 = vld [vmem:[%s9 + $0x8] sm:$0xf]
  %v2754 = vld [vmem:[%s9 + $0xc] sm:$0xf]
  %v2755 = vld [vmem:[%s9 + $0x10] sm:$0xf]
  %v2756 = vld [vmem:[%s9 + $0x14] sm:$0xf]
  %v2757 = vld [vmem:[%s9 + $0x18] sm:$0xf]
  %v2758 = vld [vmem:[%s9 + $0x1c] sm:$0xf]
  %v2759 = vld [vmem:[%s9 + $0x20] sm:$0xf]
  %v2760 = vld [vmem:[%s9 + $0x24] sm:$0xf]
  %v2761 = vld [vmem:[%s9 + $0x28] sm:$0xf]
  %v2762 = vld [vmem:[%s9 + $0x2c] sm:$0xf]
  %v2763 = vld [vmem:[%s9 + $0x30] sm:$0xf]
  %v2764 = vld [vmem:[%s9 + $0x34] sm:$0xf]
  %v2765 = vld [vmem:[%s9 + $0x38] sm:$0xf]
  %v2766 = vld [vmem:[%s9 + $0x3c] sm:$0xf]
  %v2767 = vld [vmem:[%s10] sm:$0x1]
  %v2769 = vlaneseq
  %v2770 = vshrl.u32 %v2769, 7
  %v2771 = vsub.s32 0, %v2770
  %v2772 = vrot.slane %v2767, %v2771
  %v2790 = vunpack.c.l.b16 %v2751
  %v2791 = vunpack.c.l.b16 %v2752
  %v2792 = vunpack.c.l.b16 %v2753
  %v2793 = vunpack.c.l.b16 %v2754
  %v2794 = vunpack.c.l.b16 %v2755
  %v2795 = vunpack.c.l.b16 %v2756
  %v2796 = vunpack.c.l.b16 %v2757
  %v2797 = vunpack.c.l.b16 %v2758
  %v2798 = vunpack.c.l.b16 %v2759
  %v2799 = vunpack.c.l.b16 %v2760
  %v2800 = vunpack.c.l.b16 %v2761
  %v2801 = vunpack.c.l.b16 %v2762
  %v2802 = vunpack.c.l.b16 %v2763
  %v2803 = vunpack.c.l.b16 %v2764
  %v2804 = vunpack.c.l.b16 %v2765
  %v2805 = vunpack.c.l.b16 %v2766
  %v2806 = vpack.c.b16 %v2791, %v2790
  %v2807 = vpack.c.b16 %v2793, %v2792
  %v2808 = vpack.c.b16 %v2795, %v2794
  %v2809 = vpack.c.b16 %v2797, %v2796
  %v2810 = vpack.c.b16 %v2799, %v2798
  %v2811 = vpack.c.b16 %v2801, %v2800
  %v2812 = vpack.c.b16 %v2803, %v2802
  %v2813 = vpack.c.b16 %v2805, %v2804
  %2822 = vmatprep.subr.bf16.mxu0 0
  %2823 = vmatpush1.bf16.msra.mxu0 %v2806
  %2824 = vmatprep.subr.bf16.mxu0 0
  %2825 = vmatpush1.bf16.msra.mxu0 %v2807
  %2826 = vmatprep.subr.bf16.mxu0 0
  %2827 = vmatpush1.bf16.msra.mxu0 %v2808
  %2828 = vmatprep.subr.bf16.mxu0 0
  %2829 = vmatpush1.bf16.msra.mxu0 %v2809
  %2830 = vmatprep.subr.bf16.mxu0 0
  %2831 = vmatpush1.bf16.msra.mxu0 %v2810
  %2832 = vmatprep.subr.bf16.mxu0 0
  %2833 = vmatpush1.bf16.msra.mxu0 %v2811
  %2834 = vmatprep.subr.bf16.mxu0 0
  %2835 = vmatpush1.bf16.msra.mxu0 %v2812
  %2836 = vmatprep.subr.bf16.mxu0 0
  %2837 = vmatpush1.bf16.msra.mxu0 %v2813
  %2838 = vmatprep.subr.bf16.mxu0 0
  %2839 = vmatpush1.bf16.msra.mxu0 0
  %2840 = vmatprep.subr.bf16.mxu0 0
  %2841 = vmatpush1.bf16.msra.mxu0 0
  %2842 = vmatprep.subr.bf16.mxu0 0
  %2843 = vmatpush1.bf16.msra.mxu0 0
  %2844 = vmatprep.subr.bf16.mxu0 0
  %2845 = vmatpush1.bf16.msra.mxu0 0
  %2846 = vmatprep.subr.bf16.mxu0 0
  %2847 = vmatpush1.bf16.msra.mxu0 0
  %2848 = vmatprep.subr.bf16.mxu0 0
  %2849 = vmatpush1.bf16.msra.mxu0 0
  %2850 = vmatprep.subr.bf16.mxu0 0
  %2851 = vmatpush1.bf16.msra.mxu0 0
  %2852 = vmatprep.subr.bf16.mxu0 0
  %2853 = vmatpush1.bf16.msra.mxu0 0
  %2854 = vmatprep.mubr.bf16.mxu0 0
  %2855 = vmatmul.mubr.bf16.gmra.mrb[0].mxu0 %v2743
  %v2856 = vpop.f32.mrb[0].mxu0
  %v2857 = vadd.f32 %v2772, %v2856
  %v2858 = vpop.f32.mrb[0].mxu0
  %v2859 = vpop.f32.mrb[0].mxu0
  %v2860 = vadd.f32 %v2772, %v2859
  %v2861 = vpop.f32.mrb[0].mxu0
  %2862 = vmatprep.mubr.bf16.mxu0 0
  %2863 = vmatmul.mubr.bf16.gmra.mrb[0].mxu0 %v2744
  %v2864 = vpop.f32.mrb[0].mxu0
  %v2865 = vadd.f32 %v2772, %v2864
  %v2866 = vpop.f32.mrb[0].mxu0
  %v2867 = vpop.f32.mrb[0].mxu0
  %v2868 = vadd.f32 %v2772, %v2867
  %v2869 = vpop.f32.mrb[0].mxu0
  %2870 = vmatprep.mubr.bf16.mxu0 0
  %2871 = vmatmul.mubr.bf16.gmra.mrb[0].mxu0 %v2745
  %v2872 = vpop.f32.mrb[0].mxu0
  %v2873 = vadd.f32 %v2772, %v2872
  %v2874 = vpop.f32.mrb[0].mxu0
  %v2875 = vpop.f32.mrb[0].mxu0
  %v2876 = vadd.f32 %v2772, %v2875
  %v2877 = vpop.f32.mrb[0].mxu0
  %2878 = vmatprep.mubr.bf16.mxu0 0
  %2879 = vmatmul.mubr.bf16.gmra.mrb[0].mxu0 %v2746
  %v2880 = vpop.f32.mrb[0].mxu0
  %v2881 = vadd.f32 %v2772, %v2880
  %v2882 = vpop.f32.mrb[0].mxu0
  %v2883 = vpop.f32.mrb[0].mxu0
  %v2884 = vadd.f32 %v2772, %v2883
  %v2885 = vpop.f32.mrb[0].mxu0
  %2886 = vmatprep.mubr.bf16.mxu0 0
  %2887 = vmatmul.mubr.bf16.gmra.mrb[0].mxu0 %v2747
  %v2888 = vpop.f32.mrb[0].mxu0
  %v2889 = vadd.f32 %v2772, %v2888
  %v2890 = vpop.f32.mrb[0].mxu0
  %v2891 = vpop.f32.mrb[0].mxu0
  %v2892 = vadd.f32 %v2772, %v2891
  %v2893 = vpop.f32.mrb[0].mxu0
  %2894 = vmatprep.mubr.bf16.mxu0 0
  %2895 = vmatmul.mubr.bf16.gmra.mrb[0].mxu0 %v2748
  %v2896 = vpop.f32.mrb[0].mxu0
  %v2897 = vadd.f32 %v2772, %v2896
  %v2898 = vpop.f32.mrb[0].mxu0
  %v2899 = vpop.f32.mrb[0].mxu0
  %v2900 = vadd.f32 %v2772, %v2899
  %v2901 = vpop.f32.mrb[0].mxu0
  %2902 = vmatprep.mubr.bf16.mxu0 0
  %2903 = vmatmul.mubr.bf16.gmra.mrb[0].mxu0 %v2749
  %v2904 = vpop.f32.mrb[0].mxu0
  %v2905 = vadd.f32 %v2772, %v2904
  %v2906 = vpop.f32.mrb[0].mxu0
  %v2907 = vpop.f32.mrb[0].mxu0
  %v2908 = vadd.f32 %v2772, %v2907
  %v2909 = vpop.f32.mrb[0].mxu0
  %2910 = vmatprep.mubr.bf16.mxu0 0
  %2911 = vmatmul.mubr.bf16.gmra.mrb[0].mxu0 %v2750
  %v2912 = vpop.f32.mrb[0].mxu0
  %v2913 = vadd.f32 %v2772, %v2912
  %v2914 = vpop.f32.mrb[0].mxu0
  %v2915 = vpop.f32.mrb[0].mxu0
  %v2916 = vadd.f32 %v2772, %v2915
  %v2917 = vpop.f32.mrb[0].mxu0
  %2918 = vdwg.mxu0
  %2920 = vset.pattern.permute.xlu0 0
  %2921 = vperm.xlu0 %2920, %v263
  %v2922 = vpop.permute.xlu0 %2921
  %2925 = vset.pattern.permute.xlu0 0
  %2926 = vperm.xlu0 %2925, %v264
  %v2927 = vpop.permute.xlu0 %2926
  %2930 = vset.pattern.permute.xlu0 0
  %2931 = vperm.xlu0 %2930, %v265
  %v2932 = vpop.permute.xlu0 %2931
  %2935 = vset.pattern.permute.xlu0 0
  %2936 = vperm.xlu0 %2935, %v266
  %v2937 = vpop.permute.xlu0 %2936
  %2940 = vset.pattern.permute.xlu0 0
  %2941 = vperm.xlu0 %2940, %v267
  %v2942 = vpop.permute.xlu0 %2941
  %2945 = vset.pattern.permute.xlu0 0
  %2946 = vperm.xlu0 %2945, %v268
  %v2947 = vpop.permute.xlu0 %2946
  %2950 = vset.pattern.permute.xlu0 0
  %2951 = vperm.xlu0 %2950, %v269
  %v2952 = vpop.permute.xlu0 %2951
  %2955 = vset.pattern.permute.xlu0 0
  %2956 = vperm.xlu0 %2955, %v270
  %v2957 = vpop.permute.xlu0 %2956
  %2960 = vset.pattern.permute.xlu0 0
  %2961 = vperm.xlu0 %2960, %v271
  %v2962 = vpop.permute.xlu0 %2961
  %2965 = vset.pattern.permute.xlu0 0
  %2966 = vperm.xlu0 %2965, %v272
  %v2967 = vpop.permute.xlu0 %2966
  %2970 = vset.pattern.permute.xlu0 0
  %2971 = vperm.xlu0 %2970, %v273
  %v2972 = vpop.permute.xlu0 %2971
  %2975 = vset.pattern.permute.xlu0 0
  %2976 = vperm.xlu0 %2975, %v274
  %v2977 = vpop.permute.xlu0 %2976
  %2980 = vset.pattern.permute.xlu0 0
  %2981 = vperm.xlu0 %2980, %v275
  %v2982 = vpop.permute.xlu0 %2981
  %2985 = vset.pattern.permute.xlu0 0
  %2986 = vperm.xlu0 %2985, %v276
  %v2987 = vpop.permute.xlu0 %2986
  %2990 = vset.pattern.permute.xlu0 0
  %2991 = vperm.xlu0 %2990, %v277
  %v2992 = vpop.permute.xlu0 %2991
  %2995 = vset.pattern.permute.xlu0 0
  %2996 = vperm.xlu0 %2995, %v278
  %v2997 = vpop.permute.xlu0 %2996
  %v2999 = vmul.f32 %v2922, %v183
  %v3000 = vmul.f32 %v2927, %v184
  %v3001 = vmul.f32 %v2932, %v185
  %v3002 = vmul.f32 %v2937, %v186
  %v3003 = vmul.f32 %v2942, %v187
  %v3004 = vmul.f32 %v2947, %v188
  %v3005 = vmul.f32 %v2952, %v189
  %v3006 = vmul.f32 %v2957, %v190
  %v3007 = vmul.f32 %v2962, %v191
  %v3008 = vmul.f32 %v2967, %v192
  %v3009 = vmul.f32 %v2972, %v193
  %v3010 = vmul.f32 %v2977, %v194
  %v3011 = vmul.f32 %v2982, %v195
  %v3012 = vmul.f32 %v2987, %v196
  %v3013 = vmul.f32 %v2992, %v197
  %v3014 = vmul.f32 %v2997, %v198
  %3016 = vset.pattern.permute.xlu0 0
  %3017 = vperm.xlu0 %3016, %v295
  %v3018 = vpop.permute.xlu0 %3017
  %3021 = vset.pattern.permute.xlu0 0
  %3022 = vperm.xlu0 %3021, %v296
  %v3023 = vpop.permute.xlu0 %3022
  %3026 = vset.pattern.permute.xlu0 0
  %3027 = vperm.xlu0 %3026, %v297
  %v3028 = vpop.permute.xlu0 %3027
  %3031 = vset.pattern.permute.xlu0 0
  %3032 = vperm.xlu0 %3031, %v298
  %v3033 = vpop.permute.xlu0 %3032
  %3036 = vset.pattern.permute.xlu0 0
  %3037 = vperm.xlu0 %3036, %v299
  %v3038 = vpop.permute.xlu0 %3037
  %3041 = vset.pattern.permute.xlu0 0
  %3042 = vperm.xlu0 %3041, %v300
  %v3043 = vpop.permute.xlu0 %3042
  %3046 = vset.pattern.permute.xlu0 0
  %3047 = vperm.xlu0 %3046, %v301
  %v3048 = vpop.permute.xlu0 %3047
  %3051 = vset.pattern.permute.xlu0 0
  %3052 = vperm.xlu0 %3051, %v302
  %v3053 = vpop.permute.xlu0 %3052
  %3056 = vset.pattern.permute.xlu0 0
  %3057 = vperm.xlu0 %3056, %v303
  %v3058 = vpop.permute.xlu0 %3057
  %3061 = vset.pattern.permute.xlu0 0
  %3062 = vperm.xlu0 %3061, %v304
  %v3063 = vpop.permute.xlu0 %3062
  %3066 = vset.pattern.permute.xlu0 0
  %3067 = vperm.xlu0 %3066, %v305
  %v3068 = vpop.permute.xlu0 %3067
  %3071 = vset.pattern.permute.xlu0 0
  %3072 = vperm.xlu0 %3071, %v306
  %v3073 = vpop.permute.xlu0 %3072
  %3076 = vset.pattern.permute.xlu0 0
  %3077 = vperm.xlu0 %3076, %v307
  %v3078 = vpop.permute.xlu0 %3077
  %3081 = vset.pattern.permute.xlu0 0
  %3082 = vperm.xlu0 %3081, %v308
  %v3083 = vpop.permute.xlu0 %3082
  %3086 = vset.pattern.permute.xlu0 0
  %3087 = vperm.xlu0 %3086, %v309
  %v3088 = vpop.permute.xlu0 %3087
  %3091 = vset.pattern.permute.xlu0 0
  %3092 = vperm.xlu0 %3091, %v310
  %v3093 = vpop.permute.xlu0 %3092
  %v3095 = vmul.f32 %v3018, %v2857
  %v3096 = vmul.f32 %v3023, %v2860
  %v3097 = vmul.f32 %v3028, %v2865
  %v3098 = vmul.f32 %v3033, %v2868
  %v3099 = vmul.f32 %v3038, %v2873
  %v3100 = vmul.f32 %v3043, %v2876
  %v3101 = vmul.f32 %v3048, %v2881
  %v3102 = vmul.f32 %v3053, %v2884
  %v3103 = vmul.f32 %v3058, %v2889
  %v3104 = vmul.f32 %v3063, %v2892
  %v3105 = vmul.f32 %v3068, %v2897
  %v3106 = vmul.f32 %v3073, %v2900
  %v3107 = vmul.f32 %v3078, %v2905
  %v3108 = vmul.f32 %v3083, %v2908
  %v3109 = vmul.f32 %v3088, %v2913
  %v3110 = vmul.f32 %v3093, %v2916
  %v3111 = vadd.f32 %v2999, %v3095
  %v3112 = vadd.f32 %v3000, %v3096
  %v3113 = vadd.f32 %v3001, %v3097
  %v3114 = vadd.f32 %v3002, %v3098
  %v3115 = vadd.f32 %v3003, %v3099
  %v3116 = vadd.f32 %v3004, %v3100
  %v3117 = vadd.f32 %v3005, %v3101
  %v3118 = vadd.f32 %v3006, %v3102
  %v3119 = vadd.f32 %v3007, %v3103
  %v3120 = vadd.f32 %v3008, %v3104
  %v3121 = vadd.f32 %v3009, %v3105
  %v3122 = vadd.f32 %v3010, %v3106
  %v3123 = vadd.f32 %v3011, %v3107
  %v3124 = vadd.f32 %v3012, %v3108
  %v3125 = vadd.f32 %v3013, %v3109
  %v3126 = vadd.f32 %v3014, %v3110
  %v3127 = vsub.f32 %v3111, %v39
  %v3128 = vsub.f32 %v3112, %v40
  %v3129 = vsub.f32 %v3113, %v41
  %v3130 = vsub.f32 %v3114, %v42
  %v3131 = vsub.f32 %v3115, %v43
  %v3132 = vsub.f32 %v3116, %v44
  %v3133 = vsub.f32 %v3117, %v45
  %v3134 = vsub.f32 %v3118, %v46
  %v3135 = vsub.f32 %v3119, %v47
  %v3136 = vsub.f32 %v3120, %v48
  %v3137 = vsub.f32 %v3121, %v49
  %v3138 = vsub.f32 %v3122, %v50
  %v3139 = vsub.f32 %v3123, %v51
  %v3140 = vsub.f32 %v3124, %v52
  %v3141 = vsub.f32 %v3125, %v53
  %v3142 = vsub.f32 %v3126, %v54
  %v3143 = vmul.f32 %v3127, %v3127
  %v3144 = vmul.f32 %v3128, %v3128
  %v3145 = vmul.f32 %v3129, %v3129
  %v3146 = vmul.f32 %v3130, %v3130
  %v3147 = vmul.f32 %v3131, %v3131
  %v3148 = vmul.f32 %v3132, %v3132
  %v3149 = vmul.f32 %v3133, %v3133
  %v3150 = vmul.f32 %v3134, %v3134
  %v3151 = vmul.f32 %v3135, %v3135
  %v3152 = vmul.f32 %v3136, %v3136
  %v3153 = vmul.f32 %v3137, %v3137
  %v3154 = vmul.f32 %v3138, %v3138
  %v3155 = vmul.f32 %v3139, %v3139
  %v3156 = vmul.f32 %v3140, %v3140
  %v3157 = vmul.f32 %v3141, %v3141
  %v3158 = vmul.f32 %v3142, %v3142
  %v3159 = vsel %vm2461, %v3143, 0.0
  %3160 = vadd.xlane.f32.xlu0 %v3159
  %v3161 = vpop.xlane.xlu0 %3160
  %v3162 = vsel %vm2461, %v3144, 0.0
  %3163 = vadd.xlane.f32.xlu0 %v3162
  %v3164 = vpop.xlane.xlu0 %3163
  %v3165 = vsel %vm2461, %v3145, 0.0
  %3166 = vadd.xlane.f32.xlu0 %v3165
  %v3167 = vpop.xlane.xlu0 %3166
  %v3168 = vsel %vm2461, %v3146, 0.0
  %3169 = vadd.xlane.f32.xlu0 %v3168
  %v3170 = vpop.xlane.xlu0 %3169
  %v3171 = vsel %vm2461, %v3147, 0.0
  %3172 = vadd.xlane.f32.xlu0 %v3171
  %v3173 = vpop.xlane.xlu0 %3172
  %v3174 = vsel %vm2461, %v3148, 0.0
  %3175 = vadd.xlane.f32.xlu0 %v3174
  %v3176 = vpop.xlane.xlu0 %3175
  %v3177 = vsel %vm2461, %v3149, 0.0
  %3178 = vadd.xlane.f32.xlu0 %v3177
  %v3179 = vpop.xlane.xlu0 %3178
  %v3180 = vsel %vm2461, %v3150, 0.0
  %3181 = vadd.xlane.f32.xlu0 %v3180
  %v3182 = vpop.xlane.xlu0 %3181
  %v3183 = vsel %vm2461, %v3151, 0.0
  %3184 = vadd.xlane.f32.xlu0 %v3183
  %v3185 = vpop.xlane.xlu0 %3184
  %v3186 = vsel %vm2461, %v3152, 0.0
  %3187 = vadd.xlane.f32.xlu0 %v3186
  %v3188 = vpop.xlane.xlu0 %3187
  %v3189 = vsel %vm2461, %v3153, 0.0
  %3190 = vadd.xlane.f32.xlu0 %v3189
  %v3191 = vpop.xlane.xlu0 %3190
  %v3192 = vsel %vm2461, %v3154, 0.0
  %3193 = vadd.xlane.f32.xlu0 %v3192
  %v3194 = vpop.xlane.xlu0 %3193
  %v3195 = vsel %vm2461, %v3155, 0.0
  %3196 = vadd.xlane.f32.xlu0 %v3195
  %v3197 = vpop.xlane.xlu0 %3196
  %v3198 = vsel %vm2461, %v3156, 0.0
  %3199 = vadd.xlane.f32.xlu0 %v3198
  %v3200 = vpop.xlane.xlu0 %3199
  %v3201 = vsel %vm2461, %v3157, 0.0
  %3202 = vadd.xlane.f32.xlu0 %v3201
  %v3203 = vpop.xlane.xlu0 %3202
  %v3204 = vsel %vm2461, %v3158, 0.0
  %3205 = vadd.xlane.f32.xlu0 %v3204
  %v3206 = vpop.xlane.xlu0 %3205
  %v3207 = vmul.f32 %v3161, 0.015625
  %v3208 = vmul.f32 %v3164, 0.015625
  %v3209 = vmul.f32 %v3167, 0.015625
  %v3210 = vmul.f32 %v3170, 0.015625
  %v3211 = vmul.f32 %v3173, 0.015625
  %v3212 = vmul.f32 %v3176, 0.015625
  %v3213 = vmul.f32 %v3179, 0.015625
  %v3214 = vmul.f32 %v3182, 0.015625
  %v3215 = vmul.f32 %v3185, 0.015625
  %v3216 = vmul.f32 %v3188, 0.015625
  %v3217 = vmul.f32 %v3191, 0.015625
  %v3218 = vmul.f32 %v3194, 0.015625
  %v3219 = vmul.f32 %v3197, 0.015625
  %v3220 = vmul.f32 %v3200, 0.015625
  %v3221 = vmul.f32 %v3203, 0.015625
  %v3222 = vmul.f32 %v3206, 0.015625
  %v3223 = vmul.f32 %v295, %v295
  %v3224 = vmul.f32 %v296, %v296
  %v3225 = vmul.f32 %v297, %v297
  %v3226 = vmul.f32 %v298, %v298
  %v3227 = vmul.f32 %v299, %v299
  %v3228 = vmul.f32 %v300, %v300
  %v3229 = vmul.f32 %v301, %v301
  %v3230 = vmul.f32 %v302, %v302
  %v3231 = vmul.f32 %v303, %v303
  %v3232 = vmul.f32 %v304, %v304
  %v3233 = vmul.f32 %v305, %v305
  %v3234 = vmul.f32 %v306, %v306
  %v3235 = vmul.f32 %v307, %v307
  %v3236 = vmul.f32 %v308, %v308
  %v3237 = vmul.f32 %v309, %v309
  %v3238 = vmul.f32 %v310, %v310
  %v3239 = vrcp.pop %v3223
  %v3240 = vrcp.pop %v3224
  %v3241 = vrcp.pop %v3225
  %v3242 = vrcp.pop %v3226
  %v3243 = vrcp.pop %v3227
  %v3244 = vrcp.pop %v3228
  %v3245 = vrcp.pop %v3229
  %v3246 = vrcp.pop %v3230
  %v3247 = vrcp.pop %v3231
  %v3248 = vrcp.pop %v3232
  %v3249 = vrcp.pop %v3233
  %v3250 = vrcp.pop %v3234
  %v3251 = vrcp.pop %v3235
  %v3252 = vrcp.pop %v3236
  %v3253 = vrcp.pop %v3237
  %v3254 = vrcp.pop %v3238
  %v3255 = vmul.f32 %v3207, %v3239
  %v3256 = vmul.f32 %v3208, %v3240
  %v3257 = vmul.f32 %v3209, %v3241
  %v3258 = vmul.f32 %v3210, %v3242
  %v3259 = vmul.f32 %v3211, %v3243
  %v3260 = vmul.f32 %v3212, %v3244
  %v3261 = vmul.f32 %v3213, %v3245
  %v3262 = vmul.f32 %v3214, %v3246
  %v3263 = vmul.f32 %v3215, %v3247
  %v3264 = vmul.f32 %v3216, %v3248
  %v3265 = vmul.f32 %v3217, %v3249
  %v3266 = vmul.f32 %v3218, %v3250
  %v3267 = vmul.f32 %v3219, %v3251
  %v3268 = vmul.f32 %v3220, %v3252
  %v3269 = vmul.f32 %v3221, %v3253
  %v3270 = vmul.f32 %v3222, %v3254
  %vm3271 = vcmask 7168
  %3272 = vst.msk [vmem:[%s11] sm:$0xff] %vm3271, %v3255
  %3273 = vst.msk [vmem:[%s11 + $0x8] sm:$0xff] %vm3271, %v3256
  %3274 = vst.msk [vmem:[%s11 + $0x10] sm:$0xff] %vm3271, %v3257
  %3275 = vst.msk [vmem:[%s11 + $0x18] sm:$0xff] %vm3271, %v3258
  %3276 = vst.msk [vmem:[%s11 + $0x20] sm:$0xff] %vm3271, %v3259
  %3277 = vst.msk [vmem:[%s11 + $0x28] sm:$0xff] %vm3271, %v3260
  %3278 = vst.msk [vmem:[%s11 + $0x30] sm:$0xff] %vm3271, %v3261
  %3279 = vst.msk [vmem:[%s11 + $0x38] sm:$0xff] %vm3271, %v3262
  %3280 = vst.msk [vmem:[%s11 + $0x40] sm:$0xff] %vm3271, %v3263
  %3281 = vst.msk [vmem:[%s11 + $0x48] sm:$0xff] %vm3271, %v3264
  %3282 = vst.msk [vmem:[%s11 + $0x50] sm:$0xff] %vm3271, %v3265
  %3283 = vst.msk [vmem:[%s11 + $0x58] sm:$0xff] %vm3271, %v3266
  %3284 = vst.msk [vmem:[%s11 + $0x60] sm:$0xff] %vm3271, %v3267
  %3285 = vst.msk [vmem:[%s11 + $0x68] sm:$0xff] %vm3271, %v3268
  %3286 = vst.msk [vmem:[%s11 + $0x70] sm:$0xff] %vm3271, %v3269
  %3287 = vst.msk [vmem:[%s11 + $0x78] sm:$0xff] %vm3271, %v3270
  // Predicated region
  $region46: #{tpu_custom_call.1} parent=0 // pred_check
    _
  $region47: #{tpu_custom_call.1} parent=0 // pred_check_branch
    %3289 = sbr.rel (0) target = $region49
  $region48: #{tpu_custom_call.1} parent=0 // pred_region
    _
  $region49: #{tpu_custom_call.1} parent=0 // pred_fallthru
    _
  // Predicated region
  $region50: #{tpu_custom_call.1} parent=0 // pred_check
    _
  $region51: #{tpu_custom_call.1} parent=0 // pred_check_branch
    %3291 = sbr.rel (0) target = $region53
  $region52: #{tpu_custom_call.1} parent=0 // pred_region
    _
  $region53: #{tpu_custom_call.1} parent=0 // pred_fallthru
    _

</llo_original>
